<compile_context>
chip_gen: v6e
topology: v6e:2x2x1
jax: 0.10.0
libtpu: 0.0.40
codegen_flags: <defaults>
</compile_context>

<pallas_src>
import math
import jax
import jax.numpy as jnp
from jax import lax
from jax.experimental import pallas as pl
from jax.experimental.pallas import tpu as pltpu

# ------------------------ configuration (small, synthetic) ------------------------
SENS_SIZE    = 212                 # sens_size
PRO_SIZE     = SENS_SIZE - 208     # pro_size = sens_size - 208
PRIV_SIZE    = 8
HIDDEN       = 32
NUM_LAYERS   = 2                   # num_rnn_layers
SEQ_LEN      = 8
BATCH        = 2
MLP_HIDDEN   = 32                  # hidden_to_pred_shape = hidden_to_gate_shape = [32]
LEAKY_SLOPE  = 0.01                # nn.LeakyReLU default negative_slope
RESET_HIDDEN = True                # reset_hidden_each_epoch default

F32 = jnp.float32
CDT = jnp.bfloat16                 # MXU operand dtype on the recurrent chain only

_VMEM = pl.BlockSpec(memory_space=pltpu.MemorySpace.VMEM)


# =============================== fused Pallas kernel ===============================

def parallel_mode_kernel(x_ref,
                         w0_ref, b0_ref, whh0_ref, bhn0_ref,
                         wih1_ref, bih1_ref, whh1_ref, bhn1_ref,
                         wqkv_ref, bqkv_ref,
                         w1_ref, b1_ref, w2_ref, b2_ref,
                         pred_ref, hN_ref):
    B, T, H, M, P = BATCH, SEQ_LEN, HIDDEN, MLP_HIDDEN, PRIV_SIZE
    H2, H4, H6 = 2 * H, 4 * H, 6 * H

    def leaky(v):
        return jnp.where(v > 0, v, LEAKY_SLOPE * v)

    # Hoisted layer-0 input->gate projection for BOTH GRU stacks in one matmul
    # (stack-2 ('rnn_pro') weight is zero-padded over x[:, PRO:]).  Fused gate
    # layout along lanes: [r1 r2 | z1 z2 | n1 n2]; b_hh_{r,z} pre-folded into b0.
    gi0 = jnp.dot(x_ref[...], w0_ref[...],
                  preferred_element_type=F32) + b0_ref[...]                # (T*B, 6H)

    whh0 = whh0_ref[...]            # bf16 (2H, 6H) block-diag, both stacks
    whh1 = whh1_ref[...]            # bf16 (2H, 6H)
    wih1 = wih1_ref[...]            # bf16 (2H, 6H)
    bih1 = bih1_ref[...]            # f32  (1, 6H)  (b_ih + b_hh_{r,z} folded)
    bhn0 = bhn0_ref[...]            # f32  (1, 2H)  (b_hh_n, both stacks)
    bhn1 = bhn1_ref[...]            # f32  (1, 2H)

    h0 = jnp.zeros((B, H2), F32)    # layer-0 hidden [rnn | rnn_pro] (reset each call)
    h1 = jnp.zeros((B, H2), F32)    # layer-1 hidden [rnn | rnn_pro]
    seq = []

    # Fused recurrence: both stacks per step via block-diagonal weights; layer 1
    # pipelines one step behind layer 0 (its input gates computed per step).
    for t in range(T):
        # matmuls that only depend on previous-step state are pushed first
        gh0 = jnp.dot(h0.astype(CDT), whh0, preferred_element_type=F32)    # (B, 6H)
        gh1 = jnp.dot(h1.astype(CDT), whh1, preferred_element_type=F32)    # (B, 6H)
        git = gi0[t * B:(t + 1) * B, :]                                     # (B, 6H)

        rz0 = jax.nn.sigmoid(git[:, 0:H4] + gh0[:, 0:H4])                   # (B, 4H)
        n0 = jnp.tanh(git[:, H4:H6] + rz0[:, 0:H2] * (gh0[:, H4:H6] + bhn0))
        h0 = n0 + rz0[:, H2:H4] * (h0 - n0)

        gi1 = jnp.dot(h0.astype(CDT), wih1, preferred_element_type=F32) + bih1
        rz1 = jax.nn.sigmoid(gi1[:, 0:H4] + gh1[:, 0:H4])
        n1 = jnp.tanh(gi1[:, H4:H6] + rz1[:, 0:H2] * (gh1[:, H4:H6] + bhn1))
        h1 = n1 + rz1[:, H2:H4] * (h1 - n1)
        seq.append(h1)

    # next_hidden is returned for the 'rnn' stack only (stack-1 halves), one store
    hN_ref[...] = jnp.concatenate([h0[:, 0:H], h1[:, 0:H]], axis=0)         # (L*B, H)

    # -------- epilogue: fused QKV (both attentions), batched fused heads ----------
    # exte_input (x[:, :, -208:]) is computed in the torch forward but never used.
    slab = jnp.concatenate([seq[t][b:b + 1, :] for b in range(B) for t in range(T)],
                           axis=0)                                           # (B*T, 2H)
    qkv = jnp.dot(slab, wqkv_ref[...],
                  preferred_element_type=F32) + bqkv_ref[...]                # (B*T, 6H)

    inv_sqrt_h = 1.0 / math.sqrt(H)
    att_rows = []
    for b in range(B):
        qb = qkv[b * T:(b + 1) * T, :]
        outs = []
        for a in range(2):          # a=0: attention (rnn), a=1: attention_exte (pro)
            base = 3 * a * H
            q = qb[:, base:base + H]
            k = qb[:, base + H:base + 2 * H]
            v = qb[:, base + 2 * H:base + 3 * H]
            s = lax.dot_general(q, k, (((1,), (1,)), ((), ())),
                                preferred_element_type=F32) * inv_sqrt_h     # (T, T)
            s = s - jnp.max(s, axis=-1, keepdims=True)
            e = jnp.exp(s)
            p = e * pl.reciprocal(jnp.sum(e, axis=-1, keepdims=True), approx=True)
            outs.append(jnp.dot(p, v, preferred_element_type=F32))           # (T, H)
        att_rows.append(jnp.concatenate(outs, axis=1))                        # (T, 2H)
    att = jnp.concatenate(att_rows, axis=0)                                   # (B*T, 2H)

    # fused pred|gate|exte two-layer MLPs (block-diagonal weights), all B*T rows
    mid = leaky(jnp.dot(att, w1_ref[...], preferred_element_type=F32) + b1_ref[...])
    out = jnp.dot(mid, w2_ref[...], preferred_element_type=F32) + b2_ref[...]  # (B*T, 3P)
    alpha = jax.nn.sigmoid(out[:, P:2 * P])
    pred_ref[...] = alpha * out[:, 2 * P:3 * P] + out[:, 0:P]                  # (B*T, P)


# =============================== wrapper ===========================================

@jax.jit
def parallel_mode_forward(x, hidden, packed):
    """ParallelMode.forward.  x: (batch, seq, sens_size)."""
    del hidden     # reset_hidden_each_epoch=True -> zero hidden built inside the kernel
    B_, T_, S_ = x.shape
    # torch: x = x.permute(1, 0, 2); flatten seq-major so row = t*B + b
    x_tb = jnp.transpose(x, (1, 0, 2)).reshape(T_ * B_, S_)
    args = (x_tb,) + packed
    pred_flat, hn_flat = pl.pallas_call(
        parallel_mode_kernel,
        out_shape=(jax.ShapeDtypeStruct((B_ * T_, PRIV_SIZE), jnp.float32),
                   jax.ShapeDtypeStruct((NUM_LAYERS * B_, HIDDEN), jnp.float32)),
        in_specs=[_VMEM] * len(args),
        out_specs=(_VMEM, _VMEM),
    )(*args)
    return (pred_flat.reshape(B_, T_, PRIV_SIZE),
            hn_flat.reshape(NUM_LAYERS, B_, HIDDEN))


# =============================== parameter packing =================================

def pack_params(params):
    """One-time fuse/transposition of torch-layout weights into the kernel layouts."""
    assert NUM_LAYERS == 2
    H, M, P = HIDDEN, MLP_HIDDEN, PRIV_SIZE
    S, PRO = SENS_SIZE, PRO_SIZE
    f32 = jnp.float32

    def gates_w(w):                              # (3H, D) -> r, z, n each (H, D)
        return w[0:H], w[H:2 * H], w[2 * H:3 * H]

    def gates_b(b):
        return b[0:H], b[H:2 * H], b[2 * H:3 * H]

    (r_wih0, r_whh0, r_bih0, r_bhh0), (r_wih1, r_whh1, r_bih1, r_bhh1) = params['rnn']
    (p_wih0, p_whh0, p_bih0, p_bhh0), (p_wih1, p_whh1, p_bih1, p_bhh1) = params['rnn_pro']

    def pad_pro(w):                              # (H, PRO) -> (H, S), zeros past PRO
        return jnp.concatenate([w, jnp.zeros((H, S - PRO), f32)], axis=1)

    # fused layer-0 input weight, gate layout [r1 r2 | z1 z2 | n1 n2]
    r1r, r1z, r1n = gates_w(r_wih0)
    p1r, p1z, p1n = gates_w(p_wih0)
    w0 = jnp.concatenate([r1r.T, pad_pro(p1r).T, r1z.T, pad_pro(p1z).T,
                          r1n.T, pad_pro(p1n).T], axis=1)                 # (S, 6H)

    def fuse_bias(bih_a, bhh_a, bih_b, bhh_b):
        ar, az, an = gates_b(bih_a); Ar, Az, An = gates_b(bhh_a)
        br, bz, bn = gates_b(bih_b); Br, Bz, Bn = gates_b(bhh_b)
        b_in = jnp.concatenate([ar + Ar, br + Br, az + Az, bz + Bz, an, bn]
                               ).reshape(1, -1)                            # (1, 6H)
        b_hn = jnp.concatenate([An, Bn]).reshape(1, -1)                    # (1, 2H)
        return b_in, b_hn

    b0, bhn0 = fuse_bias(r_bih0, r_bhh0, p_bih0, p_bhh0)
    bih1, bhn1 = fuse_bias(r_bih1, r_bhh1, p_bih1, p_bhh1)

    def fuse_blockdiag(wa, wb):                  # wa, wb: (3H, H) -> (2H, 6H)
        ar, az, an = gates_w(wa); br, bz, bn = gates_w(wb)
        Z = jnp.zeros((H, H), f32)
        top = jnp.concatenate([ar.T, Z, az.T, Z, an.T, Z], axis=1)
        bot = jnp.concatenate([Z, br.T, Z, bz.T, Z, bn.T], axis=1)
        return jnp.concatenate([top, bot], axis=0)

    whh0 = fuse_blockdiag(r_whh0, p_whh0).astype(CDT)
    wih1 = fuse_blockdiag(r_wih1, p_wih1).astype(CDT)
    whh1 = fuse_blockdiag(r_whh1, p_whh1).astype(CDT)

    # fused QKV for attention / attention_exte (block diagonal over [h_rnn | h_pro])
    aq_w, aq_b, ak_w, ak_b, av_w, av_b = params['attn']
    eq_w, eq_b, ek_w, ek_b, ev_w, ev_b = params['attn_exte']
    Z = jnp.zeros((H, H), f32)
    wqkv = jnp.concatenate(
        [jnp.concatenate([aq_w.T, ak_w.T, av_w.T, Z, Z, Z], axis=1),
         jnp.concatenate([Z, Z, Z, eq_w.T, ek_w.T, ev_w.T], axis=1)], axis=0)  # (2H, 6H)
    bqkv = jnp.concatenate([aq_b, ak_b, av_b, eq_b, ek_b, ev_b]).reshape(1, -1)

    # fused pred|gate|exte MLPs (block-diagonal layer weights)
    pw1, pb1, pw2, pb2 = params['hidden_to_pred']
    gw1, gb1, gw2, gb2 = params['hidden_to_gate']
    ew1, eb1, ew2, eb2 = params['hidden_to_pred_exte']
    ZHM = jnp.zeros((H, M), f32)
    w1f = jnp.concatenate(
        [jnp.concatenate([pw1.T, gw1.T, ZHM], axis=1),
         jnp.concatenate([ZHM, ZHM, ew1.T], axis=1)], axis=0)              # (2H, 3M)
    b1f = jnp.concatenate([pb1, gb1, eb1]).reshape(1, -1)
    ZMP = jnp.zeros((M, P), f32)
    w2f = jnp.concatenate(
        [jnp.concatenate([pw2.T, ZMP, ZMP], axis=1),
         jnp.concatenate([ZMP, gw2.T, ZMP], axis=1),
         jnp.concatenate([ZMP, ZMP, ew2.T], axis=1)], axis=0)              # (3M, 3P)
    b2f = jnp.concatenate([pb2, gb2, eb2]).reshape(1, -1)

    return (w0, b0, whh0, bhn0, wih1, bih1, whh1, bhn1,
            wqkv, bqkv, w1f, b1f, w2f, b2f)


# =============================== params (deterministic) ============================

def _uniform(key, shape, bound):
    return jax.random.uniform(key, shape, jnp.float32, -bound, bound)


def init_linear(key, in_dim, out_dim):
    k1, k2 = jax.random.split(key)
    b = 1.0 / math.sqrt(in_dim)
    return _uniform(k1, (out_dim, in_dim), b), _uniform(k2, (out_dim,), b)


def init_gru(key, in_dim, hidden, num_layers):
    params = []
    b = 1.0 / math.sqrt(hidden)
    for l in range(num_layers):
        key, k0, k1, k2, k3 = jax.random.split(key, 5)
        d = in_dim if l == 0 else hidden
        params.append((_uniform(k0, (3 * hidden, d), b),
                       _uniform(k1, (3 * hidden, hidden), b),
                       _uniform(k2, (3 * hidden,), b),
                       _uniform(k3, (3 * hidden,), b)))
    return params


def init_attention(key, dim):
    kq, kk, kv = jax.random.split(key, 3)
    wq, bq = init_linear(kq, dim, dim)
    wk, bk = init_linear(kk, dim, dim)
    wv, bv = init_linear(kv, dim, dim)
    return (wq, bq, wk, bk, wv, bv)


def init_mlp(key, in_dim, hid, out_dim):
    k1, k2 = jax.random.split(key)
    w1, b1 = init_linear(k1, in_dim, hid)
    w2, b2 = init_linear(k2, hid, out_dim)
    return (w1, b1, w2, b2)


def init_params(key):
    ks = jax.random.split(key, 7)
    return {
        'rnn':                 init_gru(ks[0], SENS_SIZE, HIDDEN, NUM_LAYERS),
        'rnn_pro':             init_gru(ks[1], PRO_SIZE, HIDDEN, NUM_LAYERS),
        'attn':                init_attention(ks[2], HIDDEN),
        'attn_exte':           init_attention(ks[3], HIDDEN),
        'hidden_to_pred':      init_mlp(ks[4], HIDDEN, MLP_HIDDEN, PRIV_SIZE),
        'hidden_to_gate':      init_mlp(ks[5], HIDDEN, MLP_HIDDEN, PRIV_SIZE),
        'hidden_to_pred_exte': init_mlp(ks[6], HIDDEN, MLP_HIDDEN, PRIV_SIZE),
    }


# =============================== pure-JAX reference ================================

def _gru_layer_ref(x, h0, w_ih, w_hh, b_ih, b_hh):
    H = h0.shape[1]

    def step(h, x_t):
        gi = x_t @ w_ih.T + b_ih
        gh = h @ w_hh.T + b_hh
        r = jax.nn.sigmoid(gi[:, :H] + gh[:, :H])
        z = jax.nn.sigmoid(gi[:, H:2 * H] + gh[:, H:2 * H])
        n = jnp.tanh(gi[:, 2 * H:] + r * gh[:, 2 * H:])
        h_new = (1.0 - z) * n + z * h
        return h_new, h_new

    hN, outs = lax.scan(step, h0, x)
    return outs, hN


def _gru_ref(x, h0, layer_params):
    outputs, finals = x, []
    for l, p in enumerate(layer_params):
        outputs, hN = _gru_layer_ref(outputs, h0[l], *p)
        finals.append(hN)
    return outputs, jnp.stack(finals, 0)


def _attn_ref(x, p):
    wq, bq, wk, bk, wv, bv = p
    q = x @ wq.T + bq
    k = x @ wk.T + bk
    v = x @ wv.T + bv
    s = jnp.einsum('btk,bsk->bts', q, k) / (x.shape[-1] ** 0.5)
    a = jax.nn.softmax(s, axis=-1)
    return jnp.einsum('bts,bsh->bth', a, v)


def _mlp_ref(x, p):
    w1, b1, w2, b2 = p
    h = x @ w1.T + b1
    h = jnp.where(h > 0, h, LEAKY_SLOPE * h)
    return h @ w2.T + b2


def parallel_mode_ref(x, hidden, params):
    B = x.shape[0]
    xs = jnp.transpose(x, (1, 0, 2))
    if RESET_HIDDEN or hidden is None:
        hidden = jnp.zeros((NUM_LAYERS, B, HIDDEN), jnp.float32)
    pro_input = xs[:, :, :PRO_SIZE]
    output, next_hidden = _gru_ref(xs, hidden, params['rnn'])
    output = jnp.transpose(output, (1, 0, 2))
    ow = _attn_ref(output, params['attn'])
    pro_output, _ = _gru_ref(pro_input, hidden, params['rnn_pro'])
    pro_output = jnp.transpose(pro_output, (1, 0, 2))
    pw = _attn_ref(pro_output, params['attn_exte'])
    pro_pred = _mlp_ref(pw, params['hidden_to_pred_exte'])
    alpha = jax.nn.sigmoid(_mlp_ref(ow, params['hidden_to_gate']))
    pred = alpha * pro_pred + _mlp_ref(ow, params['hidden_to_pred'])
    return pred, next_hidden


# =============================== main ==============================================

if __name__ == "__main__":
    key = jax.random.PRNGKey(0)
    k_par, k_x = jax.random.split(key)
    params = init_params(k_par)
    packed = pack_params(params)          # one-time weight fuse / layout prep

    x = jax.random.normal(k_x, (BATCH, SEQ_LEN, SENS_SIZE), jnp.float32)
    hidden = None   # reset_hidden_each_epoch=True -> zeros inside the kernel

    pred, next_hidden = parallel_mode_forward(x, hidden, packed)
    jax.block_until_ready(pred)
    jax.block_until_ready(next_hidden)

    pred_ref, next_hidden_ref = parallel_mode_ref(x, hidden, params)
    assert pred.shape == (BATCH, SEQ_LEN, PRIV_SIZE)
    assert next_hidden.shape == (NUM_LAYERS, BATCH, HIDDEN)
    assert bool(jnp.allclose(pred, pred_ref, atol=2e-2, rtol=2e-2))
    assert bool(jnp.allclose(next_hidden, next_hidden_ref, atol=2e-2, rtol=2e-2))

    print("KERNEL_OK")
</pallas_src>

<mosaic_0001>
module attributes {stable_mosaic.version = 11 : i64} {
  func.func @parallel_mode_kernel(%arg0: memref<16x212xf32, #tpu.memory_space<vmem>>, %arg1: memref<212x192xf32, #tpu.memory_space<vmem>>, %arg2: memref<1x192xf32, #tpu.memory_space<vmem>>, %arg3: memref<64x192xbf16, #tpu.memory_space<vmem>>, %arg4: memref<1x64xf32, #tpu.memory_space<vmem>>, %arg5: memref<64x192xbf16, #tpu.memory_space<vmem>>, %arg6: memref<1x192xf32, #tpu.memory_space<vmem>>, %arg7: memref<64x192xbf16, #tpu.memory_space<vmem>>, %arg8: memref<1x64xf32, #tpu.memory_space<vmem>>, %arg9: memref<64x192xf32, #tpu.memory_space<vmem>>, %arg10: memref<1x192xf32, #tpu.memory_space<vmem>>, %arg11: memref<64x96xf32, #tpu.memory_space<vmem>>, %arg12: memref<1x96xf32, #tpu.memory_space<vmem>>, %arg13: memref<96x24xf32, #tpu.memory_space<vmem>>, %arg14: memref<1x24xf32, #tpu.memory_space<vmem>>, %arg15: memref<16x8xf32, #tpu.memory_space<vmem>>, %arg16: memref<4x32xf32, #tpu.memory_space<vmem>>) attributes {dimension_semantics = [], scalar_prefetch = 0 : i64, scratch_operands = 0 : i64, tpu.core_type = #tpu.core_type<tc>} {
    %c0 = arith.constant 0 : index
    %c0_0 = arith.constant 0 : index
    %0 = vector.load %arg0[%c0, %c0_0] : memref<16x212xf32, #tpu.memory_space<vmem>>, vector<16x212xf32>
    %c0_1 = arith.constant 0 : index
    %c0_2 = arith.constant 0 : index
    %1 = vector.load %arg1[%c0_1, %c0_2] : memref<212x192xf32, #tpu.memory_space<vmem>>, vector<212x192xf32>
    %cst = arith.constant dense<0.000000e+00> : vector<16x192xf32>
    %2 = tpu.matmul %0, %1, %cst {dimension_numbers = #tpu.dot_dimension_numbers<[1], [0], [0], [1], [0, 0, 1, 1], [], []>} : vector<16x212xf32>, vector<212x192xf32>, vector<16x192xf32> -> vector<16x192xf32>
    %c0_3 = arith.constant 0 : index
    %c0_4 = arith.constant 0 : index
    %3 = vector.load %arg2[%c0_3, %c0_4] : memref<1x192xf32, #tpu.memory_space<vmem>>, vector<1x192xf32>
    %4 = vector.broadcast %3 : vector<1x192xf32> to vector<16x192xf32>
    %5 = arith.addf %2, %4 : vector<16x192xf32>
    %c0_5 = arith.constant 0 : index
    %c0_6 = arith.constant 0 : index
    %6 = vector.load %arg3[%c0_5, %c0_6] : memref<64x192xbf16, #tpu.memory_space<vmem>>, vector<64x192xbf16>
    %c0_7 = arith.constant 0 : index
    %c0_8 = arith.constant 0 : index
    %7 = vector.load %arg7[%c0_7, %c0_8] : memref<64x192xbf16, #tpu.memory_space<vmem>>, vector<64x192xbf16>
    %c0_9 = arith.constant 0 : index
    %c0_10 = arith.constant 0 : index
    %8 = vector.load %arg5[%c0_9, %c0_10] : memref<64x192xbf16, #tpu.memory_space<vmem>>, vector<64x192xbf16>
    %c0_11 = arith.constant 0 : index
    %c0_12 = arith.constant 0 : index
    %9 = vector.load %arg6[%c0_11, %c0_12] : memref<1x192xf32, #tpu.memory_space<vmem>>, vector<1x192xf32>
    %c0_13 = arith.constant 0 : index
    %c0_14 = arith.constant 0 : index
    %10 = vector.load %arg4[%c0_13, %c0_14] : memref<1x64xf32, #tpu.memory_space<vmem>>, vector<1x64xf32>
    %c0_15 = arith.constant 0 : index
    %c0_16 = arith.constant 0 : index
    %11 = vector.load %arg8[%c0_15, %c0_16] : memref<1x64xf32, #tpu.memory_space<vmem>>, vector<1x64xf32>
    %cst_17 = arith.constant 0.000000e+00 : f32
    %12 = vector.broadcast %cst_17 : f32 to vector<2x64xf32>
    %cst_18 = arith.constant 0.000000e+00 : f32
    %13 = vector.broadcast %cst_18 : f32 to vector<2x64xf32>
    %14 = arith.truncf %12 : vector<2x64xf32> to vector<2x64xbf16>
    %cst_19 = arith.constant dense<0.000000e+00> : vector<2x192xf32>
    %15 = tpu.matmul %14, %6, %cst_19 {dimension_numbers = #tpu.dot_dimension_numbers<[1], [0], [0], [1], [0, 0, 1, 1], [], []>} : vector<2x64xbf16>, vector<64x192xbf16>, vector<2x192xf32> -> vector<2x192xf32>
    %16 = arith.truncf %13 : vector<2x64xf32> to vector<2x64xbf16>
    %cst_20 = arith.constant dense<0.000000e+00> : vector<2x192xf32>
    %17 = tpu.matmul %16, %7, %cst_20 {dimension_numbers = #tpu.dot_dimension_numbers<[1], [0], [0], [1], [0, 0, 1, 1], [], []>} : vector<2x64xbf16>, vector<64x192xbf16>, vector<2x192xf32> -> vector<2x192xf32>
    %18 = vector.extract_strided_slice %5 {offsets = [0, 0], sizes = [2, 192], strides = [1, 1]} : vector<16x192xf32> to vector<2x192xf32>
    %19 = vector.extract_strided_slice %18 {offsets = [0, 0], sizes = [2, 128], strides = [1, 1]} : vector<2x192xf32> to vector<2x128xf32>
    %20 = vector.extract_strided_slice %15 {offsets = [0, 0], sizes = [2, 128], strides = [1, 1]} : vector<2x192xf32> to vector<2x128xf32>
    %21 = arith.addf %19, %20 : vector<2x128xf32>
    %22 = arith.negf %21 : vector<2x128xf32>
    %23 = math.exp %22 : vector<2x128xf32>
    %cst_21 = arith.constant 1.000000e+00 : f32
    %24 = vector.broadcast %cst_21 : f32 to vector<2x128xf32>
    %25 = arith.addf %24, %23 : vector<2x128xf32>
    %26 = arith.divf %24, %25 : vector<2x128xf32>
    %27 = vector.extract_strided_slice %18 {offsets = [0, 128], sizes = [2, 64], strides = [1, 1]} : vector<2x192xf32> to vector<2x64xf32>
    %28 = vector.extract_strided_slice %26 {offsets = [0, 0], sizes = [2, 64], strides = [1, 1]} : vector<2x128xf32> to vector<2x64xf32>
    %29 = vector.extract_strided_slice %15 {offsets = [0, 128], sizes = [2, 64], strides = [1, 1]} : vector<2x192xf32> to vector<2x64xf32>
    %30 = vector.broadcast %10 : vector<1x64xf32> to vector<2x64xf32>
    %31 = arith.addf %29, %30 : vector<2x64xf32>
    %32 = arith.mulf %28, %31 : vector<2x64xf32>
    %33 = arith.addf %27, %32 : vector<2x64xf32>
    %34 = math.tanh %33 : vector<2x64xf32>
    %35 = vector.extract_strided_slice %26 {offsets = [0, 64], sizes = [2, 64], strides = [1, 1]} : vector<2x128xf32> to vector<2x64xf32>
    %36 = arith.subf %12, %34 : vector<2x64xf32>
    %37 = arith.mulf %35, %36 : vector<2x64xf32>
    %38 = arith.addf %34, %37 : vector<2x64xf32>
    %39 = arith.truncf %38 : vector<2x64xf32> to vector<2x64xbf16>
    %cst_22 = arith.constant dense<0.000000e+00> : vector<2x192xf32>
    %40 = tpu.matmul %39, %8, %cst_22 {dimension_numbers = #tpu.dot_dimension_numbers<[1], [0], [0], [1], [0, 0, 1, 1], [], []>} : vector<2x64xbf16>, vector<64x192xbf16>, vector<2x192xf32> -> vector<2x192xf32>
    %41 = vector.broadcast %9 : vector<1x192xf32> to vector<2x192xf32>
    %42 = arith.addf %40, %41 : vector<2x192xf32>
    %43 = vector.extract_strided_slice %42 {offsets = [0, 0], sizes = [2, 128], strides = [1, 1]} : vector<2x192xf32> to vector<2x128xf32>
    %44 = vector.extract_strided_slice %17 {offsets = [0, 0], sizes = [2, 128], strides = [1, 1]} : vector<2x192xf32> to vector<2x128xf32>
    %45 = arith.addf %43, %44 : vector<2x128xf32>
    %46 = arith.negf %45 : vector<2x128xf32>
    %47 = math.exp %46 : vector<2x128xf32>
    %cst_23 = arith.constant 1.000000e+00 : f32
    %48 = vector.broadcast %cst_23 : f32 to vector<2x128xf32>
    %49 = arith.addf %48, %47 : vector<2x128xf32>
    %50 = arith.divf %48, %49 : vector<2x128xf32>
    %51 = vector.extract_strided_slice %42 {offsets = [0, 128], sizes = [2, 64], strides = [1, 1]} : vector<2x192xf32> to vector<2x64xf32>
    %52 = vector.extract_strided_slice %50 {offsets = [0, 0], sizes = [2, 64], strides = [1, 1]} : vector<2x128xf32> to vector<2x64xf32>
    %53 = vector.extract_strided_slice %17 {offsets = [0, 128], sizes = [2, 64], strides = [1, 1]} : vector<2x192xf32> to vector<2x64xf32>
    %54 = vector.broadcast %11 : vector<1x64xf32> to vector<2x64xf32>
    %55 = arith.addf %53, %54 : vector<2x64xf32>
    %56 = arith.mulf %52, %55 : vector<2x64xf32>
    %57 = arith.addf %51, %56 : vector<2x64xf32>
    %58 = math.tanh %57 : vector<2x64xf32>
    %59 = vector.extract_strided_slice %50 {offsets = [0, 64], sizes = [2, 64], strides = [1, 1]} : vector<2x128xf32> to vector<2x64xf32>
    %60 = arith.subf %13, %58 : vector<2x64xf32>
    %61 = arith.mulf %59, %60 : vector<2x64xf32>
    %62 = arith.addf %58, %61 : vector<2x64xf32>
    %63 = arith.truncf %38 : vector<2x64xf32> to vector<2x64xbf16>
    %cst_24 = arith.constant dense<0.000000e+00> : vector<2x192xf32>
    %64 = tpu.matmul %63, %6, %cst_24 {dimension_numbers = #tpu.dot_dimension_numbers<[1], [0], [0], [1], [0, 0, 1, 1], [], []>} : vector<2x64xbf16>, vector<64x192xbf16>, vector<2x192xf32> -> vector<2x192xf32>
    %65 = arith.truncf %62 : vector<2x64xf32> to vector<2x64xbf16>
    %cst_25 = arith.constant dense<0.000000e+00> : vector<2x192xf32>
    %66 = tpu.matmul %65, %7, %cst_25 {dimension_numbers = #tpu.dot_dimension_numbers<[1], [0], [0], [1], [0, 0, 1, 1], [], []>} : vector<2x64xbf16>, vector<64x192xbf16>, vector<2x192xf32> -> vector<2x192xf32>
    %67 = vector.extract_strided_slice %5 {offsets = [2, 0], sizes = [2, 192], strides = [1, 1]} : vector<16x192xf32> to vector<2x192xf32>
    %68 = vector.extract_strided_slice %67 {offsets = [0, 0], sizes = [2, 128], strides = [1, 1]} : vector<2x192xf32> to vector<2x128xf32>
    %69 = vector.extract_strided_slice %64 {offsets = [0, 0], sizes = [2, 128], strides = [1, 1]} : vector<2x192xf32> to vector<2x128xf32>
    %70 = arith.addf %68, %69 : vector<2x128xf32>
    %71 = arith.negf %70 : vector<2x128xf32>
    %72 = math.exp %71 : vector<2x128xf32>
    %cst_26 = arith.constant 1.000000e+00 : f32
    %73 = vector.broadcast %cst_26 : f32 to vector<2x128xf32>
    %74 = arith.addf %73, %72 : vector<2x128xf32>
    %75 = arith.divf %73, %74 : vector<2x128xf32>
    %76 = vector.extract_strided_slice %67 {offsets = [0, 128], sizes = [2, 64], strides = [1, 1]} : vector<2x192xf32> to vector<2x64xf32>
    %77 = vector.extract_strided_slice %75 {offsets = [0, 0], sizes = [2, 64], strides = [1, 1]} : vector<2x128xf32> to vector<2x64xf32>
    %78 = vector.extract_strided_slice %64 {offsets = [0, 128], sizes = [2, 64], strides = [1, 1]} : vector<2x192xf32> to vector<2x64xf32>
    %79 = vector.broadcast %10 : vector<1x64xf32> to vector<2x64xf32>
    %80 = arith.addf %78, %79 : vector<2x64xf32>
    %81 = arith.mulf %77, %80 : vector<2x64xf32>
    %82 = arith.addf %76, %81 : vector<2x64xf32>
    %83 = math.tanh %82 : vector<2x64xf32>
    %84 = vector.extract_strided_slice %75 {offsets = [0, 64], sizes = [2, 64], strides = [1, 1]} : vector<2x128xf32> to vector<2x64xf32>
    %85 = arith.subf %38, %83 : vector<2x64xf32>
    %86 = arith.mulf %84, %85 : vector<2x64xf32>
    %87 = arith.addf %83, %86 : vector<2x64xf32>
    %88 = arith.truncf %87 : vector<2x64xf32> to vector<2x64xbf16>
    %cst_27 = arith.constant dense<0.000000e+00> : vector<2x192xf32>
    %89 = tpu.matmul %88, %8, %cst_27 {dimension_numbers = #tpu.dot_dimension_numbers<[1], [0], [0], [1], [0, 0, 1, 1], [], []>} : vector<2x64xbf16>, vector<64x192xbf16>, vector<2x192xf32> -> vector<2x192xf32>
    %90 = vector.broadcast %9 : vector<1x192xf32> to vector<2x192xf32>
    %91 = arith.addf %89, %90 : vector<2x192xf32>
    %92 = vector.extract_strided_slice %91 {offsets = [0, 0], sizes = [2, 128], strides = [1, 1]} : vector<2x192xf32> to vector<2x128xf32>
    %93 = vector.extract_strided_slice %66 {offsets = [0, 0], sizes = [2, 128], strides = [1, 1]} : vector<2x192xf32> to vector<2x128xf32>
    %94 = arith.addf %92, %93 : vector<2x128xf32>
    %95 = arith.negf %94 : vector<2x128xf32>
    %96 = math.exp %95 : vector<2x128xf32>
    %cst_28 = arith.constant 1.000000e+00 : f32
    %97 = vector.broadcast %cst_28 : f32 to vector<2x128xf32>
    %98 = arith.addf %97, %96 : vector<2x128xf32>
    %99 = arith.divf %97, %98 : vector<2x128xf32>
    %100 = vector.extract_strided_slice %91 {offsets = [0, 128], sizes = [2, 64], strides = [1, 1]} : vector<2x192xf32> to vector<2x64xf32>
    %101 = vector.extract_strided_slice %99 {offsets = [0, 0], sizes = [2, 64], strides = [1, 1]} : vector<2x128xf32> to vector<2x64xf32>
    %102 = vector.extract_strided_slice %66 {offsets = [0, 128], sizes = [2, 64], strides = [1, 1]} : vector<2x192xf32> to vector<2x64xf32>
    %103 = vector.broadcast %11 : vector<1x64xf32> to vector<2x64xf32>
    %104 = arith.addf %102, %103 : vector<2x64xf32>
    %105 = arith.mulf %101, %104 : vector<2x64xf32>
    %106 = arith.addf %100, %105 : vector<2x64xf32>
    %107 = math.tanh %106 : vector<2x64xf32>
    %108 = vector.extract_strided_slice %99 {offsets = [0, 64], sizes = [2, 64], strides = [1, 1]} : vector<2x128xf32> to vector<2x64xf32>
    %109 = arith.subf %62, %107 : vector<2x64xf32>
    %110 = arith.mulf %108, %109 : vector<2x64xf32>
    %111 = arith.addf %107, %110 : vector<2x64xf32>
    %112 = arith.truncf %87 : vector<2x64xf32> to vector<2x64xbf16>
    %cst_29 = arith.constant dense<0.000000e+00> : vector<2x192xf32>
    %113 = tpu.matmul %112, %6, %cst_29 {dimension_numbers = #tpu.dot_dimension_numbers<[1], [0], [0], [1], [0, 0, 1, 1], [], []>} : vector<2x64xbf16>, vector<64x192xbf16>, vector<2x192xf32> -> vector<2x192xf32>
    %114 = arith.truncf %111 : vector<2x64xf32> to vector<2x64xbf16>
    %cst_30 = arith.constant dense<0.000000e+00> : vector<2x192xf32>
    %115 = tpu.matmul %114, %7, %cst_30 {dimension_numbers = #tpu.dot_dimension_numbers<[1], [0], [0], [1], [0, 0, 1, 1], [], []>} : vector<2x64xbf16>, vector<64x192xbf16>, vector<2x192xf32> -> vector<2x192xf32>
    %116 = vector.extract_strided_slice %5 {offsets = [4, 0], sizes = [2, 192], strides = [1, 1]} : vector<16x192xf32> to vector<2x192xf32>
    %117 = vector.extract_strided_slice %116 {offsets = [0, 0], sizes = [2, 128], strides = [1, 1]} : vector<2x192xf32> to vector<2x128xf32>
    %118 = vector.extract_strided_slice %113 {offsets = [0, 0], sizes = [2, 128], strides = [1, 1]} : vector<2x192xf32> to vector<2x128xf32>
    %119 = arith.addf %117, %118 : vector<2x128xf32>
    %120 = arith.negf %119 : vector<2x128xf32>
    %121 = math.exp %120 : vector<2x128xf32>
    %cst_31 = arith.constant 1.000000e+00 : f32
    %122 = vector.broadcast %cst_31 : f32 to vector<2x128xf32>
    %123 = arith.addf %122, %121 : vector<2x128xf32>
    %124 = arith.divf %122, %123 : vector<2x128xf32>
    %125 = vector.extract_strided_slice %116 {offsets = [0, 128], sizes = [2, 64], strides = [1, 1]} : vector<2x192xf32> to vector<2x64xf32>
    %126 = vector.extract_strided_slice %124 {offsets = [0, 0], sizes = [2, 64], strides = [1, 1]} : vector<2x128xf32> to vector<2x64xf32>
    %127 = vector.extract_strided_slice %113 {offsets = [0, 128], sizes = [2, 64], strides = [1, 1]} : vector<2x192xf32> to vector<2x64xf32>
    %128 = vector.broadcast %10 : vector<1x64xf32> to vector<2x64xf32>
    %129 = arith.addf %127, %128 : vector<2x64xf32>
    %130 = arith.mulf %126, %129 : vector<2x64xf32>
    %131 = arith.addf %125, %130 : vector<2x64xf32>
    %132 = math.tanh %131 : vector<2x64xf32>
    %133 = vector.extract_strided_slice %124 {offsets = [0, 64], sizes = [2, 64], strides = [1, 1]} : vector<2x128xf32> to vector<2x64xf32>
    %134 = arith.subf %87, %132 : vector<2x64xf32>
    %135 = arith.mulf %133, %134 : vector<2x64xf32>
    %136 = arith.addf %132, %135 : vector<2x64xf32>
    %137 = arith.truncf %136 : vector<2x64xf32> to vector<2x64xbf16>
    %cst_32 = arith.constant dense<0.000000e+00> : vector<2x192xf32>
    %138 = tpu.matmul %137, %8, %cst_32 {dimension_numbers = #tpu.dot_dimension_numbers<[1], [0], [0], [1], [0, 0, 1, 1], [], []>} : vector<2x64xbf16>, vector<64x192xbf16>, vector<2x192xf32> -> vector<2x192xf32>
    %139 = vector.broadcast %9 : vector<1x192xf32> to vector<2x192xf32>
    %140 = arith.addf %138, %139 : vector<2x192xf32>
    %141 = vector.extract_strided_slice %140 {offsets = [0, 0], sizes = [2, 128], strides = [1, 1]} : vector<2x192xf32> to vector<2x128xf32>
    %142 = vector.extract_strided_slice %115 {offsets = [0, 0], sizes = [2, 128], strides = [1, 1]} : vector<2x192xf32> to vector<2x128xf32>
    %143 = arith.addf %141, %142 : vector<2x128xf32>
    %144 = arith.negf %143 : vector<2x128xf32>
    %145 = math.exp %144 : vector<2x128xf32>
    %cst_33 = arith.constant 1.000000e+00 : f32
    %146 = vector.broadcast %cst_33 : f32 to vector<2x128xf32>
    %147 = arith.addf %146, %145 : vector<2x128xf32>
    %148 = arith.divf %146, %147 : vector<2x128xf32>
    %149 = vector.extract_strided_slice %140 {offsets = [0, 128], sizes = [2, 64], strides = [1, 1]} : vector<2x192xf32> to vector<2x64xf32>
    %150 = vector.extract_strided_slice %148 {offsets = [0, 0], sizes = [2, 64], strides = [1, 1]} : vector<2x128xf32> to vector<2x64xf32>
    %151 = vector.extract_strided_slice %115 {offsets = [0, 128], sizes = [2, 64], strides = [1, 1]} : vector<2x192xf32> to vector<2x64xf32>
    %152 = vector.broadcast %11 : vector<1x64xf32> to vector<2x64xf32>
    %153 = arith.addf %151, %152 : vector<2x64xf32>
    %154 = arith.mulf %150, %153 : vector<2x64xf32>
    %155 = arith.addf %149, %154 : vector<2x64xf32>
    %156 = math.tanh %155 : vector<2x64xf32>
    %157 = vector.extract_strided_slice %148 {offsets = [0, 64], sizes = [2, 64], strides = [1, 1]} : vector<2x128xf32> to vector<2x64xf32>
    %158 = arith.subf %111, %156 : vector<2x64xf32>
    %159 = arith.mulf %157, %158 : vector<2x64xf32>
    %160 = arith.addf %156, %159 : vector<2x64xf32>
    %161 = arith.truncf %136 : vector<2x64xf32> to vector<2x64xbf16>
    %cst_34 = arith.constant dense<0.000000e+00> : vector<2x192xf32>
    %162 = tpu.matmul %161, %6, %cst_34 {dimension_numbers = #tpu.dot_dimension_numbers<[1], [0], [0], [1], [0, 0, 1, 1], [], []>} : vector<2x64xbf16>, vector<64x192xbf16>, vector<2x192xf32> -> vector<2x192xf32>
    %163 = arith.truncf %160 : vector<2x64xf32> to vector<2x64xbf16>
    %cst_35 = arith.constant dense<0.000000e+00> : vector<2x192xf32>
    %164 = tpu.matmul %163, %7, %cst_35 {dimension_numbers = #tpu.dot_dimension_numbers<[1], [0], [0], [1], [0, 0, 1, 1], [], []>} : vector<2x64xbf16>, vector<64x192xbf16>, vector<2x192xf32> -> vector<2x192xf32>
    %165 = vector.extract_strided_slice %5 {offsets = [6, 0], sizes = [2, 192], strides = [1, 1]} : vector<16x192xf32> to vector<2x192xf32>
    %166 = vector.extract_strided_slice %165 {offsets = [0, 0], sizes = [2, 128], strides = [1, 1]} : vector<2x192xf32> to vector<2x128xf32>
    %167 = vector.extract_strided_slice %162 {offsets = [0, 0], sizes = [2, 128], strides = [1, 1]} : vector<2x192xf32> to vector<2x128xf32>
    %168 = arith.addf %166, %167 : vector<2x128xf32>
    %169 = arith.negf %168 : vector<2x128xf32>
    %170 = math.exp %169 : vector<2x128xf32>
    %cst_36 = arith.constant 1.000000e+00 : f32
    %171 = vector.broadcast %cst_36 : f32 to vector<2x128xf32>
    %172 = arith.addf %171, %170 : vector<2x128xf32>
    %173 = arith.divf %171, %172 : vector<2x128xf32>
    %174 = vector.extract_strided_slice %165 {offsets = [0, 128], sizes = [2, 64], strides = [1, 1]} : vector<2x192xf32> to vector<2x64xf32>
    %175 = vector.extract_strided_slice %173 {offsets = [0, 0], sizes = [2, 64], strides = [1, 1]} : vector<2x128xf32> to vector<2x64xf32>
    %176 = vector.extract_strided_slice %162 {offsets = [0, 128], sizes = [2, 64], strides = [1, 1]} : vector<2x192xf32> to vector<2x64xf32>
    %177 = vector.broadcast %10 : vector<1x64xf32> to vector<2x64xf32>
    %178 = arith.addf %176, %177 : vector<2x64xf32>
    %179 = arith.mulf %175, %178 : vector<2x64xf32>
    %180 = arith.addf %174, %179 : vector<2x64xf32>
    %181 = math.tanh %180 : vector<2x64xf32>
    %182 = vector.extract_strided_slice %173 {offsets = [0, 64], sizes = [2, 64], strides = [1, 1]} : vector<2x128xf32> to vector<2x64xf32>
    %183 = arith.subf %136, %181 : vector<2x64xf32>
    %184 = arith.mulf %182, %183 : vector<2x64xf32>
    %185 = arith.addf %181, %184 : vector<2x64xf32>
    %186 = arith.truncf %185 : vector<2x64xf32> to vector<2x64xbf16>
    %cst_37 = arith.constant dense<0.000000e+00> : vector<2x192xf32>
    %187 = tpu.matmul %186, %8, %cst_37 {dimension_numbers = #tpu.dot_dimension_numbers<[1], [0], [0], [1], [0, 0, 1, 1], [], []>} : vector<2x64xbf16>, vector<64x192xbf16>, vector<2x192xf32> -> vector<2x192xf32>
    %188 = vector.broadcast %9 : vector<1x192xf32> to vector<2x192xf32>
    %189 = arith.addf %187, %188 : vector<2x192xf32>
    %190 = vector.extract_strided_slice %189 {offsets = [0, 0], sizes = [2, 128], strides = [1, 1]} : vector<2x192xf32> to vector<2x128xf32>
    %191 = vector.extract_strided_slice %164 {offsets = [0, 0], sizes = [2, 128], strides = [1, 1]} : vector<2x192xf32> to vector<2x128xf32>
    %192 = arith.addf %190, %191 : vector<2x128xf32>
    %193 = arith.negf %192 : vector<2x128xf32>
    %194 = math.exp %193 : vector<2x128xf32>
    %cst_38 = arith.constant 1.000000e+00 : f32
    %195 = vector.broadcast %cst_38 : f32 to vector<2x128xf32>
    %196 = arith.addf %195, %194 : vector<2x128xf32>
    %197 = arith.divf %195, %196 : vector<2x128xf32>
    %198 = vector.extract_strided_slice %189 {offsets = [0, 128], sizes = [2, 64], strides = [1, 1]} : vector<2x192xf32> to vector<2x64xf32>
    %199 = vector.extract_strided_slice %197 {offsets = [0, 0], sizes = [2, 64], strides = [1, 1]} : vector<2x128xf32> to vector<2x64xf32>
    %200 = vector.extract_strided_slice %164 {offsets = [0, 128], sizes = [2, 64], strides = [1, 1]} : vector<2x192xf32> to vector<2x64xf32>
    %201 = vector.broadcast %11 : vector<1x64xf32> to vector<2x64xf32>
    %202 = arith.addf %200, %201 : vector<2x64xf32>
    %203 = arith.mulf %199, %202 : vector<2x64xf32>
    %204 = arith.addf %198, %203 : vector<2x64xf32>
    %205 = math.tanh %204 : vector<2x64xf32>
    %206 = vector.extract_strided_slice %197 {offsets = [0, 64], sizes = [2, 64], strides = [1, 1]} : vector<2x128xf32> to vector<2x64xf32>
    %207 = arith.subf %160, %205 : vector<2x64xf32>
    %208 = arith.mulf %206, %207 : vector<2x64xf32>
    %209 = arith.addf %205, %208 : vector<2x64xf32>
    %210 = arith.truncf %185 : vector<2x64xf32> to vector<2x64xbf16>
    %cst_39 = arith.constant dense<0.000000e+00> : vector<2x192xf32>
    %211 = tpu.matmul %210, %6, %cst_39 {dimension_numbers = #tpu.dot_dimension_numbers<[1], [0], [0], [1], [0, 0, 1, 1], [], []>} : vector<2x64xbf16>, vector<64x192xbf16>, vector<2x192xf32> -> vector<2x192xf32>
    %212 = arith.truncf %209 : vector<2x64xf32> to vector<2x64xbf16>
    %cst_40 = arith.constant dense<0.000000e+00> : vector<2x192xf32>
    %213 = tpu.matmul %212, %7, %cst_40 {dimension_numbers = #tpu.dot_dimension_numbers<[1], [0], [0], [1], [0, 0, 1, 1], [], []>} : vector<2x64xbf16>, vector<64x192xbf16>, vector<2x192xf32> -> vector<2x192xf32>
    %214 = vector.extract_strided_slice %5 {offsets = [8, 0], sizes = [2, 192], strides = [1, 1]} : vector<16x192xf32> to vector<2x192xf32>
    %215 = vector.extract_strided_slice %214 {offsets = [0, 0], sizes = [2, 128], strides = [1, 1]} : vector<2x192xf32> to vector<2x128xf32>
    %216 = vector.extract_strided_slice %211 {offsets = [0, 0], sizes = [2, 128], strides = [1, 1]} : vector<2x192xf32> to vector<2x128xf32>
    %217 = arith.addf %215, %216 : vector<2x128xf32>
    %218 = arith.negf %217 : vector<2x128xf32>
    %219 = math.exp %218 : vector<2x128xf32>
    %cst_41 = arith.constant 1.000000e+00 : f32
    %220 = vector.broadcast %cst_41 : f32 to vector<2x128xf32>
    %221 = arith.addf %220, %219 : vector<2x128xf32>
    %222 = arith.divf %220, %221 : vector<2x128xf32>
    %223 = vector.extract_strided_slice %214 {offsets = [0, 128], sizes = [2, 64], strides = [1, 1]} : vector<2x192xf32> to vector<2x64xf32>
    %224 = vector.extract_strided_slice %222 {offsets = [0, 0], sizes = [2, 64], strides = [1, 1]} : vector<2x128xf32> to vector<2x64xf32>
    %225 = vector.extract_strided_slice %211 {offsets = [0, 128], sizes = [2, 64], strides = [1, 1]} : vector<2x192xf32> to vector<2x64xf32>
    %226 = vector.broadcast %10 : vector<1x64xf32> to vector<2x64xf32>
    %227 = arith.addf %225, %226 : vector<2x64xf32>
    %228 = arith.mulf %224, %227 : vector<2x64xf32>
    %229 = arith.addf %223, %228 : vector<2x64xf32>
    %230 = math.tanh %229 : vector<2x64xf32>
    %231 = vector.extract_strided_slice %222 {offsets = [0, 64], sizes = [2, 64], strides = [1, 1]} : vector<2x128xf32> to vector<2x64xf32>
    %232 = arith.subf %185, %230 : vector<2x64xf32>
    %233 = arith.mulf %231, %232 : vector<2x64xf32>
    %234 = arith.addf %230, %233 : vector<2x64xf32>
    %235 = arith.truncf %234 : vector<2x64xf32> to vector<2x64xbf16>
    %cst_42 = arith.constant dense<0.000000e+00> : vector<2x192xf32>
    %236 = tpu.matmul %235, %8, %cst_42 {dimension_numbers = #tpu.dot_dimension_numbers<[1], [0], [0], [1], [0, 0, 1, 1], [], []>} : vector<2x64xbf16>, vector<64x192xbf16>, vector<2x192xf32> -> vector<2x192xf32>
    %237 = vector.broadcast %9 : vector<1x192xf32> to vector<2x192xf32>
    %238 = arith.addf %236, %237 : vector<2x192xf32>
    %239 = vector.extract_strided_slice %238 {offsets = [0, 0], sizes = [2, 128], strides = [1, 1]} : vector<2x192xf32> to vector<2x128xf32>
    %240 = vector.extract_strided_slice %213 {offsets = [0, 0], sizes = [2, 128], strides = [1, 1]} : vector<2x192xf32> to vector<2x128xf32>
    %241 = arith.addf %239, %240 : vector<2x128xf32>
    %242 = arith.negf %241 : vector<2x128xf32>
    %243 = math.exp %242 : vector<2x128xf32>
    %cst_43 = arith.constant 1.000000e+00 : f32
    %244 = vector.broadcast %cst_43 : f32 to vector<2x128xf32>
    %245 = arith.addf %244, %243 : vector<2x128xf32>
    %246 = arith.divf %244, %245 : vector<2x128xf32>
    %247 = vector.extract_strided_slice %238 {offsets = [0, 128], sizes = [2, 64], strides = [1, 1]} : vector<2x192xf32> to vector<2x64xf32>
    %248 = vector.extract_strided_slice %246 {offsets = [0, 0], sizes = [2, 64], strides = [1, 1]} : vector<2x128xf32> to vector<2x64xf32>
    %249 = vector.extract_strided_slice %213 {offsets = [0, 128], sizes = [2, 64], strides = [1, 1]} : vector<2x192xf32> to vector<2x64xf32>
    %250 = vector.broadcast %11 : vector<1x64xf32> to vector<2x64xf32>
    %251 = arith.addf %249, %250 : vector<2x64xf32>
    %252 = arith.mulf %248, %251 : vector<2x64xf32>
    %253 = arith.addf %247, %252 : vector<2x64xf32>
    %254 = math.tanh %253 : vector<2x64xf32>
    %255 = vector.extract_strided_slice %246 {offsets = [0, 64], sizes = [2, 64], strides = [1, 1]} : vector<2x128xf32> to vector<2x64xf32>
    %256 = arith.subf %209, %254 : vector<2x64xf32>
    %257 = arith.mulf %255, %256 : vector<2x64xf32>
    %258 = arith.addf %254, %257 : vector<2x64xf32>
    %259 = arith.truncf %234 : vector<2x64xf32> to vector<2x64xbf16>
    %cst_44 = arith.constant dense<0.000000e+00> : vector<2x192xf32>
    %260 = tpu.matmul %259, %6, %cst_44 {dimension_numbers = #tpu.dot_dimension_numbers<[1], [0], [0], [1], [0, 0, 1, 1], [], []>} : vector<2x64xbf16>, vector<64x192xbf16>, vector<2x192xf32> -> vector<2x192xf32>
    %261 = arith.truncf %258 : vector<2x64xf32> to vector<2x64xbf16>
    %cst_45 = arith.constant dense<0.000000e+00> : vector<2x192xf32>
    %262 = tpu.matmul %261, %7, %cst_45 {dimension_numbers = #tpu.dot_dimension_numbers<[1], [0], [0], [1], [0, 0, 1, 1], [], []>} : vector<2x64xbf16>, vector<64x192xbf16>, vector<2x192xf32> -> vector<2x192xf32>
    %263 = vector.extract_strided_slice %5 {offsets = [10, 0], sizes = [2, 192], strides = [1, 1]} : vector<16x192xf32> to vector<2x192xf32>
    %264 = vector.extract_strided_slice %263 {offsets = [0, 0], sizes = [2, 128], strides = [1, 1]} : vector<2x192xf32> to vector<2x128xf32>
    %265 = vector.extract_strided_slice %260 {offsets = [0, 0], sizes = [2, 128], strides = [1, 1]} : vector<2x192xf32> to vector<2x128xf32>
    %266 = arith.addf %264, %265 : vector<2x128xf32>
    %267 = arith.negf %266 : vector<2x128xf32>
    %268 = math.exp %267 : vector<2x128xf32>
    %cst_46 = arith.constant 1.000000e+00 : f32
    %269 = vector.broadcast %cst_46 : f32 to vector<2x128xf32>
    %270 = arith.addf %269, %268 : vector<2x128xf32>
    %271 = arith.divf %269, %270 : vector<2x128xf32>
    %272 = vector.extract_strided_slice %263 {offsets = [0, 128], sizes = [2, 64], strides = [1, 1]} : vector<2x192xf32> to vector<2x64xf32>
    %273 = vector.extract_strided_slice %271 {offsets = [0, 0], sizes = [2, 64], strides = [1, 1]} : vector<2x128xf32> to vector<2x64xf32>
    %274 = vector.extract_strided_slice %260 {offsets = [0, 128], sizes = [2, 64], strides = [1, 1]} : vector<2x192xf32> to vector<2x64xf32>
    %275 = vector.broadcast %10 : vector<1x64xf32> to vector<2x64xf32>
    %276 = arith.addf %274, %275 : vector<2x64xf32>
    %277 = arith.mulf %273, %276 : vector<2x64xf32>
    %278 = arith.addf %272, %277 : vector<2x64xf32>
    %279 = math.tanh %278 : vector<2x64xf32>
    %280 = vector.extract_strided_slice %271 {offsets = [0, 64], sizes = [2, 64], strides = [1, 1]} : vector<2x128xf32> to vector<2x64xf32>
    %281 = arith.subf %234, %279 : vector<2x64xf32>
    %282 = arith.mulf %280, %281 : vector<2x64xf32>
    %283 = arith.addf %279, %282 : vector<2x64xf32>
    %284 = arith.truncf %283 : vector<2x64xf32> to vector<2x64xbf16>
    %cst_47 = arith.constant dense<0.000000e+00> : vector<2x192xf32>
    %285 = tpu.matmul %284, %8, %cst_47 {dimension_numbers = #tpu.dot_dimension_numbers<[1], [0], [0], [1], [0, 0, 1, 1], [], []>} : vector<2x64xbf16>, vector<64x192xbf16>, vector<2x192xf32> -> vector<2x192xf32>
    %286 = vector.broadcast %9 : vector<1x192xf32> to vector<2x192xf32>
    %287 = arith.addf %285, %286 : vector<2x192xf32>
    %288 = vector.extract_strided_slice %287 {offsets = [0, 0], sizes = [2, 128], strides = [1, 1]} : vector<2x192xf32> to vector<2x128xf32>
    %289 = vector.extract_strided_slice %262 {offsets = [0, 0], sizes = [2, 128], strides = [1, 1]} : vector<2x192xf32> to vector<2x128xf32>
    %290 = arith.addf %288, %289 : vector<2x128xf32>
    %291 = arith.negf %290 : vector<2x128xf32>
    %292 = math.exp %291 : vector<2x128xf32>
    %cst_48 = arith.constant 1.000000e+00 : f32
    %293 = vector.broadcast %cst_48 : f32 to vector<2x128xf32>
    %294 = arith.addf %293, %292 : vector<2x128xf32>
    %295 = arith.divf %293, %294 : vector<2x128xf32>
    %296 = vector.extract_strided_slice %287 {offsets = [0, 128], sizes = [2, 64], strides = [1, 1]} : vector<2x192xf32> to vector<2x64xf32>
    %297 = vector.extract_strided_slice %295 {offsets = [0, 0], sizes = [2, 64], strides = [1, 1]} : vector<2x128xf32> to vector<2x64xf32>
    %298 = vector.extract_strided_slice %262 {offsets = [0, 128], sizes = [2, 64], strides = [1, 1]} : vector<2x192xf32> to vector<2x64xf32>
    %299 = vector.broadcast %11 : vector<1x64xf32> to vector<2x64xf32>
    %300 = arith.addf %298, %299 : vector<2x64xf32>
    %301 = arith.mulf %297, %300 : vector<2x64xf32>
    %302 = arith.addf %296, %301 : vector<2x64xf32>
    %303 = math.tanh %302 : vector<2x64xf32>
    %304 = vector.extract_strided_slice %295 {offsets = [0, 64], sizes = [2, 64], strides = [1, 1]} : vector<2x128xf32> to vector<2x64xf32>
    %305 = arith.subf %258, %303 : vector<2x64xf32>
    %306 = arith.mulf %304, %305 : vector<2x64xf32>
    %307 = arith.addf %303, %306 : vector<2x64xf32>
    %308 = arith.truncf %283 : vector<2x64xf32> to vector<2x64xbf16>
    %cst_49 = arith.constant dense<0.000000e+00> : vector<2x192xf32>
    %309 = tpu.matmul %308, %6, %cst_49 {dimension_numbers = #tpu.dot_dimension_numbers<[1], [0], [0], [1], [0, 0, 1, 1], [], []>} : vector<2x64xbf16>, vector<64x192xbf16>, vector<2x192xf32> -> vector<2x192xf32>
    %310 = arith.truncf %307 : vector<2x64xf32> to vector<2x64xbf16>
    %cst_50 = arith.constant dense<0.000000e+00> : vector<2x192xf32>
    %311 = tpu.matmul %310, %7, %cst_50 {dimension_numbers = #tpu.dot_dimension_numbers<[1], [0], [0], [1], [0, 0, 1, 1], [], []>} : vector<2x64xbf16>, vector<64x192xbf16>, vector<2x192xf32> -> vector<2x192xf32>
    %312 = vector.extract_strided_slice %5 {offsets = [12, 0], sizes = [2, 192], strides = [1, 1]} : vector<16x192xf32> to vector<2x192xf32>
    %313 = vector.extract_strided_slice %312 {offsets = [0, 0], sizes = [2, 128], strides = [1, 1]} : vector<2x192xf32> to vector<2x128xf32>
    %314 = vector.extract_strided_slice %309 {offsets = [0, 0], sizes = [2, 128], strides = [1, 1]} : vector<2x192xf32> to vector<2x128xf32>
    %315 = arith.addf %313, %314 : vector<2x128xf32>
    %316 = arith.negf %315 : vector<2x128xf32>
    %317 = math.exp %316 : vector<2x128xf32>
    %cst_51 = arith.constant 1.000000e+00 : f32
    %318 = vector.broadcast %cst_51 : f32 to vector<2x128xf32>
    %319 = arith.addf %318, %317 : vector<2x128xf32>
    %320 = arith.divf %318, %319 : vector<2x128xf32>
    %321 = vector.extract_strided_slice %312 {offsets = [0, 128], sizes = [2, 64], strides = [1, 1]} : vector<2x192xf32> to vector<2x64xf32>
    %322 = vector.extract_strided_slice %320 {offsets = [0, 0], sizes = [2, 64], strides = [1, 1]} : vector<2x128xf32> to vector<2x64xf32>
    %323 = vector.extract_strided_slice %309 {offsets = [0, 128], sizes = [2, 64], strides = [1, 1]} : vector<2x192xf32> to vector<2x64xf32>
    %324 = vector.broadcast %10 : vector<1x64xf32> to vector<2x64xf32>
    %325 = arith.addf %323, %324 : vector<2x64xf32>
    %326 = arith.mulf %322, %325 : vector<2x64xf32>
    %327 = arith.addf %321, %326 : vector<2x64xf32>
    %328 = math.tanh %327 : vector<2x64xf32>
    %329 = vector.extract_strided_slice %320 {offsets = [0, 64], sizes = [2, 64], strides = [1, 1]} : vector<2x128xf32> to vector<2x64xf32>
    %330 = arith.subf %283, %328 : vector<2x64xf32>
    %331 = arith.mulf %329, %330 : vector<2x64xf32>
    %332 = arith.addf %328, %331 : vector<2x64xf32>
    %333 = arith.truncf %332 : vector<2x64xf32> to vector<2x64xbf16>
    %cst_52 = arith.constant dense<0.000000e+00> : vector<2x192xf32>
    %334 = tpu.matmul %333, %8, %cst_52 {dimension_numbers = #tpu.dot_dimension_numbers<[1], [0], [0], [1], [0, 0, 1, 1], [], []>} : vector<2x64xbf16>, vector<64x192xbf16>, vector<2x192xf32> -> vector<2x192xf32>
    %335 = vector.broadcast %9 : vector<1x192xf32> to vector<2x192xf32>
    %336 = arith.addf %334, %335 : vector<2x192xf32>
    %337 = vector.extract_strided_slice %336 {offsets = [0, 0], sizes = [2, 128], strides = [1, 1]} : vector<2x192xf32> to vector<2x128xf32>
    %338 = vector.extract_strided_slice %311 {offsets = [0, 0], sizes = [2, 128], strides = [1, 1]} : vector<2x192xf32> to vector<2x128xf32>
    %339 = arith.addf %337, %338 : vector<2x128xf32>
    %340 = arith.negf %339 : vector<2x128xf32>
    %341 = math.exp %340 : vector<2x128xf32>
    %cst_53 = arith.constant 1.000000e+00 : f32
    %342 = vector.broadcast %cst_53 : f32 to vector<2x128xf32>
    %343 = arith.addf %342, %341 : vector<2x128xf32>
    %344 = arith.divf %342, %343 : vector<2x128xf32>
    %345 = vector.extract_strided_slice %336 {offsets = [0, 128], sizes = [2, 64], strides = [1, 1]} : vector<2x192xf32> to vector<2x64xf32>
    %346 = vector.extract_strided_slice %344 {offsets = [0, 0], sizes = [2, 64], strides = [1, 1]} : vector<2x128xf32> to vector<2x64xf32>
    %347 = vector.extract_strided_slice %311 {offsets = [0, 128], sizes = [2, 64], strides = [1, 1]} : vector<2x192xf32> to vector<2x64xf32>
    %348 = vector.broadcast %11 : vector<1x64xf32> to vector<2x64xf32>
    %349 = arith.addf %347, %348 : vector<2x64xf32>
    %350 = arith.mulf %346, %349 : vector<2x64xf32>
    %351 = arith.addf %345, %350 : vector<2x64xf32>
    %352 = math.tanh %351 : vector<2x64xf32>
    %353 = vector.extract_strided_slice %344 {offsets = [0, 64], sizes = [2, 64], strides = [1, 1]} : vector<2x128xf32> to vector<2x64xf32>
    %354 = arith.subf %307, %352 : vector<2x64xf32>
    %355 = arith.mulf %353, %354 : vector<2x64xf32>
    %356 = arith.addf %352, %355 : vector<2x64xf32>
    %357 = arith.truncf %332 : vector<2x64xf32> to vector<2x64xbf16>
    %cst_54 = arith.constant dense<0.000000e+00> : vector<2x192xf32>
    %358 = tpu.matmul %357, %6, %cst_54 {dimension_numbers = #tpu.dot_dimension_numbers<[1], [0], [0], [1], [0, 0, 1, 1], [], []>} : vector<2x64xbf16>, vector<64x192xbf16>, vector<2x192xf32> -> vector<2x192xf32>
    %359 = arith.truncf %356 : vector<2x64xf32> to vector<2x64xbf16>
    %cst_55 = arith.constant dense<0.000000e+00> : vector<2x192xf32>
    %360 = tpu.matmul %359, %7, %cst_55 {dimension_numbers = #tpu.dot_dimension_numbers<[1], [0], [0], [1], [0, 0, 1, 1], [], []>} : vector<2x64xbf16>, vector<64x192xbf16>, vector<2x192xf32> -> vector<2x192xf32>
    %361 = vector.extract_strided_slice %5 {offsets = [14, 0], sizes = [2, 192], strides = [1, 1]} : vector<16x192xf32> to vector<2x192xf32>
    %362 = vector.extract_strided_slice %361 {offsets = [0, 0], sizes = [2, 128], strides = [1, 1]} : vector<2x192xf32> to vector<2x128xf32>
    %363 = vector.extract_strided_slice %358 {offsets = [0, 0], sizes = [2, 128], strides = [1, 1]} : vector<2x192xf32> to vector<2x128xf32>
    %364 = arith.addf %362, %363 : vector<2x128xf32>
    %365 = arith.negf %364 : vector<2x128xf32>
    %366 = math.exp %365 : vector<2x128xf32>
    %cst_56 = arith.constant 1.000000e+00 : f32
    %367 = vector.broadcast %cst_56 : f32 to vector<2x128xf32>
    %368 = arith.addf %367, %366 : vector<2x128xf32>
    %369 = arith.divf %367, %368 : vector<2x128xf32>
    %370 = vector.extract_strided_slice %361 {offsets = [0, 128], sizes = [2, 64], strides = [1, 1]} : vector<2x192xf32> to vector<2x64xf32>
    %371 = vector.extract_strided_slice %369 {offsets = [0, 0], sizes = [2, 64], strides = [1, 1]} : vector<2x128xf32> to vector<2x64xf32>
    %372 = vector.extract_strided_slice %358 {offsets = [0, 128], sizes = [2, 64], strides = [1, 1]} : vector<2x192xf32> to vector<2x64xf32>
    %373 = vector.broadcast %10 : vector<1x64xf32> to vector<2x64xf32>
    %374 = arith.addf %372, %373 : vector<2x64xf32>
    %375 = arith.mulf %371, %374 : vector<2x64xf32>
    %376 = arith.addf %370, %375 : vector<2x64xf32>
    %377 = math.tanh %376 : vector<2x64xf32>
    %378 = vector.extract_strided_slice %369 {offsets = [0, 64], sizes = [2, 64], strides = [1, 1]} : vector<2x128xf32> to vector<2x64xf32>
    %379 = arith.subf %332, %377 : vector<2x64xf32>
    %380 = arith.mulf %378, %379 : vector<2x64xf32>
    %381 = arith.addf %377, %380 : vector<2x64xf32>
    %382 = arith.truncf %381 : vector<2x64xf32> to vector<2x64xbf16>
    %cst_57 = arith.constant dense<0.000000e+00> : vector<2x192xf32>
    %383 = tpu.matmul %382, %8, %cst_57 {dimension_numbers = #tpu.dot_dimension_numbers<[1], [0], [0], [1], [0, 0, 1, 1], [], []>} : vector<2x64xbf16>, vector<64x192xbf16>, vector<2x192xf32> -> vector<2x192xf32>
    %384 = vector.broadcast %9 : vector<1x192xf32> to vector<2x192xf32>
    %385 = arith.addf %383, %384 : vector<2x192xf32>
    %386 = vector.extract_strided_slice %385 {offsets = [0, 0], sizes = [2, 128], strides = [1, 1]} : vector<2x192xf32> to vector<2x128xf32>
    %387 = vector.extract_strided_slice %360 {offsets = [0, 0], sizes = [2, 128], strides = [1, 1]} : vector<2x192xf32> to vector<2x128xf32>
    %388 = arith.addf %386, %387 : vector<2x128xf32>
    %389 = arith.negf %388 : vector<2x128xf32>
    %390 = math.exp %389 : vector<2x128xf32>
    %cst_58 = arith.constant 1.000000e+00 : f32
    %391 = vector.broadcast %cst_58 : f32 to vector<2x128xf32>
    %392 = arith.addf %391, %390 : vector<2x128xf32>
    %393 = arith.divf %391, %392 : vector<2x128xf32>
    %394 = vector.extract_strided_slice %385 {offsets = [0, 128], sizes = [2, 64], strides = [1, 1]} : vector<2x192xf32> to vector<2x64xf32>
    %395 = vector.extract_strided_slice %393 {offsets = [0, 0], sizes = [2, 64], strides = [1, 1]} : vector<2x128xf32> to vector<2x64xf32>
    %396 = vector.extract_strided_slice %360 {offsets = [0, 128], sizes = [2, 64], strides = [1, 1]} : vector<2x192xf32> to vector<2x64xf32>
    %397 = vector.broadcast %11 : vector<1x64xf32> to vector<2x64xf32>
    %398 = arith.addf %396, %397 : vector<2x64xf32>
    %399 = arith.mulf %395, %398 : vector<2x64xf32>
    %400 = arith.addf %394, %399 : vector<2x64xf32>
    %401 = math.tanh %400 : vector<2x64xf32>
    %402 = vector.extract_strided_slice %393 {offsets = [0, 64], sizes = [2, 64], strides = [1, 1]} : vector<2x128xf32> to vector<2x64xf32>
    %403 = arith.subf %356, %401 : vector<2x64xf32>
    %404 = arith.mulf %402, %403 : vector<2x64xf32>
    %405 = arith.addf %401, %404 : vector<2x64xf32>
    %406 = vector.extract_strided_slice %381 {offsets = [0, 0], sizes = [2, 32], strides = [1, 1]} : vector<2x64xf32> to vector<2x32xf32>
    %407 = vector.extract_strided_slice %405 {offsets = [0, 0], sizes = [2, 32], strides = [1, 1]} : vector<2x64xf32> to vector<2x32xf32>
    %408 = tpu.concatenate %406, %407 in 0 : vector<2x32xf32>, vector<2x32xf32> -> vector<4x32xf32>
    %c0_59 = arith.constant 0 : index
    %c0_60 = arith.constant 0 : index
    %409 = vector.load %arg16[%c0_59, %c0_60] : memref<4x32xf32, #tpu.memory_space<vmem>>, vector<4x32xf32>
    tpu.vector_store %arg16[%c0_59, %c0_60], %408 {strides = array<i32>} : memref<4x32xf32, #tpu.memory_space<vmem>>, vector<4x32xf32>,
    %410 = vector.extract_strided_slice %62 {offsets = [0, 0], sizes = [1, 64], strides = [1, 1]} : vector<2x64xf32> to vector<1x64xf32>
    %411 = vector.extract_strided_slice %111 {offsets = [0, 0], sizes = [1, 64], strides = [1, 1]} : vector<2x64xf32> to vector<1x64xf32>
    %412 = vector.extract_strided_slice %160 {offsets = [0, 0], sizes = [1, 64], strides = [1, 1]} : vector<2x64xf32> to vector<1x64xf32>
    %413 = vector.extract_strided_slice %209 {offsets = [0, 0], sizes = [1, 64], strides = [1, 1]} : vector<2x64xf32> to vector<1x64xf32>
    %414 = vector.extract_strided_slice %258 {offsets = [0, 0], sizes = [1, 64], strides = [1, 1]} : vector<2x64xf32> to vector<1x64xf32>
    %415 = vector.extract_strided_slice %307 {offsets = [0, 0], sizes = [1, 64], strides = [1, 1]} : vector<2x64xf32> to vector<1x64xf32>
    %416 = vector.extract_strided_slice %356 {offsets = [0, 0], sizes = [1, 64], strides = [1, 1]} : vector<2x64xf32> to vector<1x64xf32>
    %417 = vector.extract_strided_slice %405 {offsets = [0, 0], sizes = [1, 64], strides = [1, 1]} : vector<2x64xf32> to vector<1x64xf32>
    %418 = vector.extract_strided_slice %62 {offsets = [1, 0], sizes = [1, 64], strides = [1, 1]} : vector<2x64xf32> to vector<1x64xf32>
    %419 = vector.extract_strided_slice %111 {offsets = [1, 0], sizes = [1, 64], strides = [1, 1]} : vector<2x64xf32> to vector<1x64xf32>
    %420 = vector.extract_strided_slice %160 {offsets = [1, 0], sizes = [1, 64], strides = [1, 1]} : vector<2x64xf32> to vector<1x64xf32>
    %421 = vector.extract_strided_slice %209 {offsets = [1, 0], sizes = [1, 64], strides = [1, 1]} : vector<2x64xf32> to vector<1x64xf32>
    %422 = vector.extract_strided_slice %258 {offsets = [1, 0], sizes = [1, 64], strides = [1, 1]} : vector<2x64xf32> to vector<1x64xf32>
    %423 = vector.extract_strided_slice %307 {offsets = [1, 0], sizes = [1, 64], strides = [1, 1]} : vector<2x64xf32> to vector<1x64xf32>
    %424 = vector.extract_strided_slice %356 {offsets = [1, 0], sizes = [1, 64], strides = [1, 1]} : vector<2x64xf32> to vector<1x64xf32>
    %425 = vector.extract_strided_slice %405 {offsets = [1, 0], sizes = [1, 64], strides = [1, 1]} : vector<2x64xf32> to vector<1x64xf32>
    %426 = tpu.concatenate %410, %411, %412, %413, %414, %415, %416, %417, %418, %419, %420, %421, %422, %423, %424, %425 in 0 : vector<1x64xf32>, vector<1x64xf32>, vector<1x64xf32>, vector<1x64xf32>, vector<1x64xf32>, vector<1x64xf32>, vector<1x64xf32>, vector<1x64xf32>, vector<1x64xf32>, vector<1x64xf32>, vector<1x64xf32>, vector<1x64xf32>, vector<1x64xf32>, vector<1x64xf32>, vector<1x64xf32>, vector<1x64xf32> -> vector<16x64xf32>
    %c0_61 = arith.constant 0 : index
    %c0_62 = arith.constant 0 : index
    %427 = vector.load %arg9[%c0_61, %c0_62] : memref<64x192xf32, #tpu.memory_space<vmem>>, vector<64x192xf32>
    %cst_63 = arith.constant dense<0.000000e+00> : vector<16x192xf32>
    %428 = tpu.matmul %426, %427, %cst_63 {dimension_numbers = #tpu.dot_dimension_numbers<[1], [0], [0], [1], [0, 0, 1, 1], [], []>} : vector<16x64xf32>, vector<64x192xf32>, vector<16x192xf32> -> vector<16x192xf32>
    %c0_64 = arith.constant 0 : index
    %c0_65 = arith.constant 0 : index
    %429 = vector.load %arg10[%c0_64, %c0_65] : memref<1x192xf32, #tpu.memory_space<vmem>>, vector<1x192xf32>
    %430 = vector.broadcast %429 : vector<1x192xf32> to vector<16x192xf32>
    %431 = arith.addf %428, %430 : vector<16x192xf32>
    %432 = vector.extract_strided_slice %431 {offsets = [0, 0], sizes = [8, 192], strides = [1, 1]} : vector<16x192xf32> to vector<8x192xf32>
    %433 = vector.extract_strided_slice %432 {offsets = [0, 0], sizes = [8, 32], strides = [1, 1]} : vector<8x192xf32> to vector<8x32xf32>
    %434 = vector.extract_strided_slice %432 {offsets = [0, 32], sizes = [8, 32], strides = [1, 1]} : vector<8x192xf32> to vector<8x32xf32>
    %435 = vector.extract_strided_slice %432 {offsets = [0, 64], sizes = [8, 32], strides = [1, 1]} : vector<8x192xf32> to vector<8x32xf32>
    %cst_66 = arith.constant dense<0.000000e+00> : vector<8x8xf32>
    %436 = tpu.matmul %433, %434, %cst_66 {dimension_numbers = #tpu.dot_dimension_numbers<[1], [1], [0], [0], [0, 0, 1, 0], [], []>} : vector<8x32xf32>, vector<8x32xf32>, vector<8x8xf32> -> vector<8x8xf32>
    %cst_67 = arith.constant 0.176776692 : f32
    %437 = vector.broadcast %cst_67 : f32 to vector<8x8xf32>
    %438 = arith.mulf %436, %437 : vector<8x8xf32>
    %cst_68 = arith.constant dense<0xFF800000> : vector<8xf32>
    %439 = vector.multi_reduction <maximumf>, %438, %cst_68 [1] : vector<8x8xf32> to vector<8xf32>
    %440 = vector.shape_cast %439 : vector<8xf32> to vector<8x1xf32>
    %441 = vector.broadcast %440 : vector<8x1xf32> to vector<8x8xf32>
    %442 = arith.subf %438, %441 : vector<8x8xf32>
    %443 = math.exp %442 : vector<8x8xf32>
    %cst_69 = arith.constant dense<0.000000e+00> : vector<8xf32>
    %444 = vector.multi_reduction <add>, %443, %cst_69 [1] : vector<8x8xf32> to vector<8xf32>
    %445 = vector.shape_cast %444 : vector<8xf32> to vector<8x1xf32>
    %446 = tpu.reciprocal %445 {approx = true} : vector<8x1xf32> -> vector<8x1xf32>
    %447 = vector.broadcast %446 : vector<8x1xf32> to vector<8x8xf32>
    %448 = arith.mulf %443, %447 : vector<8x8xf32>
    %cst_70 = arith.constant dense<0.000000e+00> : vector<8x32xf32>
    %449 = tpu.matmul %448, %435, %cst_70 {dimension_numbers = #tpu.dot_dimension_numbers<[1], [0], [0], [1], [0, 0, 1, 1], [], []>} : vector<8x8xf32>, vector<8x32xf32>, vector<8x32xf32> -> vector<8x32xf32>
    %450 = vector.extract_strided_slice %432 {offsets = [0, 96], sizes = [8, 32], strides = [1, 1]} : vector<8x192xf32> to vector<8x32xf32>
    %451 = vector.extract_strided_slice %432 {offsets = [0, 128], sizes = [8, 32], strides = [1, 1]} : vector<8x192xf32> to vector<8x32xf32>
    %452 = vector.extract_strided_slice %432 {offsets = [0, 160], sizes = [8, 32], strides = [1, 1]} : vector<8x192xf32> to vector<8x32xf32>
    %cst_71 = arith.constant dense<0.000000e+00> : vector<8x8xf32>
    %453 = tpu.matmul %450, %451, %cst_71 {dimension_numbers = #tpu.dot_dimension_numbers<[1], [1], [0], [0], [0, 0, 1, 0], [], []>} : vector<8x32xf32>, vector<8x32xf32>, vector<8x8xf32> -> vector<8x8xf32>
    %cst_72 = arith.constant 0.176776692 : f32
    %454 = vector.broadcast %cst_72 : f32 to vector<8x8xf32>
    %455 = arith.mulf %453, %454 : vector<8x8xf32>
    %cst_73 = arith.constant dense<0xFF800000> : vector<8xf32>
    %456 = vector.multi_reduction <maximumf>, %455, %cst_73 [1] : vector<8x8xf32> to vector<8xf32>
    %457 = vector.shape_cast %456 : vector<8xf32> to vector<8x1xf32>
    %458 = vector.broadcast %457 : vector<8x1xf32> to vector<8x8xf32>
    %459 = arith.subf %455, %458 : vector<8x8xf32>
    %460 = math.exp %459 : vector<8x8xf32>
    %cst_74 = arith.constant dense<0.000000e+00> : vector<8xf32>
    %461 = vector.multi_reduction <add>, %460, %cst_74 [1] : vector<8x8xf32> to vector<8xf32>
    %462 = vector.shape_cast %461 : vector<8xf32> to vector<8x1xf32>
    %463 = tpu.reciprocal %462 {approx = true} : vector<8x1xf32> -> vector<8x1xf32>
    %464 = vector.broadcast %463 : vector<8x1xf32> to vector<8x8xf32>
    %465 = arith.mulf %460, %464 : vector<8x8xf32>
    %cst_75 = arith.constant dense<0.000000e+00> : vector<8x32xf32>
    %466 = tpu.matmul %465, %452, %cst_75 {dimension_numbers = #tpu.dot_dimension_numbers<[1], [0], [0], [1], [0, 0, 1, 1], [], []>} : vector<8x8xf32>, vector<8x32xf32>, vector<8x32xf32> -> vector<8x32xf32>
    %467 = tpu.concatenate %449, %466 in 1 : vector<8x32xf32>, vector<8x32xf32> -> vector<8x64xf32>
    %468 = vector.extract_strided_slice %431 {offsets = [8, 0], sizes = [8, 192], strides = [1, 1]} : vector<16x192xf32> to vector<8x192xf32>
    %469 = vector.extract_strided_slice %468 {offsets = [0, 0], sizes = [8, 32], strides = [1, 1]} : vector<8x192xf32> to vector<8x32xf32>
    %470 = vector.extract_strided_slice %468 {offsets = [0, 32], sizes = [8, 32], strides = [1, 1]} : vector<8x192xf32> to vector<8x32xf32>
    %471 = vector.extract_strided_slice %468 {offsets = [0, 64], sizes = [8, 32], strides = [1, 1]} : vector<8x192xf32> to vector<8x32xf32>
    %cst_76 = arith.constant dense<0.000000e+00> : vector<8x8xf32>
    %472 = tpu.matmul %469, %470, %cst_76 {dimension_numbers = #tpu.dot_dimension_numbers<[1], [1], [0], [0], [0, 0, 1, 0], [], []>} : vector<8x32xf32>, vector<8x32xf32>, vector<8x8xf32> -> vector<8x8xf32>
    %cst_77 = arith.constant 0.176776692 : f32
    %473 = vector.broadcast %cst_77 : f32 to vector<8x8xf32>
    %474 = arith.mulf %472, %473 : vector<8x8xf32>
    %cst_78 = arith.constant dense<0xFF800000> : vector<8xf32>
    %475 = vector.multi_reduction <maximumf>, %474, %cst_78 [1] : vector<8x8xf32> to vector<8xf32>
    %476 = vector.shape_cast %475 : vector<8xf32> to vector<8x1xf32>
    %477 = vector.broadcast %476 : vector<8x1xf32> to vector<8x8xf32>
    %478 = arith.subf %474, %477 : vector<8x8xf32>
    %479 = math.exp %478 : vector<8x8xf32>
    %cst_79 = arith.constant dense<0.000000e+00> : vector<8xf32>
    %480 = vector.multi_reduction <add>, %479, %cst_79 [1] : vector<8x8xf32> to vector<8xf32>
    %481 = vector.shape_cast %480 : vector<8xf32> to vector<8x1xf32>
    %482 = tpu.reciprocal %481 {approx = true} : vector<8x1xf32> -> vector<8x1xf32>
    %483 = vector.broadcast %482 : vector<8x1xf32> to vector<8x8xf32>
    %484 = arith.mulf %479, %483 : vector<8x8xf32>
    %cst_80 = arith.constant dense<0.000000e+00> : vector<8x32xf32>
    %485 = tpu.matmul %484, %471, %cst_80 {dimension_numbers = #tpu.dot_dimension_numbers<[1], [0], [0], [1], [0, 0, 1, 1], [], []>} : vector<8x8xf32>, vector<8x32xf32>, vector<8x32xf32> -> vector<8x32xf32>
    %486 = vector.extract_strided_slice %468 {offsets = [0, 96], sizes = [8, 32], strides = [1, 1]} : vector<8x192xf32> to vector<8x32xf32>
    %487 = vector.extract_strided_slice %468 {offsets = [0, 128], sizes = [8, 32], strides = [1, 1]} : vector<8x192xf32> to vector<8x32xf32>
    %488 = vector.extract_strided_slice %468 {offsets = [0, 160], sizes = [8, 32], strides = [1, 1]} : vector<8x192xf32> to vector<8x32xf32>
    %cst_81 = arith.constant dense<0.000000e+00> : vector<8x8xf32>
    %489 = tpu.matmul %486, %487, %cst_81 {dimension_numbers = #tpu.dot_dimension_numbers<[1], [1], [0], [0], [0, 0, 1, 0], [], []>} : vector<8x32xf32>, vector<8x32xf32>, vector<8x8xf32> -> vector<8x8xf32>
    %cst_82 = arith.constant 0.176776692 : f32
    %490 = vector.broadcast %cst_82 : f32 to vector<8x8xf32>
    %491 = arith.mulf %489, %490 : vector<8x8xf32>
    %cst_83 = arith.constant dense<0xFF800000> : vector<8xf32>
    %492 = vector.multi_reduction <maximumf>, %491, %cst_83 [1] : vector<8x8xf32> to vector<8xf32>
    %493 = vector.shape_cast %492 : vector<8xf32> to vector<8x1xf32>
    %494 = vector.broadcast %493 : vector<8x1xf32> to vector<8x8xf32>
    %495 = arith.subf %491, %494 : vector<8x8xf32>
    %496 = math.exp %495 : vector<8x8xf32>
    %cst_84 = arith.constant dense<0.000000e+00> : vector<8xf32>
    %497 = vector.multi_reduction <add>, %496, %cst_84 [1] : vector<8x8xf32> to vector<8xf32>
    %498 = vector.shape_cast %497 : vector<8xf32> to vector<8x1xf32>
    %499 = tpu.reciprocal %498 {approx = true} : vector<8x1xf32> -> vector<8x1xf32>
    %500 = vector.broadcast %499 : vector<8x1xf32> to vector<8x8xf32>
    %501 = arith.mulf %496, %500 : vector<8x8xf32>
    %cst_85 = arith.constant dense<0.000000e+00> : vector<8x32xf32>
    %502 = tpu.matmul %501, %488, %cst_85 {dimension_numbers = #tpu.dot_dimension_numbers<[1], [0], [0], [1], [0, 0, 1, 1], [], []>} : vector<8x8xf32>, vector<8x32xf32>, vector<8x32xf32> -> vector<8x32xf32>
    %503 = tpu.concatenate %485, %502 in 1 : vector<8x32xf32>, vector<8x32xf32> -> vector<8x64xf32>
    %504 = tpu.concatenate %467, %503 in 0 : vector<8x64xf32>, vector<8x64xf32> -> vector<16x64xf32>
    %c0_86 = arith.constant 0 : index
    %c0_87 = arith.constant 0 : index
    %505 = vector.load %arg11[%c0_86, %c0_87] : memref<64x96xf32, #tpu.memory_space<vmem>>, vector<64x96xf32>
    %cst_88 = arith.constant dense<0.000000e+00> : vector<16x96xf32>
    %506 = tpu.matmul %504, %505, %cst_88 {dimension_numbers = #tpu.dot_dimension_numbers<[1], [0], [0], [1], [0, 0, 1, 1], [], []>} : vector<16x64xf32>, vector<64x96xf32>, vector<16x96xf32> -> vector<16x96xf32>
    %c0_89 = arith.constant 0 : index
    %c0_90 = arith.constant 0 : index
    %507 = vector.load %arg12[%c0_89, %c0_90] : memref<1x96xf32, #tpu.memory_space<vmem>>, vector<1x96xf32>
    %508 = vector.broadcast %507 : vector<1x96xf32> to vector<16x96xf32>
    %509 = arith.addf %506, %508 : vector<16x96xf32>
    %cst_91 = arith.constant 0.000000e+00 : f32
    %510 = vector.broadcast %cst_91 : f32 to vector<16x96xf32>
    %511 = arith.cmpf ogt, %509, %510 : vector<16x96xf32>
    %cst_92 = arith.constant 0.00999999977 : f32
    %512 = vector.broadcast %cst_92 : f32 to vector<16x96xf32>
    %513 = arith.mulf %512, %509 : vector<16x96xf32>
    %514 = arith.select %511, %509, %513 : vector<16x96xi1>, vector<16x96xf32>
    %c0_93 = arith.constant 0 : index
    %c0_94 = arith.constant 0 : index
    %515 = vector.load %arg13[%c0_93, %c0_94] : memref<96x24xf32, #tpu.memory_space<vmem>>, vector<96x24xf32>
    %cst_95 = arith.constant dense<0.000000e+00> : vector<16x24xf32>
    %516 = tpu.matmul %514, %515, %cst_95 {dimension_numbers = #tpu.dot_dimension_numbers<[1], [0], [0], [1], [0, 0, 1, 1], [], []>} : vector<16x96xf32>, vector<96x24xf32>, vector<16x24xf32> -> vector<16x24xf32>
    %c0_96 = arith.constant 0 : index
    %c0_97 = arith.constant 0 : index
    %517 = vector.load %arg14[%c0_96, %c0_97] : memref<1x24xf32, #tpu.memory_space<vmem>>, vector<1x24xf32>
    %518 = vector.broadcast %517 : vector<1x24xf32> to vector<16x24xf32>
    %519 = arith.addf %516, %518 : vector<16x24xf32>
    %520 = vector.extract_strided_slice %519 {offsets = [0, 8], sizes = [16, 8], strides = [1, 1]} : vector<16x24xf32> to vector<16x8xf32>
    %521 = arith.negf %520 : vector<16x8xf32>
    %522 = math.exp %521 : vector<16x8xf32>
    %cst_98 = arith.constant 1.000000e+00 : f32
    %523 = vector.broadcast %cst_98 : f32 to vector<16x8xf32>
    %524 = arith.addf %523, %522 : vector<16x8xf32>
    %525 = arith.divf %523, %524 : vector<16x8xf32>
    %526 = vector.extract_strided_slice %519 {offsets = [0, 16], sizes = [16, 8], strides = [1, 1]} : vector<16x24xf32> to vector<16x8xf32>
    %527 = arith.mulf %525, %526 : vector<16x8xf32>
    %528 = vector.extract_strided_slice %519 {offsets = [0, 0], sizes = [16, 8], strides = [1, 1]} : vector<16x24xf32> to vector<16x8xf32>
    %529 = arith.addf %527, %528 : vector<16x8xf32>
    %c0_99 = arith.constant 0 : index
    %c0_100 = arith.constant 0 : index
    %530 = vector.load %arg15[%c0_99, %c0_100] : memref<16x8xf32, #tpu.memory_space<vmem>>, vector<16x8xf32>
    tpu.vector_store %arg15[%c0_99, %c0_100], %529 {strides = array<i32>} : memref<16x8xf32, #tpu.memory_space<vmem>>, vector<16x8xf32>,
    return
  }
}

</mosaic_0001>

<llo_original>
// kernel: parallel_mode_forward.1
$region0: #{parallel_mode_forward.1}
  #allocation0 [shape = 'u32[]', space=smem, size = 0x4, offset = 0x4, fixed_abs, tag = 'smem constant byte address 0x4 - core index']
  #allocation1 [shape = 'u32[144,128]{1,0:T(1,128)}', space=vmem, size = 0x12000, scoped, tag = 'internal scratch']
  %s0 = inlined_call_operand.vmem [shape: f32[16,212], index: 0, kind: input, shape index: {}]
  %s1 = inlined_call_operand.vmem [shape: f32[212,192], index: 1, kind: input, shape index: {}]
  %s2 = inlined_call_operand.vmem [shape: f32[1,192], index: 2, kind: input, shape index: {}]
  %s3 = inlined_call_operand.vmem [shape: bf16[64,192], index: 3, kind: input, shape index: {}]
  %s4 = inlined_call_operand.vmem [shape: f32[1,64], index: 4, kind: input, shape index: {}]
  %s5 = inlined_call_operand.vmem [shape: bf16[64,192], index: 5, kind: input, shape index: {}]
  %s6 = inlined_call_operand.vmem [shape: f32[1,192], index: 6, kind: input, shape index: {}]
  %s7 = inlined_call_operand.vmem [shape: bf16[64,192], index: 7, kind: input, shape index: {}]
  %s8 = inlined_call_operand.vmem [shape: f32[1,64], index: 8, kind: input, shape index: {}]
  %s9 = inlined_call_operand.vmem [shape: f32[64,192], index: 9, kind: input, shape index: {}]
  %s10 = inlined_call_operand.vmem [shape: f32[1,192], index: 10, kind: input, shape index: {}]
  %s11 = inlined_call_operand.vmem [shape: f32[64,96], index: 11, kind: input, shape index: {}]
  %s12 = inlined_call_operand.vmem [shape: f32[1,96], index: 12, kind: input, shape index: {}]
  %s13 = inlined_call_operand.vmem [shape: f32[96,24], index: 13, kind: input, shape index: {}]
  %s14 = inlined_call_operand.vmem [shape: f32[1,24], index: 14, kind: input, shape index: {}]
  %s15 = inlined_call_operand.hbm [shape: f32[16,8], index: 15, kind: output, shape index: {0}]
  %s16 = inlined_call_operand.hbm [shape: f32[4,32], index: 16, kind: output, shape index: {1}]
  %17 = xla_tuple %s15, %s16
  %s18 = sld [smem:[#allocation0]]
  $region78: #{parallel_mode_forward.1} parent=0
    _
  %s20 = ssub.s32 1, %s18
  %s21 = scalar_select 0, %s20, %s18
  $region1: #{parallel_mode_forward.1} parent=0
    #allocation2 [shape = 'u8[8192]{0}', space=vmem, size = 0x2000, scoped, tag = 'output window, operand 0, single buffered']
    #allocation3 [shape = 's32[1]{0}', space=sflag, size = 0x4, scoped, tag = 'scoped memory for parallel_mode_forward.1']
    #allocation4 [shape = 'u8[2048]{0}', space=vmem, size = 0x800, scoped, tag = 'output window, operand 1, single buffered']
    #allocation5 [shape = 's32[1]{0}', space=sflag, size = 0x4, scoped, tag = 'scoped memory for parallel_mode_forward.1']
    %22 = vsyncpa [#allocation3], 0
    %23 = vsyncpa [#allocation5], 0
    // Predicated region
    $region2: #{parallel_mode_forward.1} parent=1 // pred_check
      _
    $region3: #{parallel_mode_forward.1} parent=1 // pred_check_branch
      %25 = sbr.rel (0) target = $region5
    $region4: #{parallel_mode_forward.1} parent=1 // pred_region
      _
    $region5: #{parallel_mode_forward.1} parent=1 // pred_fallthru
      _
    // Predicated region
    $region6: #{parallel_mode_forward.1} parent=1 // pred_check
      _
    $region7: #{parallel_mode_forward.1} parent=1 // pred_check_branch
      %27 = sbr.rel (0) target = $region9
    $region8: #{parallel_mode_forward.1} parent=1 // pred_region
      _
    $region9: #{parallel_mode_forward.1} parent=1 // pred_fallthru
      _
    // Predicated region
    $region10: #{parallel_mode_forward.1} parent=1 // pred_check
      _
    $region11: #{parallel_mode_forward.1} parent=1 // pred_check_branch
      %29 = sbr.rel (0) target = $region13
    $region12: #{parallel_mode_forward.1} parent=1 // pred_region
      _
    $region13: #{parallel_mode_forward.1} parent=1 // pred_fallthru
      _
    // Predicated region
    $region14: #{parallel_mode_forward.1} parent=1 // pred_check
      _
    $region15: #{parallel_mode_forward.1} parent=1 // pred_check_branch
      %31 = sbr.rel (0) target = $region17
    $region16: #{parallel_mode_forward.1} parent=1 // pred_region
      _
    $region17: #{parallel_mode_forward.1} parent=1 // pred_fallthru
      _
    // Predicated region
    $region18: #{parallel_mode_forward.1} parent=1 // pred_check
      _
    $region19: #{parallel_mode_forward.1} parent=1 // pred_check_branch
      %33 = sbr.rel (0) target = $region21
    $region20: #{parallel_mode_forward.1} parent=1 // pred_region
      _
    $region21: #{parallel_mode_forward.1} parent=1 // pred_fallthru
      _
    // Predicated region
    $region22: #{parallel_mode_forward.1} parent=1 // pred_check
      _
    $region23: #{parallel_mode_forward.1} parent=1 // pred_check_branch
      %35 = sbr.rel (0) target = $region25
    $region24: #{parallel_mode_forward.1} parent=1 // pred_region
      _
    $region25: #{parallel_mode_forward.1} parent=1 // pred_fallthru
      _
    // Predicated region
    $region26: #{parallel_mode_forward.1} parent=1 // pred_check
      _
    $region27: #{parallel_mode_forward.1} parent=1 // pred_check_branch
      %37 = sbr.rel (0) target = $region29
    $region28: #{parallel_mode_forward.1} parent=1 // pred_region
      _
    $region29: #{parallel_mode_forward.1} parent=1 // pred_fallthru
      _
    // Predicated region
    $region30: #{parallel_mode_forward.1} parent=1 // pred_check
      _
    $region31: #{parallel_mode_forward.1} parent=1 // pred_check_branch
      %39 = sbr.rel (0) target = $region33
    $region32: #{parallel_mode_forward.1} parent=1 // pred_region
      _
    $region33: #{parallel_mode_forward.1} parent=1 // pred_fallthru
      _
    // Predicated region
    $region34: #{parallel_mode_forward.1} parent=1 // pred_check
      _
    $region35: #{parallel_mode_forward.1} parent=1 // pred_check_branch
      %41 = sbr.rel (0) target = $region37
    $region36: #{parallel_mode_forward.1} parent=1 // pred_region
      _
    $region37: #{parallel_mode_forward.1} parent=1 // pred_fallthru
      _
    // Predicated region
    $region38: #{parallel_mode_forward.1} parent=1 // pred_check
      _
    $region39: #{parallel_mode_forward.1} parent=1 // pred_check_branch
      %43 = sbr.rel (0) target = $region41
    $region40: #{parallel_mode_forward.1} parent=1 // pred_region
      _
    $region41: #{parallel_mode_forward.1} parent=1 // pred_fallthru
      _
    // Predicated region
    $region42: #{parallel_mode_forward.1} parent=1 // pred_check
      _
    $region43: #{parallel_mode_forward.1} parent=1 // pred_check_branch
      %45 = sbr.rel (0) target = $region45
    $region44: #{parallel_mode_forward.1} parent=1 // pred_region
      _
    $region45: #{parallel_mode_forward.1} parent=1 // pred_fallthru
      _
    // Predicated region
    $region46: #{parallel_mode_forward.1} parent=1 // pred_check
      _
    $region47: #{parallel_mode_forward.1} parent=1 // pred_check_branch
      %47 = sbr.rel (0) target = $region49
    $region48: #{parallel_mode_forward.1} parent=1 // pred_region
      _
    $region49: #{parallel_mode_forward.1} parent=1 // pred_fallthru
      _
    // Predicated region
    $region50: #{parallel_mode_forward.1} parent=1 // pred_check
      _
    $region51: #{parallel_mode_forward.1} parent=1 // pred_check_branch
      %49 = sbr.rel (0) target = $region53
    $region52: #{parallel_mode_forward.1} parent=1 // pred_region
      _
    $region53: #{parallel_mode_forward.1} parent=1 // pred_fallthru
      _
    // Predicated region
    $region54: #{parallel_mode_forward.1} parent=1 // pred_check
      _
    $region55: #{parallel_mode_forward.1} parent=1 // pred_check_branch
      %51 = sbr.rel (0) target = $region57
    $region56: #{parallel_mode_forward.1} parent=1 // pred_region
      _
    $region57: #{parallel_mode_forward.1} parent=1 // pred_fallthru
      _
    // Predicated region
    $region58: #{parallel_mode_forward.1} parent=1 // pred_check
      _
    $region59: #{parallel_mode_forward.1} parent=1 // pred_check_branch
      %53 = sbr.rel (0) target = $region61
    $region60: #{parallel_mode_forward.1} parent=1 // pred_region
      _
    $region61: #{parallel_mode_forward.1} parent=1 // pred_fallthru
      _
    %v55 = vld [vmem:[%s0] sm:$0xff]
    %v56 = vld [vmem:[%s0 + $0x8] sm:$0xff]
    %v57 = vld [vmem:[%s0 + $0x10] sm:$0xff]
    %v58 = vld [vmem:[%s0 + $0x18] sm:$0xff]
    %v59 = vld [vmem:[%s1] sm:$0xff]
    %v60 = vld [vmem:[%s1 + $0x8] sm:$0xff]
    %v61 = vld [vmem:[%s1 + $0x10] sm:$0xff]
    %v62 = vld [vmem:[%s1 + $0x18] sm:$0xff]
    %v63 = vld [vmem:[%s1 + $0x20] sm:$0xff]
    %v64 = vld [vmem:[%s1 + $0x28] sm:$0xff]
    %v65 = vld [vmem:[%s1 + $0x30] sm:$0xff]
    %v66 = vld [vmem:[%s1 + $0x38] sm:$0xff]
    %v67 = vld [vmem:[%s1 + $0x40] sm:$0xff]
    %v68 = vld [vmem:[%s1 + $0x48] sm:$0xff]
    %v69 = vld [vmem:[%s1 + $0x50] sm:$0xff]
    %v70 = vld [vmem:[%s1 + $0x58] sm:$0xff]
    %v71 = vld [vmem:[%s1 + $0x60] sm:$0xff]
    %v72 = vld [vmem:[%s1 + $0x68] sm:$0xff]
    %v73 = vld [vmem:[%s1 + $0x70] sm:$0xff]
    %v74 = vld [vmem:[%s1 + $0x78] sm:$0xff]
    %v75 = vld [vmem:[%s1 + $0x80] sm:$0xff]
    %v76 = vld [vmem:[%s1 + $0x88] sm:$0xff]
    %v77 = vld [vmem:[%s1 + $0x90] sm:$0xff]
    %v78 = vld [vmem:[%s1 + $0x98] sm:$0xff]
    %v79 = vld [vmem:[%s1 + $0xa0] sm:$0xff]
    %v80 = vld [vmem:[%s1 + $0xa8] sm:$0xff]
    %v81 = vld [vmem:[%s1 + $0xb0] sm:$0xff]
    %v82 = vld [vmem:[%s1 + $0xb8] sm:$0xff]
    %v83 = vld [vmem:[%s1 + $0xc0] sm:$0xff]
    %v84 = vld [vmem:[%s1 + $0xc8] sm:$0xff]
    %v85 = vld [vmem:[%s1 + $0xd0] sm:$0xff]
    %v86 = vld [vmem:[%s1 + $0xd8] sm:$0xff]
    %v87 = vld [vmem:[%s1 + $0xe0] sm:$0xff]
    %v88 = vld [vmem:[%s1 + $0xe8] sm:$0xff]
    %v89 = vld [vmem:[%s1 + $0xf0] sm:$0xff]
    %v90 = vld [vmem:[%s1 + $0xf8] sm:$0xff]
    %v91 = vld [vmem:[%s1 + $0x100] sm:$0xff]
    %v92 = vld [vmem:[%s1 + $0x108] sm:$0xff]
    %v93 = vld [vmem:[%s1 + $0x110] sm:$0xff]
    %v94 = vld [vmem:[%s1 + $0x118] sm:$0xff]
    %v95 = vld [vmem:[%s1 + $0x120] sm:$0xff]
    %v96 = vld [vmem:[%s1 + $0x128] sm:$0xff]
    %v97 = vld [vmem:[%s1 + $0x130] sm:$0xff]
    %v98 = vld [vmem:[%s1 + $0x138] sm:$0xff]
    %v99 = vld [vmem:[%s1 + $0x140] sm:$0xff]
    %v100 = vld [vmem:[%s1 + $0x148] sm:$0xff]
    %v101 = vld [vmem:[%s1 + $0x150] sm:$0xff]
    %v102 = vld [vmem:[%s1 + $0x158] sm:$0xff]
    %v103 = vld [vmem:[%s1 + $0x160] sm:$0xff]
    %v104 = vld [vmem:[%s1 + $0x168] sm:$0xff]
    %v105 = vld [vmem:[%s1 + $0x170] sm:$0xff]
    %v106 = vld [vmem:[%s1 + $0x178] sm:$0xff]
    %v107 = vld [vmem:[%s1 + $0x180] sm:$0xff]
    %v108 = vld [vmem:[%s1 + $0x188] sm:$0xff]
    %v109 = vld [vmem:[%s1 + $0x190] sm:$0xff]
    %v110 = vld [vmem:[%s1 + $0x198] sm:$0xff]
    %v111 = vld [vmem:[%s1 + $0x1a0] sm:$0xf]
    %v112 = vld [vmem:[%s1 + $0x1a8] sm:$0xf]
    %v113 = vld [vmem:[%s2] sm:$0x3]
    %v115 = vlaneseq
    %v116 = vshrl.u32 %v115, 7
    %v117 = vsub.s32 0, %v116
    %v118 = vrot.slane %v113, %v117
    %v119 = vlaneseq
    %v120 = vshrl.u32 %v119, 7
    %v121 = vsub.s32 1, %v120
    %v122 = vrot.slane %v113, %v121
    %vm125 = vcmask 687104
    %v127 = vsel %vm125, %v56, 0
    %v130 = vsel %vm125, %v58, 0
    %vm132 = vcmask 1043456
    %v134 = vsel %vm132, %v111, 0
    %v137 = vsel %vm132, %v112, 0
    %139 = vmatprep.subr.mxu0 %v90
    %140 = vmatpush1.msra.mxu0 %v89
    %141 = vmatprep.subr.mxu0 %v88
    %142 = vmatpush1.msra.mxu0 %v87
    %143 = vmatprep.subr.mxu0 %v86
    %144 = vmatpush1.msra.mxu0 %v85
    %145 = vmatprep.subr.mxu0 %v84
    %146 = vmatpush1.msra.mxu0 %v83
    %147 = vmatprep.subr.mxu0 %v82
    %148 = vmatpush1.msra.mxu0 %v81
    %149 = vmatprep.subr.mxu0 %v80
    %150 = vmatpush1.msra.mxu0 %v79
    %151 = vmatprep.subr.mxu0 %v78
    %152 = vmatpush1.msra.mxu0 %v77
    %153 = vmatprep.subr.mxu0 %v76
    %154 = vmatpush1.msra.mxu0 %v75
    %155 = vmatprep.subr.mxu0 %v74
    %156 = vmatpush1.msra.mxu0 %v73
    %157 = vmatprep.subr.mxu0 %v72
    %158 = vmatpush1.msra.mxu0 %v71
    %159 = vmatprep.subr.mxu0 %v70
    %160 = vmatpush1.msra.mxu0 %v69
    %161 = vmatprep.subr.mxu0 %v68
    %162 = vmatpush1.msra.mxu0 %v67
    %163 = vmatprep.subr.mxu0 %v66
    %164 = vmatpush1.msra.mxu0 %v65
    %165 = vmatprep.subr.mxu0 %v64
    %166 = vmatpush1.msra.mxu0 %v63
    %167 = vmatprep.subr.mxu0 %v62
    %168 = vmatpush1.msra.mxu0 %v61
    %169 = vmatprep.subr.mxu0 %v60
    %170 = vmatpush1.msra.mxu0 %v59
    %171 = vmatprep.subr.mxu0 0.0
    %172 = vmatpush2.msra.mxu0 0.0
    %173 = vmatprep.subr.mxu0 0.0
    %174 = vmatpush2.msra.mxu0 0.0
    %175 = vmatprep.subr.mxu0 0.0
    %176 = vmatpush2.msra.mxu0 0.0
    %177 = vmatprep.subr.mxu0 0.0
    %178 = vmatpush2.msra.mxu0 0.0
    %179 = vmatprep.subr.mxu0 0.0
    %180 = vmatpush2.msra.mxu0 0.0
    %181 = vmatprep.subr.mxu0 %v137
    %182 = vmatpush2.msra.mxu0 %v134
    %183 = vmatprep.subr.mxu0 %v110
    %184 = vmatpush2.msra.mxu0 %v109
    %185 = vmatprep.subr.mxu0 %v108
    %186 = vmatpush2.msra.mxu0 %v107
    %187 = vmatprep.subr.mxu0 %v106
    %188 = vmatpush2.msra.mxu0 %v105
    %189 = vmatprep.subr.mxu0 %v104
    %190 = vmatpush2.msra.mxu0 %v103
    %191 = vmatprep.subr.mxu0 %v102
    %192 = vmatpush2.msra.mxu0 %v101
    %193 = vmatprep.subr.mxu0 %v100
    %194 = vmatpush2.msra.mxu0 %v99
    %195 = vmatprep.subr.mxu0 %v98
    %196 = vmatpush2.msra.mxu0 %v97
    %197 = vmatprep.subr.mxu0 %v96
    %198 = vmatpush2.msra.mxu0 %v95
    %199 = vmatprep.subr.mxu0 %v94
    %200 = vmatpush2.msra.mxu0 %v93
    %201 = vmatprep.subr.mxu0 %v92
    %202 = vmatpush2.msra.mxu0 %v91
    %203 = vmatprep.mubr.f32.mxu0 %v127
    %204 = vmatmul.mubr.f32.gmra.mxu0 %v55
    %v205 = vpop.f32.mrf.mxu0
    %v206 = vadd.f32 %v118, %v205
    %v207 = vpop.f32.mrf.mxu0
    %v208 = vadd.f32 %v122, %v207
    %209 = vmatprep.mubr.f32.mxu0 %v130
    %210 = vmatmul.mubr.f32.gmra.mxu0 %v57
    %v211 = vpop.f32.mrf.mxu0
    %v212 = vadd.f32 %v118, %v211
    %v213 = vpop.f32.mrf.mxu0
    %v214 = vadd.f32 %v122, %v213
    %215 = vdwg.mxu0
    %v216 = vld [vmem:[%s3] sm:$0xff]
    %v217 = vld [vmem:[%s3 + $0x8] sm:$0xff]
    %v218 = vld [vmem:[%s3 + $0x10] sm:$0xff]
    %v219 = vld [vmem:[%s3 + $0x18] sm:$0xff]
    %v220 = vld [vmem:[%s3 + $0x20] sm:$0xff]
    %v221 = vld [vmem:[%s3 + $0x28] sm:$0xff]
    %v222 = vld [vmem:[%s3 + $0x30] sm:$0xff]
    %v223 = vld [vmem:[%s3 + $0x38] sm:$0xff]
    %v224 = vld [vmem:[%s7] sm:$0xff]
    %v225 = vld [vmem:[%s7 + $0x8] sm:$0xff]
    %v226 = vld [vmem:[%s7 + $0x10] sm:$0xff]
    %v227 = vld [vmem:[%s7 + $0x18] sm:$0xff]
    %v228 = vld [vmem:[%s7 + $0x20] sm:$0xff]
    %v229 = vld [vmem:[%s7 + $0x28] sm:$0xff]
    %v230 = vld [vmem:[%s7 + $0x30] sm:$0xff]
    %v231 = vld [vmem:[%s7 + $0x38] sm:$0xff]
    %v232 = vld [vmem:[%s5] sm:$0xff]
    %v233 = vld [vmem:[%s5 + $0x8] sm:$0xff]
    %v234 = vld [vmem:[%s5 + $0x10] sm:$0xff]
    %v235 = vld [vmem:[%s5 + $0x18] sm:$0xff]
    %v236 = vld [vmem:[%s5 + $0x20] sm:$0xff]
    %v237 = vld [vmem:[%s5 + $0x28] sm:$0xff]
    %v238 = vld [vmem:[%s5 + $0x30] sm:$0xff]
    %v239 = vld [vmem:[%s5 + $0x38] sm:$0xff]
    %v240 = vld [vmem:[%s6] sm:$0x3]
    %v241 = vld [vmem:[%s4] sm:$0x1]
    %v242 = vld [vmem:[%s8] sm:$0x1]
    %v251 = vunpack.c.l.b16 %v216
    %v252 = vunpack.c.h.b16 %v216
    %v253 = vunpack.c.l.b16 %v217
    %v254 = vunpack.c.h.b16 %v217
    %v255 = vunpack.c.l.b16 %v218
    %v256 = vunpack.c.h.b16 %v218
    %v257 = vunpack.c.l.b16 %v219
    %v258 = vunpack.c.h.b16 %v219
    %v259 = vunpack.c.l.b16 %v220
    %v260 = vunpack.c.h.b16 %v220
    %v261 = vunpack.c.l.b16 %v221
    %v262 = vunpack.c.h.b16 %v221
    %v263 = vunpack.c.l.b16 %v222
    %v264 = vunpack.c.h.b16 %v222
    %v265 = vunpack.c.l.b16 %v223
    %v266 = vunpack.c.h.b16 %v223
    %v267 = vpack.c.b16 %v253, %v251
    %v268 = vpack.c.b16 %v254, %v252
    %v269 = vpack.c.b16 %v257, %v255
    %v270 = vpack.c.b16 %v258, %v256
    %v271 = vpack.c.b16 %v261, %v259
    %v272 = vpack.c.b16 %v262, %v260
    %v273 = vpack.c.b16 %v265, %v263
    %v274 = vpack.c.b16 %v266, %v264
    %vm283 = vcmask 523264
    %v285 = vsel %vm283, 0, 0
    %287 = vmatprep.subr.bf16.mxu0 0
    %288 = vmatpush1.bf16.msra.mxu0 0
    %289 = vmatprep.subr.bf16.mxu0 0
    %290 = vmatpush1.bf16.msra.mxu0 0
    %291 = vmatprep.subr.bf16.mxu0 0
    %292 = vmatpush1.bf16.msra.mxu0 0
    %293 = vmatprep.subr.bf16.mxu0 0
    %294 = vmatpush1.bf16.msra.mxu0 0
    %295 = vmatprep.subr.bf16.mxu0 %v274
    %296 = vmatpush1.bf16.msra.mxu0 %v273
    %297 = vmatprep.subr.bf16.mxu0 %v272
    %298 = vmatpush1.bf16.msra.mxu0 %v271
    %299 = vmatprep.subr.bf16.mxu0 %v270
    %300 = vmatpush1.bf16.msra.mxu0 %v269
    %301 = vmatprep.subr.bf16.mxu0 %v268
    %302 = vmatpush1.bf16.msra.mxu0 %v267
    %303 = vmatprep.subr.bf16.mxu0 0
    %304 = vmatpush2.bf16.msra.mxu0 0
    %305 = vmatprep.subr.bf16.mxu0 0
    %306 = vmatpush2.bf16.msra.mxu0 0
    %307 = vmatprep.subr.bf16.mxu0 0
    %308 = vmatpush2.bf16.msra.mxu0 0
    %309 = vmatprep.subr.bf16.mxu0 0
    %310 = vmatpush2.bf16.msra.mxu0 0
    %311 = vmatprep.subr.bf16.mxu0 0
    %312 = vmatpush2.bf16.msra.mxu0 0
    %313 = vmatprep.subr.bf16.mxu0 0
    %314 = vmatpush2.bf16.msra.mxu0 0
    %315 = vmatprep.subr.bf16.mxu0 0
    %316 = vmatpush2.bf16.msra.mxu0 0
    %317 = vmatprep.subr.bf16.mxu0 0
    %318 = vmatpush2.bf16.msra.mxu0 0
    %319 = vmatprep.mubr.bf16.mxu0 0
    %320 = vmatmul.mubr.bf16.gmra.mxu0 %v285
    %v321 = vpop.f32.mrf.mxu0
    %v322 = vadd.f32 0.0, %v321
    %v323 = vpop.f32.mrf.mxu0
    %v324 = vadd.f32 0.0, %v323
    %v325 = vpop.f32.mrf.mxu0
    %v326 = vpop.f32.mrf.mxu0
    %327 = vdwg.mxu0
    %v336 = vunpack.c.l.b16 %v224
    %v337 = vunpack.c.h.b16 %v224
    %v338 = vunpack.c.l.b16 %v225
    %v339 = vunpack.c.h.b16 %v225
    %v340 = vunpack.c.l.b16 %v226
    %v341 = vunpack.c.h.b16 %v226
    %v342 = vunpack.c.l.b16 %v227
    %v343 = vunpack.c.h.b16 %v227
    %v344 = vunpack.c.l.b16 %v228
    %v345 = vunpack.c.h.b16 %v228
    %v346 = vunpack.c.l.b16 %v229
    %v347 = vunpack.c.h.b16 %v229
    %v348 = vunpack.c.l.b16 %v230
    %v349 = vunpack.c.h.b16 %v230
    %v350 = vunpack.c.l.b16 %v231
    %v351 = vunpack.c.h.b16 %v231
    %v352 = vpack.c.b16 %v338, %v336
    %v353 = vpack.c.b16 %v339, %v337
    %v354 = vpack.c.b16 %v342, %v340
    %v355 = vpack.c.b16 %v343, %v341
    %v356 = vpack.c.b16 %v346, %v344
    %v357 = vpack.c.b16 %v347, %v345
    %v358 = vpack.c.b16 %v350, %v348
    %v359 = vpack.c.b16 %v351, %v349
    %368 = vmatprep.subr.bf16.mxu0 0
    %369 = vmatpush1.bf16.msra.mxu0 0
    %370 = vmatprep.subr.bf16.mxu0 0
    %371 = vmatpush1.bf16.msra.mxu0 0
    %372 = vmatprep.subr.bf16.mxu0 0
    %373 = vmatpush1.bf16.msra.mxu0 0
    %374 = vmatprep.subr.bf16.mxu0 0
    %375 = vmatpush1.bf16.msra.mxu0 0
    %376 = vmatprep.subr.bf16.mxu0 %v359
    %377 = vmatpush1.bf16.msra.mxu0 %v358
    %378 = vmatprep.subr.bf16.mxu0 %v357
    %379 = vmatpush1.bf16.msra.mxu0 %v356
    %380 = vmatprep.subr.bf16.mxu0 %v355
    %381 = vmatpush1.bf16.msra.mxu0 %v354
    %382 = vmatprep.subr.bf16.mxu0 %v353
    %383 = vmatpush1.bf16.msra.mxu0 %v352
    %384 = vmatprep.subr.bf16.mxu0 0
    %385 = vmatpush2.bf16.msra.mxu0 0
    %386 = vmatprep.subr.bf16.mxu0 0
    %387 = vmatpush2.bf16.msra.mxu0 0
    %388 = vmatprep.subr.bf16.mxu0 0
    %389 = vmatpush2.bf16.msra.mxu0 0
    %390 = vmatprep.subr.bf16.mxu0 0
    %391 = vmatpush2.bf16.msra.mxu0 0
    %392 = vmatprep.subr.bf16.mxu0 0
    %393 = vmatpush2.bf16.msra.mxu0 0
    %394 = vmatprep.subr.bf16.mxu0 0
    %395 = vmatpush2.bf16.msra.mxu0 0
    %396 = vmatprep.subr.bf16.mxu0 0
    %397 = vmatpush2.bf16.msra.mxu0 0
    %398 = vmatprep.subr.bf16.mxu0 0
    %399 = vmatpush2.bf16.msra.mxu0 0
    %400 = vmatprep.mubr.bf16.mxu0 0
    %401 = vmatmul.mubr.bf16.gmra.mxu0 %v285
    %v402 = vpop.f32.mrf.mxu0
    %v403 = vadd.f32 0.0, %v402
    %v404 = vpop.f32.mrf.mxu0
    %v405 = vadd.f32 0.0, %v404
    %v406 = vpop.f32.mrf.mxu0
    %v407 = vpop.f32.mrf.mxu0
    %408 = vdwg.mxu0
    %v409 = vadd.f32 %v206, %v322
    %v410 = vxor.u32 %v409, 2147483648
    %v411 = vmul.f32 %v410, 1.442695
    %v412 = vpow.pop %v411
    %v413 = vadd.f32 %v412, 1.0
    %v414 = vrcp.pop %v413
    %v415 = vmul.f32 1.0, %v414
    %v417 = vlaneseq
    %v418 = vshrl.u32 %v417, 7
    %v419 = vsub.s32 0, %v418
    %v420 = vrot.slane %v241, %v419
    %v422 = vadd.f32 %v324, %v420
    %v423 = vmul.f32 %v415, %v422
    %v424 = vadd.f32 %v208, %v423
    %v425 = vtanh.pop %v424
    %v426 = vsub.f32 0.0, %v425
    %428 = vrot.lane.b32.xlu0 %v426, 64
    %v429 = vpop.permute.xlu0 %428
    %v431 = vmul.f32 %v415, %v429
    %433 = vrot.lane.b32.xlu0 %v431, 64
    %v434 = vpop.permute.xlu0 %433
    %v436 = vadd.f32 %v425, %v434
    %v437 = vpack.c.bf16 %v436, %v436
    %v439 = vlaneseq
    %v440 = vshrl.u32 %v439, 7
    %v441 = vsub.s32 0, %v440
    %v442 = vrot.slane %v240, %v441
    %v443 = vlaneseq
    %v444 = vshrl.u32 %v443, 7
    %v445 = vsub.s32 1, %v444
    %v446 = vrot.slane %v240, %v445
    %v457 = vunpack.c.l.b16 %v232
    %v458 = vunpack.c.h.b16 %v232
    %v459 = vunpack.c.l.b16 %v233
    %v460 = vunpack.c.h.b16 %v233
    %v461 = vunpack.c.l.b16 %v234
    %v462 = vunpack.c.h.b16 %v234
    %v463 = vunpack.c.l.b16 %v235
    %v464 = vunpack.c.h.b16 %v235
    %v465 = vunpack.c.l.b16 %v236
    %v466 = vunpack.c.h.b16 %v236
    %v467 = vunpack.c.l.b16 %v237
    %v468 = vunpack.c.h.b16 %v237
    %v469 = vunpack.c.l.b16 %v238
    %v470 = vunpack.c.h.b16 %v238
    %v471 = vunpack.c.l.b16 %v239
    %v472 = vunpack.c.h.b16 %v239
    %v473 = vpack.c.b16 %v459, %v457
    %v474 = vpack.c.b16 %v460, %v458
    %v475 = vpack.c.b16 %v463, %v461
    %v476 = vpack.c.b16 %v464, %v462
    %v477 = vpack.c.b16 %v467, %v465
    %v478 = vpack.c.b16 %v468, %v466
    %v479 = vpack.c.b16 %v471, %v469
    %v480 = vpack.c.b16 %v472, %v470
    %v490 = vsel %vm283, %v437, 0
    %492 = vmatprep.subr.bf16.mxu0 0
    %493 = vmatpush1.bf16.msra.mxu0 0
    %494 = vmatprep.subr.bf16.mxu0 0
    %495 = vmatpush1.bf16.msra.mxu0 0
    %496 = vmatprep.subr.bf16.mxu0 0
    %497 = vmatpush1.bf16.msra.mxu0 0
    %498 = vmatprep.subr.bf16.mxu0 0
    %499 = vmatpush1.bf16.msra.mxu0 0
    %500 = vmatprep.subr.bf16.mxu0 %v480
    %501 = vmatpush1.bf16.msra.mxu0 %v479
    %502 = vmatprep.subr.bf16.mxu0 %v478
    %503 = vmatpush1.bf16.msra.mxu0 %v477
    %504 = vmatprep.subr.bf16.mxu0 %v476
    %505 = vmatpush1.bf16.msra.mxu0 %v475
    %506 = vmatprep.subr.bf16.mxu0 %v474
    %507 = vmatpush1.bf16.msra.mxu0 %v473
    %508 = vmatprep.subr.bf16.mxu0 0
    %509 = vmatpush2.bf16.msra.mxu0 0
    %510 = vmatprep.subr.bf16.mxu0 0
    %511 = vmatpush2.bf16.msra.mxu0 0
    %512 = vmatprep.subr.bf16.mxu0 0
    %513 = vmatpush2.bf16.msra.mxu0 0
    %514 = vmatprep.subr.bf16.mxu0 0
    %515 = vmatpush2.bf16.msra.mxu0 0
    %516 = vmatprep.subr.bf16.mxu0 0
    %517 = vmatpush2.bf16.msra.mxu0 0
    %518 = vmatprep.subr.bf16.mxu0 0
    %519 = vmatpush2.bf16.msra.mxu0 0
    %520 = vmatprep.subr.bf16.mxu0 0
    %521 = vmatpush2.bf16.msra.mxu0 0
    %522 = vmatprep.subr.bf16.mxu0 0
    %523 = vmatpush2.bf16.msra.mxu0 0
    %524 = vmatprep.mubr.bf16.mxu0 0
    %525 = vmatmul.mubr.bf16.gmra.mxu0 %v490
    %v526 = vpop.f32.mrf.mxu0
    %v527 = vadd.f32 %v442, %v526
    %v528 = vpop.f32.mrf.mxu0
    %v529 = vadd.f32 %v446, %v528
    %v530 = vpop.f32.mrf.mxu0
    %v531 = vpop.f32.mrf.mxu0
    %532 = vdwg.mxu0
    %v533 = vadd.f32 %v527, %v403
    %v534 = vxor.u32 %v533, 2147483648
    %v535 = vmul.f32 %v534, 1.442695
    %v536 = vpow.pop %v535
    %v537 = vadd.f32 %v536, 1.0
    %v538 = vrcp.pop %v537
    %v539 = vmul.f32 1.0, %v538
    %v541 = vlaneseq
    %v542 = vshrl.u32 %v541, 7
    %v543 = vsub.s32 0, %v542
    %v544 = vrot.slane %v242, %v543
    %v546 = vadd.f32 %v405, %v544
    %v547 = vmul.f32 %v539, %v546
    %v548 = vadd.f32 %v529, %v547
    %v549 = vtanh.pop %v548
    %v550 = vsub.f32 0.0, %v549
    %552 = vrot.lane.b32.xlu0 %v550, 64
    %v553 = vpop.permute.xlu0 %552
    %v555 = vmul.f32 %v539, %v553
    %557 = vrot.lane.b32.xlu0 %v555, 64
    %v558 = vpop.permute.xlu0 %557
    %v560 = vadd.f32 %v549, %v558
    %561 = vmatprep.subr.bf16.mxu0 0
    %562 = vmatpush1.bf16.msra.mxu0 0
    %563 = vmatprep.subr.bf16.mxu0 0
    %564 = vmatpush1.bf16.msra.mxu0 0
    %565 = vmatprep.subr.bf16.mxu0 0
    %566 = vmatpush1.bf16.msra.mxu0 0
    %567 = vmatprep.subr.bf16.mxu0 0
    %568 = vmatpush1.bf16.msra.mxu0 0
    %569 = vmatprep.subr.bf16.mxu0 %v274
    %570 = vmatpush1.bf16.msra.mxu0 %v273
    %571 = vmatprep.subr.bf16.mxu0 %v272
    %572 = vmatpush1.bf16.msra.mxu0 %v271
    %573 = vmatprep.subr.bf16.mxu0 %v270
    %574 = vmatpush1.bf16.msra.mxu0 %v269
    %575 = vmatprep.subr.bf16.mxu0 %v268
    %576 = vmatpush1.bf16.msra.mxu0 %v267
    %577 = vmatprep.subr.bf16.mxu0 0
    %578 = vmatpush2.bf16.msra.mxu0 0
    %579 = vmatprep.subr.bf16.mxu0 0
    %580 = vmatpush2.bf16.msra.mxu0 0
    %581 = vmatprep.subr.bf16.mxu0 0
    %582 = vmatpush2.bf16.msra.mxu0 0
    %583 = vmatprep.subr.bf16.mxu0 0
    %584 = vmatpush2.bf16.msra.mxu0 0
    %585 = vmatprep.subr.bf16.mxu0 0
    %586 = vmatpush2.bf16.msra.mxu0 0
    %587 = vmatprep.subr.bf16.mxu0 0
    %588 = vmatpush2.bf16.msra.mxu0 0
    %589 = vmatprep.subr.bf16.mxu0 0
    %590 = vmatpush2.bf16.msra.mxu0 0
    %591 = vmatprep.subr.bf16.mxu0 0
    %592 = vmatpush2.bf16.msra.mxu0 0
    %593 = vmatprep.mubr.bf16.mxu0 0
    %594 = vmatmul.mubr.bf16.gmra.mxu0 %v490
    %v595 = vpop.f32.mrf.mxu0
    %v596 = vadd.f32 0.0, %v595
    %v597 = vpop.f32.mrf.mxu0
    %v598 = vadd.f32 0.0, %v597
    %v599 = vpop.f32.mrf.mxu0
    %v600 = vpop.f32.mrf.mxu0
    %601 = vdwg.mxu0
    %v602 = vpack.c.bf16 %v560, %v560
    %v604 = vsel %vm283, %v602, 0
    %606 = vmatprep.subr.bf16.mxu0 0
    %607 = vmatpush1.bf16.msra.mxu0 0
    %608 = vmatprep.subr.bf16.mxu0 0
    %609 = vmatpush1.bf16.msra.mxu0 0
    %610 = vmatprep.subr.bf16.mxu0 0
    %611 = vmatpush1.bf16.msra.mxu0 0
    %612 = vmatprep.subr.bf16.mxu0 0
    %613 = vmatpush1.bf16.msra.mxu0 0
    %614 = vmatprep.subr.bf16.mxu0 %v359
    %615 = vmatpush1.bf16.msra.mxu0 %v358
    %616 = vmatprep.subr.bf16.mxu0 %v357
    %617 = vmatpush1.bf16.msra.mxu0 %v356
    %618 = vmatprep.subr.bf16.mxu0 %v355
    %619 = vmatpush1.bf16.msra.mxu0 %v354
    %620 = vmatprep.subr.bf16.mxu0 %v353
    %621 = vmatpush1.bf16.msra.mxu0 %v352
    %622 = vmatprep.subr.bf16.mxu0 0
    %623 = vmatpush2.bf16.msra.mxu0 0
    %624 = vmatprep.subr.bf16.mxu0 0
    %625 = vmatpush2.bf16.msra.mxu0 0
    %626 = vmatprep.subr.bf16.mxu0 0
    %627 = vmatpush2.bf16.msra.mxu0 0
    %628 = vmatprep.subr.bf16.mxu0 0
    %629 = vmatpush2.bf16.msra.mxu0 0
    %630 = vmatprep.subr.bf16.mxu0 0
    %631 = vmatpush2.bf16.msra.mxu0 0
    %632 = vmatprep.subr.bf16.mxu0 0
    %633 = vmatpush2.bf16.msra.mxu0 0
    %634 = vmatprep.subr.bf16.mxu0 0
    %635 = vmatpush2.bf16.msra.mxu0 0
    %636 = vmatprep.subr.bf16.mxu0 0
    %637 = vmatpush2.bf16.msra.mxu0 0
    %638 = vmatprep.mubr.bf16.mxu0 0
    %639 = vmatmul.mubr.bf16.gmra.mxu0 %v604
    %v640 = vpop.f32.mrf.mxu0
    %v641 = vadd.f32 0.0, %v640
    %v642 = vpop.f32.mrf.mxu0
    %v643 = vadd.f32 0.0, %v642
    %v644 = vpop.f32.mrf.mxu0
    %v645 = vpop.f32.mrf.mxu0
    %646 = vdwg.mxu0
    %v648 = vrot.slane %v596, 6
    %v650 = vadd.f32 %v206, %v648
    %v651 = vxor.u32 %v650, 2147483648
    %v652 = vmul.f32 %v651, 1.442695
    %v653 = vpow.pop %v652
    %v654 = vadd.f32 %v653, 1.0
    %v655 = vrcp.pop %v654
    %v656 = vmul.f32 1.0, %v655
    %v657 = vadd.f32 %v598, %v420
    %v659 = vrot.slane %v657, 6
    %v661 = vmul.f32 %v656, %v659
    %v662 = vadd.f32 %v208, %v661
    %v663 = vtanh.pop %v662
    %v665 = vrot.slane %v663, 2
    %v667 = vsub.f32 %v436, %v665
    %v669 = vrot.slane %v667, 6
    %670 = vrot.lane.b32.xlu0 %v669, 64
    %v671 = vpop.permute.xlu0 %670
    %v673 = vmul.f32 %v656, %v671
    %675 = vrot.lane.b32.xlu0 %v673, 64
    %v676 = vpop.permute.xlu0 %675
    %v678 = vadd.f32 %v663, %v676
    %v679 = vpack.c.bf16 %v678, %v678
    %v681 = vrot.slane %v679, 1
    %v683 = vsel %vm283, %v681, 0
    %685 = vmatprep.subr.bf16.mxu0 0
    %686 = vmatpush1.bf16.msra.mxu0 0
    %687 = vmatprep.subr.bf16.mxu0 0
    %688 = vmatpush1.bf16.msra.mxu0 0
    %689 = vmatprep.subr.bf16.mxu0 0
    %690 = vmatpush1.bf16.msra.mxu0 0
    %691 = vmatprep.subr.bf16.mxu0 0
    %692 = vmatpush1.bf16.msra.mxu0 0
    %693 = vmatprep.subr.bf16.mxu0 %v480
    %694 = vmatpush1.bf16.msra.mxu0 %v479
    %695 = vmatprep.subr.bf16.mxu0 %v478
    %696 = vmatpush1.bf16.msra.mxu0 %v477
    %697 = vmatprep.subr.bf16.mxu0 %v476
    %698 = vmatpush1.bf16.msra.mxu0 %v475
    %699 = vmatprep.subr.bf16.mxu0 %v474
    %700 = vmatpush1.bf16.msra.mxu0 %v473
    %701 = vmatprep.subr.bf16.mxu0 0
    %702 = vmatpush2.bf16.msra.mxu0 0
    %703 = vmatprep.subr.bf16.mxu0 0
    %704 = vmatpush2.bf16.msra.mxu0 0
    %705 = vmatprep.subr.bf16.mxu0 0
    %706 = vmatpush2.bf16.msra.mxu0 0
    %707 = vmatprep.subr.bf16.mxu0 0
    %708 = vmatpush2.bf16.msra.mxu0 0
    %709 = vmatprep.subr.bf16.mxu0 0
    %710 = vmatpush2.bf16.msra.mxu0 0
    %711 = vmatprep.subr.bf16.mxu0 0
    %712 = vmatpush2.bf16.msra.mxu0 0
    %713 = vmatprep.subr.bf16.mxu0 0
    %714 = vmatpush2.bf16.msra.mxu0 0
    %715 = vmatprep.subr.bf16.mxu0 0
    %716 = vmatpush2.bf16.msra.mxu0 0
    %717 = vmatprep.mubr.bf16.mxu0 0
    %718 = vmatmul.mubr.bf16.gmra.mxu0 %v683
    %v719 = vpop.f32.mrf.mxu0
    %v720 = vadd.f32 %v442, %v719
    %v721 = vpop.f32.mrf.mxu0
    %v722 = vadd.f32 %v446, %v721
    %v723 = vpop.f32.mrf.mxu0
    %v724 = vpop.f32.mrf.mxu0
    %725 = vdwg.mxu0
    %v726 = vadd.f32 %v720, %v641
    %v727 = vxor.u32 %v726, 2147483648
    %v728 = vmul.f32 %v727, 1.442695
    %v729 = vpow.pop %v728
    %v730 = vadd.f32 %v729, 1.0
    %v731 = vrcp.pop %v730
    %v732 = vmul.f32 1.0, %v731
    %v733 = vadd.f32 %v643, %v544
    %v734 = vmul.f32 %v732, %v733
    %v735 = vadd.f32 %v722, %v734
    %v736 = vtanh.pop %v735
    %v737 = vsub.f32 %v560, %v736
    %739 = vrot.lane.b32.xlu0 %v737, 64
    %v740 = vpop.permute.xlu0 %739
    %v742 = vmul.f32 %v732, %v740
    %744 = vrot.lane.b32.xlu0 %v742, 64
    %v745 = vpop.permute.xlu0 %744
    %v747 = vadd.f32 %v736, %v745
    %748 = vmatprep.subr.bf16.mxu0 0
    %749 = vmatpush1.bf16.msra.mxu0 0
    %750 = vmatprep.subr.bf16.mxu0 0
    %751 = vmatpush1.bf16.msra.mxu0 0
    %752 = vmatprep.subr.bf16.mxu0 0
    %753 = vmatpush1.bf16.msra.mxu0 0
    %754 = vmatprep.subr.bf16.mxu0 0
    %755 = vmatpush1.bf16.msra.mxu0 0
    %756 = vmatprep.subr.bf16.mxu0 %v274
    %757 = vmatpush1.bf16.msra.mxu0 %v273
    %758 = vmatprep.subr.bf16.mxu0 %v272
    %759 = vmatpush1.bf16.msra.mxu0 %v271
    %760 = vmatprep.subr.bf16.mxu0 %v270
    %761 = vmatpush1.bf16.msra.mxu0 %v269
    %762 = vmatprep.subr.bf16.mxu0 %v268
    %763 = vmatpush1.bf16.msra.mxu0 %v267
    %764 = vmatprep.subr.bf16.mxu0 0
    %765 = vmatpush2.bf16.msra.mxu0 0
    %766 = vmatprep.subr.bf16.mxu0 0
    %767 = vmatpush2.bf16.msra.mxu0 0
    %768 = vmatprep.subr.bf16.mxu0 0
    %769 = vmatpush2.bf16.msra.mxu0 0
    %770 = vmatprep.subr.bf16.mxu0 0
    %771 = vmatpush2.bf16.msra.mxu0 0
    %772 = vmatprep.subr.bf16.mxu0 0
    %773 = vmatpush2.bf16.msra.mxu0 0
    %774 = vmatprep.subr.bf16.mxu0 0
    %775 = vmatpush2.bf16.msra.mxu0 0
    %776 = vmatprep.subr.bf16.mxu0 0
    %777 = vmatpush2.bf16.msra.mxu0 0
    %778 = vmatprep.subr.bf16.mxu0 0
    %779 = vmatpush2.bf16.msra.mxu0 0
    %780 = vmatprep.mubr.bf16.mxu0 0
    %781 = vmatmul.mubr.bf16.gmra.mxu0 %v683
    %v782 = vpop.f32.mrf.mxu0
    %v783 = vadd.f32 0.0, %v782
    %v784 = vpop.f32.mrf.mxu0
    %v785 = vadd.f32 0.0, %v784
    %v786 = vpop.f32.mrf.mxu0
    %v787 = vpop.f32.mrf.mxu0
    %788 = vdwg.mxu0
    %v789 = vpack.c.bf16 %v747, %v747
    %v791 = vsel %vm283, %v789, 0
    %793 = vmatprep.subr.bf16.mxu0 0
    %794 = vmatpush1.bf16.msra.mxu0 0
    %795 = vmatprep.subr.bf16.mxu0 0
    %796 = vmatpush1.bf16.msra.mxu0 0
    %797 = vmatprep.subr.bf16.mxu0 0
    %798 = vmatpush1.bf16.msra.mxu0 0
    %799 = vmatprep.subr.bf16.mxu0 0
    %800 = vmatpush1.bf16.msra.mxu0 0
    %801 = vmatprep.subr.bf16.mxu0 %v359
    %802 = vmatpush1.bf16.msra.mxu0 %v358
    %803 = vmatprep.subr.bf16.mxu0 %v357
    %804 = vmatpush1.bf16.msra.mxu0 %v356
    %805 = vmatprep.subr.bf16.mxu0 %v355
    %806 = vmatpush1.bf16.msra.mxu0 %v354
    %807 = vmatprep.subr.bf16.mxu0 %v353
    %808 = vmatpush1.bf16.msra.mxu0 %v352
    %809 = vmatprep.subr.bf16.mxu0 0
    %810 = vmatpush2.bf16.msra.mxu0 0
    %811 = vmatprep.subr.bf16.mxu0 0
    %812 = vmatpush2.bf16.msra.mxu0 0
    %813 = vmatprep.subr.bf16.mxu0 0
    %814 = vmatpush2.bf16.msra.mxu0 0
    %815 = vmatprep.subr.bf16.mxu0 0
    %816 = vmatpush2.bf16.msra.mxu0 0
    %817 = vmatprep.subr.bf16.mxu0 0
    %818 = vmatpush2.bf16.msra.mxu0 0
    %819 = vmatprep.subr.bf16.mxu0 0
    %820 = vmatpush2.bf16.msra.mxu0 0
    %821 = vmatprep.subr.bf16.mxu0 0
    %822 = vmatpush2.bf16.msra.mxu0 0
    %823 = vmatprep.subr.bf16.mxu0 0
    %824 = vmatpush2.bf16.msra.mxu0 0
    %825 = vmatprep.mubr.bf16.mxu0 0
    %826 = vmatmul.mubr.bf16.gmra.mxu0 %v791
    %v827 = vpop.f32.mrf.mxu0
    %v828 = vadd.f32 0.0, %v827
    %v829 = vpop.f32.mrf.mxu0
    %v830 = vadd.f32 0.0, %v829
    %v831 = vpop.f32.mrf.mxu0
    %v832 = vpop.f32.mrf.mxu0
    %833 = vdwg.mxu0
    %v835 = vrot.slane %v783, 4
    %v837 = vadd.f32 %v206, %v835
    %v838 = vxor.u32 %v837, 2147483648
    %v839 = vmul.f32 %v838, 1.442695
    %v840 = vpow.pop %v839
    %v841 = vadd.f32 %v840, 1.0
    %v842 = vrcp.pop %v841
    %v843 = vmul.f32 1.0, %v842
    %v844 = vadd.f32 %v785, %v420
    %v846 = vrot.slane %v844, 4
    %v848 = vmul.f32 %v843, %v846
    %v849 = vadd.f32 %v208, %v848
    %v850 = vtanh.pop %v849
    %v852 = vrot.slane %v850, 2
    %v854 = vsub.f32 %v678, %v852
    %v856 = vrot.slane %v854, 6
    %857 = vrot.lane.b32.xlu0 %v856, 64
    %v858 = vpop.permute.xlu0 %857
    %v860 = vmul.f32 %v843, %v858
    %862 = vrot.lane.b32.xlu0 %v860, 64
    %v863 = vpop.permute.xlu0 %862
    %v865 = vadd.f32 %v850, %v863
    %v866 = vpack.c.bf16 %v865, %v865
    %v868 = vrot.slane %v866, 2
    %v870 = vsel %vm283, %v868, 0
    %872 = vmatprep.subr.bf16.mxu0 0
    %873 = vmatpush1.bf16.msra.mxu0 0
    %874 = vmatprep.subr.bf16.mxu0 0
    %875 = vmatpush1.bf16.msra.mxu0 0
    %876 = vmatprep.subr.bf16.mxu0 0
    %877 = vmatpush1.bf16.msra.mxu0 0
    %878 = vmatprep.subr.bf16.mxu0 0
    %879 = vmatpush1.bf16.msra.mxu0 0
    %880 = vmatprep.subr.bf16.mxu0 %v480
    %881 = vmatpush1.bf16.msra.mxu0 %v479
    %882 = vmatprep.subr.bf16.mxu0 %v478
    %883 = vmatpush1.bf16.msra.mxu0 %v477
    %884 = vmatprep.subr.bf16.mxu0 %v476
    %885 = vmatpush1.bf16.msra.mxu0 %v475
    %886 = vmatprep.subr.bf16.mxu0 %v474
    %887 = vmatpush1.bf16.msra.mxu0 %v473
    %888 = vmatprep.subr.bf16.mxu0 0
    %889 = vmatpush2.bf16.msra.mxu0 0
    %890 = vmatprep.subr.bf16.mxu0 0
    %891 = vmatpush2.bf16.msra.mxu0 0
    %892 = vmatprep.subr.bf16.mxu0 0
    %893 = vmatpush2.bf16.msra.mxu0 0
    %894 = vmatprep.subr.bf16.mxu0 0
    %895 = vmatpush2.bf16.msra.mxu0 0
    %896 = vmatprep.subr.bf16.mxu0 0
    %897 = vmatpush2.bf16.msra.mxu0 0
    %898 = vmatprep.subr.bf16.mxu0 0
    %899 = vmatpush2.bf16.msra.mxu0 0
    %900 = vmatprep.subr.bf16.mxu0 0
    %901 = vmatpush2.bf16.msra.mxu0 0
    %902 = vmatprep.subr.bf16.mxu0 0
    %903 = vmatpush2.bf16.msra.mxu0 0
    %904 = vmatprep.mubr.bf16.mxu0 0
    %905 = vmatmul.mubr.bf16.gmra.mxu0 %v870
    %v906 = vpop.f32.mrf.mxu0
    %v907 = vadd.f32 %v442, %v906
    %v908 = vpop.f32.mrf.mxu0
    %v909 = vadd.f32 %v446, %v908
    %v910 = vpop.f32.mrf.mxu0
    %v911 = vpop.f32.mrf.mxu0
    %912 = vdwg.mxu0
    %v913 = vadd.f32 %v907, %v828
    %v914 = vxor.u32 %v913, 2147483648
    %v915 = vmul.f32 %v914, 1.442695
    %v916 = vpow.pop %v915
    %v917 = vadd.f32 %v916, 1.0
    %v918 = vrcp.pop %v917
    %v919 = vmul.f32 1.0, %v918
    %v920 = vadd.f32 %v830, %v544
    %v921 = vmul.f32 %v919, %v920
    %v922 = vadd.f32 %v909, %v921
    %v923 = vtanh.pop %v922
    %v924 = vsub.f32 %v747, %v923
    %926 = vrot.lane.b32.xlu0 %v924, 64
    %v927 = vpop.permute.xlu0 %926
    %v929 = vmul.f32 %v919, %v927
    %931 = vrot.lane.b32.xlu0 %v929, 64
    %v932 = vpop.permute.xlu0 %931
    %v934 = vadd.f32 %v923, %v932
    %935 = vmatprep.subr.bf16.mxu0 0
    %936 = vmatpush1.bf16.msra.mxu0 0
    %937 = vmatprep.subr.bf16.mxu0 0
    %938 = vmatpush1.bf16.msra.mxu0 0
    %939 = vmatprep.subr.bf16.mxu0 0
    %940 = vmatpush1.bf16.msra.mxu0 0
    %941 = vmatprep.subr.bf16.mxu0 0
    %942 = vmatpush1.bf16.msra.mxu0 0
    %943 = vmatprep.subr.bf16.mxu0 %v274
    %944 = vmatpush1.bf16.msra.mxu0 %v273
    %945 = vmatprep.subr.bf16.mxu0 %v272
    %946 = vmatpush1.bf16.msra.mxu0 %v271
    %947 = vmatprep.subr.bf16.mxu0 %v270
    %948 = vmatpush1.bf16.msra.mxu0 %v269
    %949 = vmatprep.subr.bf16.mxu0 %v268
    %950 = vmatpush1.bf16.msra.mxu0 %v267
    %951 = vmatprep.subr.bf16.mxu0 0
    %952 = vmatpush2.bf16.msra.mxu0 0
    %953 = vmatprep.subr.bf16.mxu0 0
    %954 = vmatpush2.bf16.msra.mxu0 0
    %955 = vmatprep.subr.bf16.mxu0 0
    %956 = vmatpush2.bf16.msra.mxu0 0
    %957 = vmatprep.subr.bf16.mxu0 0
    %958 = vmatpush2.bf16.msra.mxu0 0
    %959 = vmatprep.subr.bf16.mxu0 0
    %960 = vmatpush2.bf16.msra.mxu0 0
    %961 = vmatprep.subr.bf16.mxu0 0
    %962 = vmatpush2.bf16.msra.mxu0 0
    %963 = vmatprep.subr.bf16.mxu0 0
    %964 = vmatpush2.bf16.msra.mxu0 0
    %965 = vmatprep.subr.bf16.mxu0 0
    %966 = vmatpush2.bf16.msra.mxu0 0
    %967 = vmatprep.mubr.bf16.mxu0 0
    %968 = vmatmul.mubr.bf16.gmra.mxu0 %v870
    %v969 = vpop.f32.mrf.mxu0
    %v970 = vadd.f32 0.0, %v969
    %v971 = vpop.f32.mrf.mxu0
    %v972 = vadd.f32 0.0, %v971
    %v973 = vpop.f32.mrf.mxu0
    %v974 = vpop.f32.mrf.mxu0
    %975 = vdwg.mxu0
    %v976 = vpack.c.bf16 %v934, %v934
    %v978 = vsel %vm283, %v976, 0
    %980 = vmatprep.subr.bf16.mxu0 0
    %981 = vmatpush1.bf16.msra.mxu0 0
    %982 = vmatprep.subr.bf16.mxu0 0
    %983 = vmatpush1.bf16.msra.mxu0 0
    %984 = vmatprep.subr.bf16.mxu0 0
    %985 = vmatpush1.bf16.msra.mxu0 0
    %986 = vmatprep.subr.bf16.mxu0 0
    %987 = vmatpush1.bf16.msra.mxu0 0
    %988 = vmatprep.subr.bf16.mxu0 %v359
    %989 = vmatpush1.bf16.msra.mxu0 %v358
    %990 = vmatprep.subr.bf16.mxu0 %v357
    %991 = vmatpush1.bf16.msra.mxu0 %v356
    %992 = vmatprep.subr.bf16.mxu0 %v355
    %993 = vmatpush1.bf16.msra.mxu0 %v354
    %994 = vmatprep.subr.bf16.mxu0 %v353
    %995 = vmatpush1.bf16.msra.mxu0 %v352
    %996 = vmatprep.subr.bf16.mxu0 0
    %997 = vmatpush2.bf16.msra.mxu0 0
    %998 = vmatprep.subr.bf16.mxu0 0
    %999 = vmatpush2.bf16.msra.mxu0 0
    %1000 = vmatprep.subr.bf16.mxu0 0
    %1001 = vmatpush2.bf16.msra.mxu0 0
    %1002 = vmatprep.subr.bf16.mxu0 0
    %1003 = vmatpush2.bf16.msra.mxu0 0
    %1004 = vmatprep.subr.bf16.mxu0 0
    %1005 = vmatpush2.bf16.msra.mxu0 0
    %1006 = vmatprep.subr.bf16.mxu0 0
    %1007 = vmatpush2.bf16.msra.mxu0 0
    %1008 = vmatprep.subr.bf16.mxu0 0
    %1009 = vmatpush2.bf16.msra.mxu0 0
    %1010 = vmatprep.subr.bf16.mxu0 0
    %1011 = vmatpush2.bf16.msra.mxu0 0
    %1012 = vmatprep.mubr.bf16.mxu0 0
    %1013 = vmatmul.mubr.bf16.gmra.mxu0 %v978
    %v1014 = vpop.f32.mrf.mxu0
    %v1015 = vadd.f32 0.0, %v1014
    %v1016 = vpop.f32.mrf.mxu0
    %v1017 = vadd.f32 0.0, %v1016
    %v1018 = vpop.f32.mrf.mxu0
    %v1019 = vpop.f32.mrf.mxu0
    %1020 = vdwg.mxu0
    %v1022 = vrot.slane %v970, 2
    %v1024 = vadd.f32 %v206, %v1022
    %v1025 = vxor.u32 %v1024, 2147483648
    %v1026 = vmul.f32 %v1025, 1.442695
    %v1027 = vpow.pop %v1026
    %v1028 = vadd.f32 %v1027, 1.0
    %v1029 = vrcp.pop %v1028
    %v1030 = vmul.f32 1.0, %v1029
    %v1031 = vadd.f32 %v972, %v420
    %v1033 = vrot.slane %v1031, 2
    %v1035 = vmul.f32 %v1030, %v1033
    %v1036 = vadd.f32 %v208, %v1035
    %v1037 = vtanh.pop %v1036
    %v1039 = vrot.slane %v1037, 2
    %v1041 = vsub.f32 %v865, %v1039
    %v1043 = vrot.slane %v1041, 6
    %1044 = vrot.lane.b32.xlu0 %v1043, 64
    %v1045 = vpop.permute.xlu0 %1044
    %v1047 = vmul.f32 %v1030, %v1045
    %1049 = vrot.lane.b32.xlu0 %v1047, 64
    %v1050 = vpop.permute.xlu0 %1049
    %v1052 = vadd.f32 %v1037, %v1050
    %v1053 = vpack.c.bf16 %v1052, %v1052
    %v1055 = vrot.slane %v1053, 3
    %v1057 = vsel %vm283, %v1055, 0
    %1059 = vmatprep.subr.bf16.mxu0 0
    %1060 = vmatpush1.bf16.msra.mxu0 0
    %1061 = vmatprep.subr.bf16.mxu0 0
    %1062 = vmatpush1.bf16.msra.mxu0 0
    %1063 = vmatprep.subr.bf16.mxu0 0
    %1064 = vmatpush1.bf16.msra.mxu0 0
    %1065 = vmatprep.subr.bf16.mxu0 0
    %1066 = vmatpush1.bf16.msra.mxu0 0
    %1067 = vmatprep.subr.bf16.mxu0 %v480
    %1068 = vmatpush1.bf16.msra.mxu0 %v479
    %1069 = vmatprep.subr.bf16.mxu0 %v478
    %1070 = vmatpush1.bf16.msra.mxu0 %v477
    %1071 = vmatprep.subr.bf16.mxu0 %v476
    %1072 = vmatpush1.bf16.msra.mxu0 %v475
    %1073 = vmatprep.subr.bf16.mxu0 %v474
    %1074 = vmatpush1.bf16.msra.mxu0 %v473
    %1075 = vmatprep.subr.bf16.mxu0 0
    %1076 = vmatpush2.bf16.msra.mxu0 0
    %1077 = vmatprep.subr.bf16.mxu0 0
    %1078 = vmatpush2.bf16.msra.mxu0 0
    %1079 = vmatprep.subr.bf16.mxu0 0
    %1080 = vmatpush2.bf16.msra.mxu0 0
    %1081 = vmatprep.subr.bf16.mxu0 0
    %1082 = vmatpush2.bf16.msra.mxu0 0
    %1083 = vmatprep.subr.bf16.mxu0 0
    %1084 = vmatpush2.bf16.msra.mxu0 0
    %1085 = vmatprep.subr.bf16.mxu0 0
    %1086 = vmatpush2.bf16.msra.mxu0 0
    %1087 = vmatprep.subr.bf16.mxu0 0
    %1088 = vmatpush2.bf16.msra.mxu0 0
    %1089 = vmatprep.subr.bf16.mxu0 0
    %1090 = vmatpush2.bf16.msra.mxu0 0
    %1091 = vmatprep.mubr.bf16.mxu0 0
    %1092 = vmatmul.mubr.bf16.gmra.mxu0 %v1057
    %v1093 = vpop.f32.mrf.mxu0
    %v1094 = vadd.f32 %v442, %v1093
    %v1095 = vpop.f32.mrf.mxu0
    %v1096 = vadd.f32 %v446, %v1095
    %v1097 = vpop.f32.mrf.mxu0
    %v1098 = vpop.f32.mrf.mxu0
    %1099 = vdwg.mxu0
    %v1100 = vadd.f32 %v1094, %v1015
    %v1101 = vxor.u32 %v1100, 2147483648
    %v1102 = vmul.f32 %v1101, 1.442695
    %v1103 = vpow.pop %v1102
    %v1104 = vadd.f32 %v1103, 1.0
    %v1105 = vrcp.pop %v1104
    %v1106 = vmul.f32 1.0, %v1105
    %v1107 = vadd.f32 %v1017, %v544
    %v1108 = vmul.f32 %v1106, %v1107
    %v1109 = vadd.f32 %v1096, %v1108
    %v1110 = vtanh.pop %v1109
    %v1111 = vsub.f32 %v934, %v1110
    %1113 = vrot.lane.b32.xlu0 %v1111, 64
    %v1114 = vpop.permute.xlu0 %1113
    %v1116 = vmul.f32 %v1106, %v1114
    %1118 = vrot.lane.b32.xlu0 %v1116, 64
    %v1119 = vpop.permute.xlu0 %1118
    %v1121 = vadd.f32 %v1110, %v1119
    %1122 = vmatprep.subr.bf16.mxu0 0
    %1123 = vmatpush1.bf16.msra.mxu0 0
    %1124 = vmatprep.subr.bf16.mxu0 0
    %1125 = vmatpush1.bf16.msra.mxu0 0
    %1126 = vmatprep.subr.bf16.mxu0 0
    %1127 = vmatpush1.bf16.msra.mxu0 0
    %1128 = vmatprep.subr.bf16.mxu0 0
    %1129 = vmatpush1.bf16.msra.mxu0 0
    %1130 = vmatprep.subr.bf16.mxu0 %v274
    %1131 = vmatpush1.bf16.msra.mxu0 %v273
    %1132 = vmatprep.subr.bf16.mxu0 %v272
    %1133 = vmatpush1.bf16.msra.mxu0 %v271
    %1134 = vmatprep.subr.bf16.mxu0 %v270
    %1135 = vmatpush1.bf16.msra.mxu0 %v269
    %1136 = vmatprep.subr.bf16.mxu0 %v268
    %1137 = vmatpush1.bf16.msra.mxu0 %v267
    %1138 = vmatprep.subr.bf16.mxu0 0
    %1139 = vmatpush2.bf16.msra.mxu0 0
    %1140 = vmatprep.subr.bf16.mxu0 0
    %1141 = vmatpush2.bf16.msra.mxu0 0
    %1142 = vmatprep.subr.bf16.mxu0 0
    %1143 = vmatpush2.bf16.msra.mxu0 0
    %1144 = vmatprep.subr.bf16.mxu0 0
    %1145 = vmatpush2.bf16.msra.mxu0 0
    %1146 = vmatprep.subr.bf16.mxu0 0
    %1147 = vmatpush2.bf16.msra.mxu0 0
    %1148 = vmatprep.subr.bf16.mxu0 0
    %1149 = vmatpush2.bf16.msra.mxu0 0
    %1150 = vmatprep.subr.bf16.mxu0 0
    %1151 = vmatpush2.bf16.msra.mxu0 0
    %1152 = vmatprep.subr.bf16.mxu0 0
    %1153 = vmatpush2.bf16.msra.mxu0 0
    %1154 = vmatprep.mubr.bf16.mxu0 0
    %1155 = vmatmul.mubr.bf16.gmra.mxu0 %v1057
    %v1156 = vpop.f32.mrf.mxu0
    %v1157 = vadd.f32 0.0, %v1156
    %v1158 = vpop.f32.mrf.mxu0
    %v1159 = vadd.f32 0.0, %v1158
    %v1160 = vpop.f32.mrf.mxu0
    %v1161 = vpop.f32.mrf.mxu0
    %1162 = vdwg.mxu0
    %v1163 = vpack.c.bf16 %v1121, %v1121
    %v1165 = vsel %vm283, %v1163, 0
    %1167 = vmatprep.subr.bf16.mxu0 0
    %1168 = vmatpush1.bf16.msra.mxu0 0
    %1169 = vmatprep.subr.bf16.mxu0 0
    %1170 = vmatpush1.bf16.msra.mxu0 0
    %1171 = vmatprep.subr.bf16.mxu0 0
    %1172 = vmatpush1.bf16.msra.mxu0 0
    %1173 = vmatprep.subr.bf16.mxu0 0
    %1174 = vmatpush1.bf16.msra.mxu0 0
    %1175 = vmatprep.subr.bf16.mxu0 %v359
    %1176 = vmatpush1.bf16.msra.mxu0 %v358
    %1177 = vmatprep.subr.bf16.mxu0 %v357
    %1178 = vmatpush1.bf16.msra.mxu0 %v356
    %1179 = vmatprep.subr.bf16.mxu0 %v355
    %1180 = vmatpush1.bf16.msra.mxu0 %v354
    %1181 = vmatprep.subr.bf16.mxu0 %v353
    %1182 = vmatpush1.bf16.msra.mxu0 %v352
    %1183 = vmatprep.subr.bf16.mxu0 0
    %1184 = vmatpush2.bf16.msra.mxu0 0
    %1185 = vmatprep.subr.bf16.mxu0 0
    %1186 = vmatpush2.bf16.msra.mxu0 0
    %1187 = vmatprep.subr.bf16.mxu0 0
    %1188 = vmatpush2.bf16.msra.mxu0 0
    %1189 = vmatprep.subr.bf16.mxu0 0
    %1190 = vmatpush2.bf16.msra.mxu0 0
    %1191 = vmatprep.subr.bf16.mxu0 0
    %1192 = vmatpush2.bf16.msra.mxu0 0
    %1193 = vmatprep.subr.bf16.mxu0 0
    %1194 = vmatpush2.bf16.msra.mxu0 0
    %1195 = vmatprep.subr.bf16.mxu0 0
    %1196 = vmatpush2.bf16.msra.mxu0 0
    %1197 = vmatprep.subr.bf16.mxu0 0
    %1198 = vmatpush2.bf16.msra.mxu0 0
    %1199 = vmatprep.mubr.bf16.mxu0 0
    %1200 = vmatmul.mubr.bf16.gmra.mxu0 %v1165
    %v1201 = vpop.f32.mrf.mxu0
    %v1202 = vadd.f32 0.0, %v1201
    %v1203 = vpop.f32.mrf.mxu0
    %v1204 = vadd.f32 0.0, %v1203
    %v1205 = vpop.f32.mrf.mxu0
    %v1206 = vpop.f32.mrf.mxu0
    %1207 = vdwg.mxu0
    %v1208 = vadd.f32 %v212, %v1157
    %v1209 = vxor.u32 %v1208, 2147483648
    %v1210 = vmul.f32 %v1209, 1.442695
    %v1211 = vpow.pop %v1210
    %v1212 = vadd.f32 %v1211, 1.0
    %v1213 = vrcp.pop %v1212
    %v1214 = vmul.f32 1.0, %v1213
    %v1215 = vadd.f32 %v1159, %v420
    %v1216 = vmul.f32 %v1214, %v1215
    %v1217 = vadd.f32 %v214, %v1216
    %v1218 = vtanh.pop %v1217
    %v1220 = vrot.slane %v1218, 2
    %v1222 = vsub.f32 %v1052, %v1220
    %v1224 = vrot.slane %v1222, 6
    %1225 = vrot.lane.b32.xlu0 %v1224, 64
    %v1226 = vpop.permute.xlu0 %1225
    %v1228 = vmul.f32 %v1214, %v1226
    %1230 = vrot.lane.b32.xlu0 %v1228, 64
    %v1231 = vpop.permute.xlu0 %1230
    %v1233 = vadd.f32 %v1218, %v1231
    %v1234 = vpack.c.bf16 %v1233, %v1233
    %v1236 = vsel %vm283, %v1234, 0
    %1238 = vmatprep.subr.bf16.mxu0 0
    %1239 = vmatpush1.bf16.msra.mxu0 0
    %1240 = vmatprep.subr.bf16.mxu0 0
    %1241 = vmatpush1.bf16.msra.mxu0 0
    %1242 = vmatprep.subr.bf16.mxu0 0
    %1243 = vmatpush1.bf16.msra.mxu0 0
    %1244 = vmatprep.subr.bf16.mxu0 0
    %1245 = vmatpush1.bf16.msra.mxu0 0
    %1246 = vmatprep.subr.bf16.mxu0 %v480
    %1247 = vmatpush1.bf16.msra.mxu0 %v479
    %1248 = vmatprep.subr.bf16.mxu0 %v478
    %1249 = vmatpush1.bf16.msra.mxu0 %v477
    %1250 = vmatprep.subr.bf16.mxu0 %v476
    %1251 = vmatpush1.bf16.msra.mxu0 %v475
    %1252 = vmatprep.subr.bf16.mxu0 %v474
    %1253 = vmatpush1.bf16.msra.mxu0 %v473
    %1254 = vmatprep.subr.bf16.mxu0 0
    %1255 = vmatpush2.bf16.msra.mxu0 0
    %1256 = vmatprep.subr.bf16.mxu0 0
    %1257 = vmatpush2.bf16.msra.mxu0 0
    %1258 = vmatprep.subr.bf16.mxu0 0
    %1259 = vmatpush2.bf16.msra.mxu0 0
    %1260 = vmatprep.subr.bf16.mxu0 0
    %1261 = vmatpush2.bf16.msra.mxu0 0
    %1262 = vmatprep.subr.bf16.mxu0 0
    %1263 = vmatpush2.bf16.msra.mxu0 0
    %1264 = vmatprep.subr.bf16.mxu0 0
    %1265 = vmatpush2.bf16.msra.mxu0 0
    %1266 = vmatprep.subr.bf16.mxu0 0
    %1267 = vmatpush2.bf16.msra.mxu0 0
    %1268 = vmatprep.subr.bf16.mxu0 0
    %1269 = vmatpush2.bf16.msra.mxu0 0
    %1270 = vmatprep.mubr.bf16.mxu0 0
    %1271 = vmatmul.mubr.bf16.gmra.mxu0 %v1236
    %v1272 = vpop.f32.mrf.mxu0
    %v1273 = vadd.f32 %v442, %v1272
    %v1274 = vpop.f32.mrf.mxu0
    %v1275 = vadd.f32 %v446, %v1274
    %v1276 = vpop.f32.mrf.mxu0
    %v1277 = vpop.f32.mrf.mxu0
    %1278 = vdwg.mxu0
    %v1279 = vadd.f32 %v1273, %v1202
    %v1280 = vxor.u32 %v1279, 2147483648
    %v1281 = vmul.f32 %v1280, 1.442695
    %v1282 = vpow.pop %v1281
    %v1283 = vadd.f32 %v1282, 1.0
    %v1284 = vrcp.pop %v1283
    %v1285 = vmul.f32 1.0, %v1284
    %v1286 = vadd.f32 %v1204, %v544
    %v1287 = vmul.f32 %v1285, %v1286
    %v1288 = vadd.f32 %v1275, %v1287
    %v1289 = vtanh.pop %v1288
    %v1290 = vsub.f32 %v1121, %v1289
    %1292 = vrot.lane.b32.xlu0 %v1290, 64
    %v1293 = vpop.permute.xlu0 %1292
    %v1295 = vmul.f32 %v1285, %v1293
    %1297 = vrot.lane.b32.xlu0 %v1295, 64
    %v1298 = vpop.permute.xlu0 %1297
    %v1300 = vadd.f32 %v1289, %v1298
    %1301 = vmatprep.subr.bf16.mxu0 0
    %1302 = vmatpush1.bf16.msra.mxu0 0
    %1303 = vmatprep.subr.bf16.mxu0 0
    %1304 = vmatpush1.bf16.msra.mxu0 0
    %1305 = vmatprep.subr.bf16.mxu0 0
    %1306 = vmatpush1.bf16.msra.mxu0 0
    %1307 = vmatprep.subr.bf16.mxu0 0
    %1308 = vmatpush1.bf16.msra.mxu0 0
    %1309 = vmatprep.subr.bf16.mxu0 %v274
    %1310 = vmatpush1.bf16.msra.mxu0 %v273
    %1311 = vmatprep.subr.bf16.mxu0 %v272
    %1312 = vmatpush1.bf16.msra.mxu0 %v271
    %1313 = vmatprep.subr.bf16.mxu0 %v270
    %1314 = vmatpush1.bf16.msra.mxu0 %v269
    %1315 = vmatprep.subr.bf16.mxu0 %v268
    %1316 = vmatpush1.bf16.msra.mxu0 %v267
    %1317 = vmatprep.subr.bf16.mxu0 0
    %1318 = vmatpush2.bf16.msra.mxu0 0
    %1319 = vmatprep.subr.bf16.mxu0 0
    %1320 = vmatpush2.bf16.msra.mxu0 0
    %1321 = vmatprep.subr.bf16.mxu0 0
    %1322 = vmatpush2.bf16.msra.mxu0 0
    %1323 = vmatprep.subr.bf16.mxu0 0
    %1324 = vmatpush2.bf16.msra.mxu0 0
    %1325 = vmatprep.subr.bf16.mxu0 0
    %1326 = vmatpush2.bf16.msra.mxu0 0
    %1327 = vmatprep.subr.bf16.mxu0 0
    %1328 = vmatpush2.bf16.msra.mxu0 0
    %1329 = vmatprep.subr.bf16.mxu0 0
    %1330 = vmatpush2.bf16.msra.mxu0 0
    %1331 = vmatprep.subr.bf16.mxu0 0
    %1332 = vmatpush2.bf16.msra.mxu0 0
    %1333 = vmatprep.mubr.bf16.mxu0 0
    %1334 = vmatmul.mubr.bf16.gmra.mxu0 %v1236
    %v1335 = vpop.f32.mrf.mxu0
    %v1336 = vadd.f32 0.0, %v1335
    %v1337 = vpop.f32.mrf.mxu0
    %v1338 = vadd.f32 0.0, %v1337
    %v1339 = vpop.f32.mrf.mxu0
    %v1340 = vpop.f32.mrf.mxu0
    %1341 = vdwg.mxu0
    %v1342 = vpack.c.bf16 %v1300, %v1300
    %v1344 = vsel %vm283, %v1342, 0
    %1346 = vmatprep.subr.bf16.mxu0 0
    %1347 = vmatpush1.bf16.msra.mxu0 0
    %1348 = vmatprep.subr.bf16.mxu0 0
    %1349 = vmatpush1.bf16.msra.mxu0 0
    %1350 = vmatprep.subr.bf16.mxu0 0
    %1351 = vmatpush1.bf16.msra.mxu0 0
    %1352 = vmatprep.subr.bf16.mxu0 0
    %1353 = vmatpush1.bf16.msra.mxu0 0
    %1354 = vmatprep.subr.bf16.mxu0 %v359
    %1355 = vmatpush1.bf16.msra.mxu0 %v358
    %1356 = vmatprep.subr.bf16.mxu0 %v357
    %1357 = vmatpush1.bf16.msra.mxu0 %v356
    %1358 = vmatprep.subr.bf16.mxu0 %v355
    %1359 = vmatpush1.bf16.msra.mxu0 %v354
    %1360 = vmatprep.subr.bf16.mxu0 %v353
    %1361 = vmatpush1.bf16.msra.mxu0 %v352
    %1362 = vmatprep.subr.bf16.mxu0 0
    %1363 = vmatpush2.bf16.msra.mxu0 0
    %1364 = vmatprep.subr.bf16.mxu0 0
    %1365 = vmatpush2.bf16.msra.mxu0 0
    %1366 = vmatprep.subr.bf16.mxu0 0
    %1367 = vmatpush2.bf16.msra.mxu0 0
    %1368 = vmatprep.subr.bf16.mxu0 0
    %1369 = vmatpush2.bf16.msra.mxu0 0
    %1370 = vmatprep.subr.bf16.mxu0 0
    %1371 = vmatpush2.bf16.msra.mxu0 0
    %1372 = vmatprep.subr.bf16.mxu0 0
    %1373 = vmatpush2.bf16.msra.mxu0 0
    %1374 = vmatprep.subr.bf16.mxu0 0
    %1375 = vmatpush2.bf16.msra.mxu0 0
    %1376 = vmatprep.subr.bf16.mxu0 0
    %1377 = vmatpush2.bf16.msra.mxu0 0
    %1378 = vmatprep.mubr.bf16.mxu0 0
    %1379 = vmatmul.mubr.bf16.gmra.mxu0 %v1344
    %v1380 = vpop.f32.mrf.mxu0
    %v1381 = vadd.f32 0.0, %v1380
    %v1382 = vpop.f32.mrf.mxu0
    %v1383 = vadd.f32 0.0, %v1382
    %v1384 = vpop.f32.mrf.mxu0
    %v1385 = vpop.f32.mrf.mxu0
    %1386 = vdwg.mxu0
    %v1388 = vrot.slane %v1336, 6
    %v1390 = vadd.f32 %v212, %v1388
    %v1391 = vxor.u32 %v1390, 2147483648
    %v1392 = vmul.f32 %v1391, 1.442695
    %v1393 = vpow.pop %v1392
    %v1394 = vadd.f32 %v1393, 1.0
    %v1395 = vrcp.pop %v1394
    %v1396 = vmul.f32 1.0, %v1395
    %v1397 = vadd.f32 %v1338, %v420
    %v1399 = vrot.slane %v1397, 6
    %v1401 = vmul.f32 %v1396, %v1399
    %v1402 = vadd.f32 %v214, %v1401
    %v1403 = vtanh.pop %v1402
    %v1405 = vrot.slane %v1403, 2
    %v1407 = vsub.f32 %v1233, %v1405
    %v1409 = vrot.slane %v1407, 6
    %1410 = vrot.lane.b32.xlu0 %v1409, 64
    %v1411 = vpop.permute.xlu0 %1410
    %v1413 = vmul.f32 %v1396, %v1411
    %1415 = vrot.lane.b32.xlu0 %v1413, 64
    %v1416 = vpop.permute.xlu0 %1415
    %v1418 = vadd.f32 %v1403, %v1416
    %v1419 = vpack.c.bf16 %v1418, %v1418
    %v1421 = vrot.slane %v1419, 1
    %v1423 = vsel %vm283, %v1421, 0
    %1425 = vmatprep.subr.bf16.mxu0 0
    %1426 = vmatpush1.bf16.msra.mxu0 0
    %1427 = vmatprep.subr.bf16.mxu0 0
    %1428 = vmatpush1.bf16.msra.mxu0 0
    %1429 = vmatprep.subr.bf16.mxu0 0
    %1430 = vmatpush1.bf16.msra.mxu0 0
    %1431 = vmatprep.subr.bf16.mxu0 0
    %1432 = vmatpush1.bf16.msra.mxu0 0
    %1433 = vmatprep.subr.bf16.mxu0 %v480
    %1434 = vmatpush1.bf16.msra.mxu0 %v479
    %1435 = vmatprep.subr.bf16.mxu0 %v478
    %1436 = vmatpush1.bf16.msra.mxu0 %v477
    %1437 = vmatprep.subr.bf16.mxu0 %v476
    %1438 = vmatpush1.bf16.msra.mxu0 %v475
    %1439 = vmatprep.subr.bf16.mxu0 %v474
    %1440 = vmatpush1.bf16.msra.mxu0 %v473
    %1441 = vmatprep.subr.bf16.mxu0 0
    %1442 = vmatpush2.bf16.msra.mxu0 0
    %1443 = vmatprep.subr.bf16.mxu0 0
    %1444 = vmatpush2.bf16.msra.mxu0 0
    %1445 = vmatprep.subr.bf16.mxu0 0
    %1446 = vmatpush2.bf16.msra.mxu0 0
    %1447 = vmatprep.subr.bf16.mxu0 0
    %1448 = vmatpush2.bf16.msra.mxu0 0
    %1449 = vmatprep.subr.bf16.mxu0 0
    %1450 = vmatpush2.bf16.msra.mxu0 0
    %1451 = vmatprep.subr.bf16.mxu0 0
    %1452 = vmatpush2.bf16.msra.mxu0 0
    %1453 = vmatprep.subr.bf16.mxu0 0
    %1454 = vmatpush2.bf16.msra.mxu0 0
    %1455 = vmatprep.subr.bf16.mxu0 0
    %1456 = vmatpush2.bf16.msra.mxu0 0
    %1457 = vmatprep.mubr.bf16.mxu0 0
    %1458 = vmatmul.mubr.bf16.gmra.mxu0 %v1423
    %v1459 = vpop.f32.mrf.mxu0
    %v1460 = vadd.f32 %v442, %v1459
    %v1461 = vpop.f32.mrf.mxu0
    %v1462 = vadd.f32 %v446, %v1461
    %v1463 = vpop.f32.mrf.mxu0
    %v1464 = vpop.f32.mrf.mxu0
    %1465 = vdwg.mxu0
    %v1466 = vadd.f32 %v1460, %v1381
    %v1467 = vxor.u32 %v1466, 2147483648
    %v1468 = vmul.f32 %v1467, 1.442695
    %v1469 = vpow.pop %v1468
    %v1470 = vadd.f32 %v1469, 1.0
    %v1471 = vrcp.pop %v1470
    %v1472 = vmul.f32 1.0, %v1471
    %v1473 = vadd.f32 %v1383, %v544
    %v1474 = vmul.f32 %v1472, %v1473
    %v1475 = vadd.f32 %v1462, %v1474
    %v1476 = vtanh.pop %v1475
    %v1477 = vsub.f32 %v1300, %v1476
    %1479 = vrot.lane.b32.xlu0 %v1477, 64
    %v1480 = vpop.permute.xlu0 %1479
    %v1482 = vmul.f32 %v1472, %v1480
    %1484 = vrot.lane.b32.xlu0 %v1482, 64
    %v1485 = vpop.permute.xlu0 %1484
    %v1487 = vadd.f32 %v1476, %v1485
    %1488 = vmatprep.subr.bf16.mxu0 0
    %1489 = vmatpush1.bf16.msra.mxu0 0
    %1490 = vmatprep.subr.bf16.mxu0 0
    %1491 = vmatpush1.bf16.msra.mxu0 0
    %1492 = vmatprep.subr.bf16.mxu0 0
    %1493 = vmatpush1.bf16.msra.mxu0 0
    %1494 = vmatprep.subr.bf16.mxu0 0
    %1495 = vmatpush1.bf16.msra.mxu0 0
    %1496 = vmatprep.subr.bf16.mxu0 %v274
    %1497 = vmatpush1.bf16.msra.mxu0 %v273
    %1498 = vmatprep.subr.bf16.mxu0 %v272
    %1499 = vmatpush1.bf16.msra.mxu0 %v271
    %1500 = vmatprep.subr.bf16.mxu0 %v270
    %1501 = vmatpush1.bf16.msra.mxu0 %v269
    %1502 = vmatprep.subr.bf16.mxu0 %v268
    %1503 = vmatpush1.bf16.msra.mxu0 %v267
    %1504 = vmatprep.subr.bf16.mxu0 0
    %1505 = vmatpush2.bf16.msra.mxu0 0
    %1506 = vmatprep.subr.bf16.mxu0 0
    %1507 = vmatpush2.bf16.msra.mxu0 0
    %1508 = vmatprep.subr.bf16.mxu0 0
    %1509 = vmatpush2.bf16.msra.mxu0 0
    %1510 = vmatprep.subr.bf16.mxu0 0
    %1511 = vmatpush2.bf16.msra.mxu0 0
    %1512 = vmatprep.subr.bf16.mxu0 0
    %1513 = vmatpush2.bf16.msra.mxu0 0
    %1514 = vmatprep.subr.bf16.mxu0 0
    %1515 = vmatpush2.bf16.msra.mxu0 0
    %1516 = vmatprep.subr.bf16.mxu0 0
    %1517 = vmatpush2.bf16.msra.mxu0 0
    %1518 = vmatprep.subr.bf16.mxu0 0
    %1519 = vmatpush2.bf16.msra.mxu0 0
    %1520 = vmatprep.mubr.bf16.mxu0 0
    %1521 = vmatmul.mubr.bf16.gmra.mxu0 %v1423
    %v1522 = vpop.f32.mrf.mxu0
    %v1523 = vadd.f32 0.0, %v1522
    %v1524 = vpop.f32.mrf.mxu0
    %v1525 = vadd.f32 0.0, %v1524
    %v1526 = vpop.f32.mrf.mxu0
    %v1527 = vpop.f32.mrf.mxu0
    %1528 = vdwg.mxu0
    %v1529 = vpack.c.bf16 %v1487, %v1487
    %v1531 = vsel %vm283, %v1529, 0
    %1533 = vmatprep.subr.bf16.mxu0 0
    %1534 = vmatpush1.bf16.msra.mxu0 0
    %1535 = vmatprep.subr.bf16.mxu0 0
    %1536 = vmatpush1.bf16.msra.mxu0 0
    %1537 = vmatprep.subr.bf16.mxu0 0
    %1538 = vmatpush1.bf16.msra.mxu0 0
    %1539 = vmatprep.subr.bf16.mxu0 0
    %1540 = vmatpush1.bf16.msra.mxu0 0
    %1541 = vmatprep.subr.bf16.mxu0 %v359
    %1542 = vmatpush1.bf16.msra.mxu0 %v358
    %1543 = vmatprep.subr.bf16.mxu0 %v357
    %1544 = vmatpush1.bf16.msra.mxu0 %v356
    %1545 = vmatprep.subr.bf16.mxu0 %v355
    %1546 = vmatpush1.bf16.msra.mxu0 %v354
    %1547 = vmatprep.subr.bf16.mxu0 %v353
    %1548 = vmatpush1.bf16.msra.mxu0 %v352
    %1549 = vmatprep.subr.bf16.mxu0 0
    %1550 = vmatpush2.bf16.msra.mxu0 0
    %1551 = vmatprep.subr.bf16.mxu0 0
    %1552 = vmatpush2.bf16.msra.mxu0 0
    %1553 = vmatprep.subr.bf16.mxu0 0
    %1554 = vmatpush2.bf16.msra.mxu0 0
    %1555 = vmatprep.subr.bf16.mxu0 0
    %1556 = vmatpush2.bf16.msra.mxu0 0
    %1557 = vmatprep.subr.bf16.mxu0 0
    %1558 = vmatpush2.bf16.msra.mxu0 0
    %1559 = vmatprep.subr.bf16.mxu0 0
    %1560 = vmatpush2.bf16.msra.mxu0 0
    %1561 = vmatprep.subr.bf16.mxu0 0
    %1562 = vmatpush2.bf16.msra.mxu0 0
    %1563 = vmatprep.subr.bf16.mxu0 0
    %1564 = vmatpush2.bf16.msra.mxu0 0
    %1565 = vmatprep.mubr.bf16.mxu0 0
    %1566 = vmatmul.mubr.bf16.gmra.mxu0 %v1531
    %v1567 = vpop.f32.mrf.mxu0
    %v1568 = vadd.f32 0.0, %v1567
    %v1569 = vpop.f32.mrf.mxu0
    %v1570 = vadd.f32 0.0, %v1569
    %v1571 = vpop.f32.mrf.mxu0
    %v1572 = vpop.f32.mrf.mxu0
    %1573 = vdwg.mxu0
    %v1575 = vrot.slane %v1523, 4
    %v1577 = vadd.f32 %v212, %v1575
    %v1578 = vxor.u32 %v1577, 2147483648
    %v1579 = vmul.f32 %v1578, 1.442695
    %v1580 = vpow.pop %v1579
    %v1581 = vadd.f32 %v1580, 1.0
    %v1582 = vrcp.pop %v1581
    %v1583 = vmul.f32 1.0, %v1582
    %v1584 = vadd.f32 %v1525, %v420
    %v1586 = vrot.slane %v1584, 4
    %v1588 = vmul.f32 %v1583, %v1586
    %v1589 = vadd.f32 %v214, %v1588
    %v1590 = vtanh.pop %v1589
    %v1592 = vrot.slane %v1590, 2
    %v1594 = vsub.f32 %v1418, %v1592
    %v1596 = vrot.slane %v1594, 6
    %1597 = vrot.lane.b32.xlu0 %v1596, 64
    %v1598 = vpop.permute.xlu0 %1597
    %v1600 = vmul.f32 %v1583, %v1598
    %1602 = vrot.lane.b32.xlu0 %v1600, 64
    %v1603 = vpop.permute.xlu0 %1602
    %v1605 = vadd.f32 %v1590, %v1603
    %v1606 = vpack.c.bf16 %v1605, %v1605
    %v1608 = vrot.slane %v1606, 2
    %v1610 = vsel %vm283, %v1608, 0
    %1612 = vmatprep.subr.bf16.mxu0 0
    %1613 = vmatpush1.bf16.msra.mxu0 0
    %1614 = vmatprep.subr.bf16.mxu0 0
    %1615 = vmatpush1.bf16.msra.mxu0 0
    %1616 = vmatprep.subr.bf16.mxu0 0
    %1617 = vmatpush1.bf16.msra.mxu0 0
    %1618 = vmatprep.subr.bf16.mxu0 0
    %1619 = vmatpush1.bf16.msra.mxu0 0
    %1620 = vmatprep.subr.bf16.mxu0 %v480
    %1621 = vmatpush1.bf16.msra.mxu0 %v479
    %1622 = vmatprep.subr.bf16.mxu0 %v478
    %1623 = vmatpush1.bf16.msra.mxu0 %v477
    %1624 = vmatprep.subr.bf16.mxu0 %v476
    %1625 = vmatpush1.bf16.msra.mxu0 %v475
    %1626 = vmatprep.subr.bf16.mxu0 %v474
    %1627 = vmatpush1.bf16.msra.mxu0 %v473
    %1628 = vmatprep.subr.bf16.mxu0 0
    %1629 = vmatpush2.bf16.msra.mxu0 0
    %1630 = vmatprep.subr.bf16.mxu0 0
    %1631 = vmatpush2.bf16.msra.mxu0 0
    %1632 = vmatprep.subr.bf16.mxu0 0
    %1633 = vmatpush2.bf16.msra.mxu0 0
    %1634 = vmatprep.subr.bf16.mxu0 0
    %1635 = vmatpush2.bf16.msra.mxu0 0
    %1636 = vmatprep.subr.bf16.mxu0 0
    %1637 = vmatpush2.bf16.msra.mxu0 0
    %1638 = vmatprep.subr.bf16.mxu0 0
    %1639 = vmatpush2.bf16.msra.mxu0 0
    %1640 = vmatprep.subr.bf16.mxu0 0
    %1641 = vmatpush2.bf16.msra.mxu0 0
    %1642 = vmatprep.subr.bf16.mxu0 0
    %1643 = vmatpush2.bf16.msra.mxu0 0
    %1644 = vmatprep.mubr.bf16.mxu0 0
    %1645 = vmatmul.mubr.bf16.gmra.mxu0 %v1610
    %v1646 = vpop.f32.mrf.mxu0
    %v1647 = vadd.f32 %v442, %v1646
    %v1648 = vpop.f32.mrf.mxu0
    %v1649 = vadd.f32 %v446, %v1648
    %v1650 = vpop.f32.mrf.mxu0
    %v1651 = vpop.f32.mrf.mxu0
    %1652 = vdwg.mxu0
    %v1653 = vadd.f32 %v1647, %v1568
    %v1654 = vxor.u32 %v1653, 2147483648
    %v1655 = vmul.f32 %v1654, 1.442695
    %v1656 = vpow.pop %v1655
    %v1657 = vadd.f32 %v1656, 1.0
    %v1658 = vrcp.pop %v1657
    %v1659 = vmul.f32 1.0, %v1658
    %v1660 = vadd.f32 %v1570, %v544
    %v1661 = vmul.f32 %v1659, %v1660
    %v1662 = vadd.f32 %v1649, %v1661
    %v1663 = vtanh.pop %v1662
    %v1664 = vsub.f32 %v1487, %v1663
    %1666 = vrot.lane.b32.xlu0 %v1664, 64
    %v1667 = vpop.permute.xlu0 %1666
    %v1669 = vmul.f32 %v1659, %v1667
    %1671 = vrot.lane.b32.xlu0 %v1669, 64
    %v1672 = vpop.permute.xlu0 %1671
    %v1674 = vadd.f32 %v1663, %v1672
    %1675 = vmatprep.subr.bf16.mxu0 0
    %1676 = vmatpush1.bf16.msra.mxu0 0
    %1677 = vmatprep.subr.bf16.mxu0 0
    %1678 = vmatpush1.bf16.msra.mxu0 0
    %1679 = vmatprep.subr.bf16.mxu0 0
    %1680 = vmatpush1.bf16.msra.mxu0 0
    %1681 = vmatprep.subr.bf16.mxu0 0
    %1682 = vmatpush1.bf16.msra.mxu0 0
    %1683 = vmatprep.subr.bf16.mxu0 %v274
    %1684 = vmatpush1.bf16.msra.mxu0 %v273
    %1685 = vmatprep.subr.bf16.mxu0 %v272
    %1686 = vmatpush1.bf16.msra.mxu0 %v271
    %1687 = vmatprep.subr.bf16.mxu0 %v270
    %1688 = vmatpush1.bf16.msra.mxu0 %v269
    %1689 = vmatprep.subr.bf16.mxu0 %v268
    %1690 = vmatpush1.bf16.msra.mxu0 %v267
    %1691 = vmatprep.subr.bf16.mxu0 0
    %1692 = vmatpush2.bf16.msra.mxu0 0
    %1693 = vmatprep.subr.bf16.mxu0 0
    %1694 = vmatpush2.bf16.msra.mxu0 0
    %1695 = vmatprep.subr.bf16.mxu0 0
    %1696 = vmatpush2.bf16.msra.mxu0 0
    %1697 = vmatprep.subr.bf16.mxu0 0
    %1698 = vmatpush2.bf16.msra.mxu0 0
    %1699 = vmatprep.subr.bf16.mxu0 0
    %1700 = vmatpush2.bf16.msra.mxu0 0
    %1701 = vmatprep.subr.bf16.mxu0 0
    %1702 = vmatpush2.bf16.msra.mxu0 0
    %1703 = vmatprep.subr.bf16.mxu0 0
    %1704 = vmatpush2.bf16.msra.mxu0 0
    %1705 = vmatprep.subr.bf16.mxu0 0
    %1706 = vmatpush2.bf16.msra.mxu0 0
    %1707 = vmatprep.mubr.bf16.mxu0 0
    %1708 = vmatmul.mubr.bf16.gmra.mxu0 %v1610
    %v1709 = vpop.f32.mrf.mxu0
    %v1710 = vadd.f32 0.0, %v1709
    %v1711 = vpop.f32.mrf.mxu0
    %v1712 = vadd.f32 0.0, %v1711
    %v1713 = vpop.f32.mrf.mxu0
    %v1714 = vpop.f32.mrf.mxu0
    %1715 = vdwg.mxu0
    %v1716 = vpack.c.bf16 %v1674, %v1674
    %v1718 = vsel %vm283, %v1716, 0
    %1720 = vmatprep.subr.bf16.mxu0 0
    %1721 = vmatpush1.bf16.msra.mxu0 0
    %1722 = vmatprep.subr.bf16.mxu0 0
    %1723 = vmatpush1.bf16.msra.mxu0 0
    %1724 = vmatprep.subr.bf16.mxu0 0
    %1725 = vmatpush1.bf16.msra.mxu0 0
    %1726 = vmatprep.subr.bf16.mxu0 0
    %1727 = vmatpush1.bf16.msra.mxu0 0
    %1728 = vmatprep.subr.bf16.mxu0 %v359
    %1729 = vmatpush1.bf16.msra.mxu0 %v358
    %1730 = vmatprep.subr.bf16.mxu0 %v357
    %1731 = vmatpush1.bf16.msra.mxu0 %v356
    %1732 = vmatprep.subr.bf16.mxu0 %v355
    %1733 = vmatpush1.bf16.msra.mxu0 %v354
    %1734 = vmatprep.subr.bf16.mxu0 %v353
    %1735 = vmatpush1.bf16.msra.mxu0 %v352
    %1736 = vmatprep.subr.bf16.mxu0 0
    %1737 = vmatpush2.bf16.msra.mxu0 0
    %1738 = vmatprep.subr.bf16.mxu0 0
    %1739 = vmatpush2.bf16.msra.mxu0 0
    %1740 = vmatprep.subr.bf16.mxu0 0
    %1741 = vmatpush2.bf16.msra.mxu0 0
    %1742 = vmatprep.subr.bf16.mxu0 0
    %1743 = vmatpush2.bf16.msra.mxu0 0
    %1744 = vmatprep.subr.bf16.mxu0 0
    %1745 = vmatpush2.bf16.msra.mxu0 0
    %1746 = vmatprep.subr.bf16.mxu0 0
    %1747 = vmatpush2.bf16.msra.mxu0 0
    %1748 = vmatprep.subr.bf16.mxu0 0
    %1749 = vmatpush2.bf16.msra.mxu0 0
    %1750 = vmatprep.subr.bf16.mxu0 0
    %1751 = vmatpush2.bf16.msra.mxu0 0
    %1752 = vmatprep.mubr.bf16.mxu0 0
    %1753 = vmatmul.mubr.bf16.gmra.mxu0 %v1718
    %v1754 = vpop.f32.mrf.mxu0
    %v1755 = vadd.f32 0.0, %v1754
    %v1756 = vpop.f32.mrf.mxu0
    %v1757 = vadd.f32 0.0, %v1756
    %v1758 = vpop.f32.mrf.mxu0
    %v1759 = vpop.f32.mrf.mxu0
    %1760 = vdwg.mxu0
    %v1762 = vrot.slane %v1710, 2
    %v1764 = vadd.f32 %v212, %v1762
    %v1765 = vxor.u32 %v1764, 2147483648
    %v1766 = vmul.f32 %v1765, 1.442695
    %v1767 = vpow.pop %v1766
    %v1768 = vadd.f32 %v1767, 1.0
    %v1769 = vrcp.pop %v1768
    %v1770 = vmul.f32 1.0, %v1769
    %v1771 = vadd.f32 %v1712, %v420
    %v1773 = vrot.slane %v1771, 2
    %v1775 = vmul.f32 %v1770, %v1773
    %v1776 = vadd.f32 %v214, %v1775
    %v1777 = vtanh.pop %v1776
    %v1779 = vrot.slane %v1777, 2
    %v1781 = vsub.f32 %v1605, %v1779
    %v1783 = vrot.slane %v1781, 6
    %1784 = vrot.lane.b32.xlu0 %v1783, 64
    %v1785 = vpop.permute.xlu0 %1784
    %v1787 = vmul.f32 %v1770, %v1785
    %1789 = vrot.lane.b32.xlu0 %v1787, 64
    %v1790 = vpop.permute.xlu0 %1789
    %v1792 = vadd.f32 %v1777, %v1790
    %v1793 = vpack.c.bf16 %v1792, %v1792
    %v1795 = vrot.slane %v1793, 3
    %v1797 = vsel %vm283, %v1795, 0
    %1799 = vmatprep.subr.bf16.mxu0 0
    %1800 = vmatpush1.bf16.msra.mxu0 0
    %1801 = vmatprep.subr.bf16.mxu0 0
    %1802 = vmatpush1.bf16.msra.mxu0 0
    %1803 = vmatprep.subr.bf16.mxu0 0
    %1804 = vmatpush1.bf16.msra.mxu0 0
    %1805 = vmatprep.subr.bf16.mxu0 0
    %1806 = vmatpush1.bf16.msra.mxu0 0
    %1807 = vmatprep.subr.bf16.mxu0 %v480
    %1808 = vmatpush1.bf16.msra.mxu0 %v479
    %1809 = vmatprep.subr.bf16.mxu0 %v478
    %1810 = vmatpush1.bf16.msra.mxu0 %v477
    %1811 = vmatprep.subr.bf16.mxu0 %v476
    %1812 = vmatpush1.bf16.msra.mxu0 %v475
    %1813 = vmatprep.subr.bf16.mxu0 %v474
    %1814 = vmatpush1.bf16.msra.mxu0 %v473
    %1815 = vmatprep.subr.bf16.mxu0 0
    %1816 = vmatpush2.bf16.msra.mxu0 0
    %1817 = vmatprep.subr.bf16.mxu0 0
    %1818 = vmatpush2.bf16.msra.mxu0 0
    %1819 = vmatprep.subr.bf16.mxu0 0
    %1820 = vmatpush2.bf16.msra.mxu0 0
    %1821 = vmatprep.subr.bf16.mxu0 0
    %1822 = vmatpush2.bf16.msra.mxu0 0
    %1823 = vmatprep.subr.bf16.mxu0 0
    %1824 = vmatpush2.bf16.msra.mxu0 0
    %1825 = vmatprep.subr.bf16.mxu0 0
    %1826 = vmatpush2.bf16.msra.mxu0 0
    %1827 = vmatprep.subr.bf16.mxu0 0
    %1828 = vmatpush2.bf16.msra.mxu0 0
    %1829 = vmatprep.subr.bf16.mxu0 0
    %1830 = vmatpush2.bf16.msra.mxu0 0
    %1831 = vmatprep.mubr.bf16.mxu0 0
    %1832 = vmatmul.mubr.bf16.gmra.mxu0 %v1797
    %v1833 = vpop.f32.mrf.mxu0
    %v1834 = vadd.f32 %v442, %v1833
    %v1835 = vpop.f32.mrf.mxu0
    %v1836 = vadd.f32 %v446, %v1835
    %v1837 = vpop.f32.mrf.mxu0
    %v1838 = vpop.f32.mrf.mxu0
    %1839 = vdwg.mxu0
    %v1840 = vadd.f32 %v1834, %v1755
    %v1841 = vxor.u32 %v1840, 2147483648
    %v1842 = vmul.f32 %v1841, 1.442695
    %v1843 = vpow.pop %v1842
    %v1844 = vadd.f32 %v1843, 1.0
    %v1845 = vrcp.pop %v1844
    %v1846 = vmul.f32 1.0, %v1845
    %v1847 = vadd.f32 %v1757, %v544
    %v1848 = vmul.f32 %v1846, %v1847
    %v1849 = vadd.f32 %v1836, %v1848
    %v1850 = vtanh.pop %v1849
    %v1851 = vsub.f32 %v1674, %v1850
    %1853 = vrot.lane.b32.xlu0 %v1851, 64
    %v1854 = vpop.permute.xlu0 %1853
    %v1856 = vmul.f32 %v1846, %v1854
    %1858 = vrot.lane.b32.xlu0 %v1856, 64
    %v1859 = vpop.permute.xlu0 %1858
    %v1861 = vadd.f32 %v1850, %v1859
    %v1863 = vrot.slane %v1792, 6
    %v1866 = vrot.slane %v1861, 6
    %vm1868 = vcmask 1041408
    %v1869 = vsel %vm1868, %v1863, %v1866
    %vm1870 = vcmask 257024
    %1871 = vst.msk [vmem:[#allocation4] sm:$0xf] %vm1870, %v1869
    %v1873 = vrot.slane %v747, 7
    %v1876 = vrot.slane %v934, 6
    %v1879 = vrot.slane %v1121, 5
    %v1882 = vrot.slane %v1300, 4
    %v1885 = vrot.slane %v1487, 3
    %v1888 = vrot.slane %v1674, 2
    %v1890 = vrot.slane %v1861, 1
    %v1893 = vrot.slane %v560, 1
    %v1895 = vrot.slane %v934, 7
    %v1897 = vrot.slane %v1121, 6
    %v1899 = vrot.slane %v1300, 5
    %v1901 = vrot.slane %v1487, 4
    %v1903 = vrot.slane %v1674, 3
    %v1905 = vrot.slane %v1861, 2
    %vm1907 = vcmask 1040384
    %v1908 = vsel %vm1907, %v560, %v1873
    %v1909 = vsel %vm1868, %v1908, %v1876
    %vm1910 = vcmask 1042432
    %v1911 = vsel %vm1910, %v1909, %v1879
    %v1912 = vsel %vm132, %v1911, %v1882
    %vm1913 = vcmask 1044480
    %v1914 = vsel %vm1913, %v1912, %v1885
    %vm1915 = vcmask 1045504
    %v1916 = vsel %vm1915, %v1914, %v1888
    %vm1917 = vcmask 1046528
    %v1918 = vsel %vm1917, %v1916, %v1890
    %v1919 = vsel %vm1907, %v1893, %v747
    %v1920 = vsel %vm1868, %v1919, %v1895
    %v1921 = vsel %vm1910, %v1920, %v1897
    %v1922 = vsel %vm132, %v1921, %v1899
    %v1923 = vsel %vm1913, %v1922, %v1901
    %v1924 = vsel %vm1915, %v1923, %v1903
    %v1925 = vsel %vm1917, %v1924, %v1905
    %v1926 = vld [vmem:[%s9] sm:$0xff]
    %v1927 = vld [vmem:[%s9 + $0x8] sm:$0xff]
    %v1928 = vld [vmem:[%s9 + $0x10] sm:$0xff]
    %v1929 = vld [vmem:[%s9 + $0x18] sm:$0xff]
    %v1930 = vld [vmem:[%s9 + $0x20] sm:$0xff]
    %v1931 = vld [vmem:[%s9 + $0x28] sm:$0xff]
    %v1932 = vld [vmem:[%s9 + $0x30] sm:$0xff]
    %v1933 = vld [vmem:[%s9 + $0x38] sm:$0xff]
    %v1934 = vld [vmem:[%s9 + $0x40] sm:$0xff]
    %v1935 = vld [vmem:[%s9 + $0x48] sm:$0xff]
    %v1936 = vld [vmem:[%s9 + $0x50] sm:$0xff]
    %v1937 = vld [vmem:[%s9 + $0x58] sm:$0xff]
    %v1938 = vld [vmem:[%s9 + $0x60] sm:$0xff]
    %v1939 = vld [vmem:[%s9 + $0x68] sm:$0xff]
    %v1940 = vld [vmem:[%s9 + $0x70] sm:$0xff]
    %v1941 = vld [vmem:[%s9 + $0x78] sm:$0xff]
    %v1942 = vld [vmem:[%s10] sm:$0x3]
    %v1944 = vlaneseq
    %v1945 = vshrl.u32 %v1944, 7
    %v1946 = vsub.s32 0, %v1945
    %v1947 = vrot.slane %v1942, %v1946
    %v1948 = vlaneseq
    %v1949 = vshrl.u32 %v1948, 7
    %v1950 = vsub.s32 1, %v1949
    %v1951 = vrot.slane %v1942, %v1950
    %v1955 = vsel %vm283, %v1918, 0
    %v1958 = vsel %vm283, %v1925, 0
    %1960 = vmatprep.subr.mxu0 0.0
    %1961 = vmatpush1.msra.mxu0 0.0
    %1962 = vmatprep.subr.mxu0 0.0
    %1963 = vmatpush1.msra.mxu0 0.0
    %1964 = vmatprep.subr.mxu0 0.0
    %1965 = vmatpush1.msra.mxu0 0.0
    %1966 = vmatprep.subr.mxu0 0.0
    %1967 = vmatpush1.msra.mxu0 0.0
    %1968 = vmatprep.subr.mxu0 0.0
    %1969 = vmatpush1.msra.mxu0 0.0
    %1970 = vmatprep.subr.mxu0 0.0
    %1971 = vmatpush1.msra.mxu0 0.0
    %1972 = vmatprep.subr.mxu0 0.0
    %1973 = vmatpush1.msra.mxu0 0.0
    %1974 = vmatprep.subr.mxu0 0.0
    %1975 = vmatpush1.msra.mxu0 0.0
    %1976 = vmatprep.subr.mxu0 %v1941
    %1977 = vmatpush1.msra.mxu0 %v1940
    %1978 = vmatprep.subr.mxu0 %v1939
    %1979 = vmatpush1.msra.mxu0 %v1938
    %1980 = vmatprep.subr.mxu0 %v1937
    %1981 = vmatpush1.msra.mxu0 %v1936
    %1982 = vmatprep.subr.mxu0 %v1935
    %1983 = vmatpush1.msra.mxu0 %v1934
    %1984 = vmatprep.subr.mxu0 %v1933
    %1985 = vmatpush1.msra.mxu0 %v1932
    %1986 = vmatprep.subr.mxu0 %v1931
    %1987 = vmatpush1.msra.mxu0 %v1930
    %1988 = vmatprep.subr.mxu0 %v1929
    %1989 = vmatpush1.msra.mxu0 %v1928
    %1990 = vmatprep.subr.mxu0 %v1927
    %1991 = vmatpush1.msra.mxu0 %v1926
    %1992 = vmatprep.subr.mxu0 0.0
    %1993 = vmatpush2.msra.mxu0 0.0
    %1994 = vmatprep.subr.mxu0 0.0
    %1995 = vmatpush2.msra.mxu0 0.0
    %1996 = vmatprep.subr.mxu0 0.0
    %1997 = vmatpush2.msra.mxu0 0.0
    %1998 = vmatprep.subr.mxu0 0.0
    %1999 = vmatpush2.msra.mxu0 0.0
    %2000 = vmatprep.subr.mxu0 0.0
    %2001 = vmatpush2.msra.mxu0 0.0
    %2002 = vmatprep.subr.mxu0 0.0
    %2003 = vmatpush2.msra.mxu0 0.0
    %2004 = vmatprep.subr.mxu0 0.0
    %2005 = vmatpush2.msra.mxu0 0.0
    %2006 = vmatprep.subr.mxu0 0.0
    %2007 = vmatpush2.msra.mxu0 0.0
    %2008 = vmatprep.subr.mxu0 0.0
    %2009 = vmatpush2.msra.mxu0 0.0
    %2010 = vmatprep.subr.mxu0 0.0
    %2011 = vmatpush2.msra.mxu0 0.0
    %2012 = vmatprep.subr.mxu0 0.0
    %2013 = vmatpush2.msra.mxu0 0.0
    %2014 = vmatprep.subr.mxu0 0.0
    %2015 = vmatpush2.msra.mxu0 0.0
    %2016 = vmatprep.subr.mxu0 0.0
    %2017 = vmatpush2.msra.mxu0 0.0
    %2018 = vmatprep.subr.mxu0 0.0
    %2019 = vmatpush2.msra.mxu0 0.0
    %2020 = vmatprep.subr.mxu0 0.0
    %2021 = vmatpush2.msra.mxu0 0.0
    %2022 = vmatprep.subr.mxu0 0.0
    %2023 = vmatpush2.msra.mxu0 0.0
    %2024 = vmatprep.mubr.f32.mxu0 0.0
    %2025 = vmatmul.mubr.f32.gmra.mxu0 %v1955
    %v2026 = vpop.f32.mrf.mxu0
    %v2027 = vadd.f32 %v1947, %v2026
    %v2028 = vpop.f32.mrf.mxu0
    %v2029 = vadd.f32 %v1951, %v2028
    %2030 = vmatprep.mubr.f32.mxu0 0.0
    %2031 = vmatmul.mubr.f32.gmra.mxu0 %v1958
    %v2032 = vpop.f32.mrf.mxu0
    %v2033 = vadd.f32 %v1947, %v2032
    %v2034 = vpop.f32.mrf.mxu0
    %v2035 = vadd.f32 %v1951, %v2034
    %2036 = vdwg.mxu0
    %2038 = vrot.lane.b32.xlu0 %v2027, 96
    %v2039 = vpop.permute.xlu0 %2038
    %vm2040 = vcmask 261120
    %v2041 = vsel %vm2040, %v2027, 0
    %v2043 = vsel %vm2040, %v2039, 0
    %2045 = vmatprep.subr.mxu0 0.0
    %2046 = vmatpush1.xpose.msra.mxu0 0.0
    %2047 = vmatprep.subr.mxu0 0.0
    %2048 = vmatpush1.xpose.msra.mxu0 0.0
    %2049 = vmatprep.subr.mxu0 0.0
    %2050 = vmatpush1.xpose.msra.mxu0 0.0
    %2051 = vmatprep.subr.mxu0 0.0
    %2052 = vmatpush1.xpose.msra.mxu0 0.0
    %2053 = vmatprep.subr.mxu0 0.0
    %2054 = vmatpush1.xpose.msra.mxu0 0.0
    %2055 = vmatprep.subr.mxu0 0.0
    %2056 = vmatpush1.xpose.msra.mxu0 0.0
    %2057 = vmatprep.subr.mxu0 0.0
    %2058 = vmatpush1.xpose.msra.mxu0 0.0
    %2059 = vmatprep.subr.mxu0 0.0
    %2060 = vmatpush1.xpose.msra.mxu0 0.0
    %2061 = vmatprep.subr.mxu0 0.0
    %2062 = vmatpush1.xpose.msra.mxu0 0.0
    %2063 = vmatprep.subr.mxu0 0.0
    %2064 = vmatpush1.xpose.msra.mxu0 0.0
    %2065 = vmatprep.subr.mxu0 0.0
    %2066 = vmatpush1.xpose.msra.mxu0 0.0
    %2067 = vmatprep.subr.mxu0 0.0
    %2068 = vmatpush1.xpose.msra.mxu0 0.0
    %2069 = vmatprep.subr.mxu0 0.0
    %2070 = vmatpush1.xpose.msra.mxu0 0.0
    %2071 = vmatprep.subr.mxu0 0.0
    %2072 = vmatpush1.xpose.msra.mxu0 0.0
    %2073 = vmatprep.subr.mxu0 0.0
    %2074 = vmatpush1.xpose.msra.mxu0 0.0
    %2075 = vmatprep.subr.mxu0 0.0
    %2076 = vmatpush1.xpose.msra.mxu0 %v2043
    %2077 = vmatprep.subr.mxu0 0.0
    %2078 = vmatpush2.xpose.msra.mxu0 0.0
    %2079 = vmatprep.subr.mxu0 0.0
    %2080 = vmatpush2.xpose.msra.mxu0 0.0
    %2081 = vmatprep.subr.mxu0 0.0
    %2082 = vmatpush2.xpose.msra.mxu0 0.0
    %2083 = vmatprep.subr.mxu0 0.0
    %2084 = vmatpush2.xpose.msra.mxu0 0.0
    %2085 = vmatprep.subr.mxu0 0.0
    %2086 = vmatpush2.xpose.msra.mxu0 0.0
    %2087 = vmatprep.subr.mxu0 0.0
    %2088 = vmatpush2.xpose.msra.mxu0 0.0
    %2089 = vmatprep.subr.mxu0 0.0
    %2090 = vmatpush2.xpose.msra.mxu0 0.0
    %2091 = vmatprep.subr.mxu0 0.0
    %2092 = vmatpush2.xpose.msra.mxu0 0.0
    %2093 = vmatprep.subr.mxu0 0.0
    %2094 = vmatpush2.xpose.msra.mxu0 0.0
    %2095 = vmatprep.subr.mxu0 0.0
    %2096 = vmatpush2.xpose.msra.mxu0 0.0
    %2097 = vmatprep.subr.mxu0 0.0
    %2098 = vmatpush2.xpose.msra.mxu0 0.0
    %2099 = vmatprep.subr.mxu0 0.0
    %2100 = vmatpush2.xpose.msra.mxu0 0.0
    %2101 = vmatprep.subr.mxu0 0.0
    %2102 = vmatpush2.xpose.msra.mxu0 0.0
    %2103 = vmatprep.subr.mxu0 0.0
    %2104 = vmatpush2.xpose.msra.mxu0 0.0
    %2105 = vmatprep.subr.mxu0 0.0
    %2106 = vmatpush2.xpose.msra.mxu0 0.0
    %2107 = vmatprep.subr.mxu0 0.0
    %2108 = vmatpush2.xpose.msra.mxu0 0.0
    %2109 = vmatprep.mubr.f32.mxu0 0.0
    %2110 = vmatmul.mubr.f32.gmra.mxu0 %v2041
    %v2111 = vpop.f32.mrf.mxu0
    %v2112 = vadd.f32 0.0, %v2111
    %v2113 = vpop.f32.mrf.mxu0
    %2114 = vdwg.mxu0
    %v2115 = vmul.f32 %v2112, 0.17677669
    %vm2116 = vcmask 64512
    %v2117 = vsel %vm2116, %v2115, -inf
    %2118 = vmax.xlane.f32.xlu0 %v2117
    %v2119 = vpop.xlane.xlu0 %2118
    %v2120 = vsub.f32 %v2115, %v2119
    %v2121 = vmul.f32 %v2120, 1.442695
    %v2122 = vpow.pop %v2121
    %v2123 = vsel %vm2116, %v2122, 0.0
    %2124 = vadd.xlane.f32.xlu0 %v2123
    %v2125 = vpop.xlane.xlu0 %2124
    %v2126 = vrcp.pop %v2125
    %v2127 = vmul.f32 %v2122, %v2126
    %2128 = vrot.lane.b32.xlu0 %v2027, 64
    %v2129 = vpop.permute.xlu0 %2128
    %v2132 = vsel %vm2116, %v2127, 0
    %2134 = vmatprep.subr.mxu0 0.0
    %2135 = vmatpush1.msra.mxu0 0.0
    %2136 = vmatprep.subr.mxu0 0.0
    %2137 = vmatpush1.msra.mxu0 0.0
    %2138 = vmatprep.subr.mxu0 0.0
    %2139 = vmatpush1.msra.mxu0 0.0
    %2140 = vmatprep.subr.mxu0 0.0
    %2141 = vmatpush1.msra.mxu0 0.0
    %2142 = vmatprep.subr.mxu0 0.0
    %2143 = vmatpush1.msra.mxu0 0.0
    %2144 = vmatprep.subr.mxu0 0.0
    %2145 = vmatpush1.msra.mxu0 0.0
    %2146 = vmatprep.subr.mxu0 0.0
    %2147 = vmatpush1.msra.mxu0 0.0
    %2148 = vmatprep.subr.mxu0 0.0
    %2149 = vmatpush1.msra.mxu0 0.0
    %2150 = vmatprep.subr.mxu0 0.0
    %2151 = vmatpush1.msra.mxu0 0.0
    %2152 = vmatprep.subr.mxu0 0.0
    %2153 = vmatpush1.msra.mxu0 0.0
    %2154 = vmatprep.subr.mxu0 0.0
    %2155 = vmatpush1.msra.mxu0 0.0
    %2156 = vmatprep.subr.mxu0 0.0
    %2157 = vmatpush1.msra.mxu0 0.0
    %2158 = vmatprep.subr.mxu0 0.0
    %2159 = vmatpush1.msra.mxu0 0.0
    %2160 = vmatprep.subr.mxu0 0.0
    %2161 = vmatpush1.msra.mxu0 0.0
    %2162 = vmatprep.subr.mxu0 0.0
    %2163 = vmatpush1.msra.mxu0 0.0
    %2164 = vmatprep.subr.mxu0 0.0
    %2165 = vmatpush1.msra.mxu0 %v2129
    %2166 = vmatprep.subr.mxu0 0.0
    %2167 = vmatpush2.msra.mxu0 0.0
    %2168 = vmatprep.subr.mxu0 0.0
    %2169 = vmatpush2.msra.mxu0 0.0
    %2170 = vmatprep.subr.mxu0 0.0
    %2171 = vmatpush2.msra.mxu0 0.0
    %2172 = vmatprep.subr.mxu0 0.0
    %2173 = vmatpush2.msra.mxu0 0.0
    %2174 = vmatprep.subr.mxu0 0.0
    %2175 = vmatpush2.msra.mxu0 0.0
    %2176 = vmatprep.subr.mxu0 0.0
    %2177 = vmatpush2.msra.mxu0 0.0
    %2178 = vmatprep.subr.mxu0 0.0
    %2179 = vmatpush2.msra.mxu0 0.0
    %2180 = vmatprep.subr.mxu0 0.0
    %2181 = vmatpush2.msra.mxu0 0.0
    %2182 = vmatprep.subr.mxu0 0.0
    %2183 = vmatpush2.msra.mxu0 0.0
    %2184 = vmatprep.subr.mxu0 0.0
    %2185 = vmatpush2.msra.mxu0 0.0
    %2186 = vmatprep.subr.mxu0 0.0
    %2187 = vmatpush2.msra.mxu0 0.0
    %2188 = vmatprep.subr.mxu0 0.0
    %2189 = vmatpush2.msra.mxu0 0.0
    %2190 = vmatprep.subr.mxu0 0.0
    %2191 = vmatpush2.msra.mxu0 0.0
    %2192 = vmatprep.subr.mxu0 0.0
    %2193 = vmatpush2.msra.mxu0 0.0
    %2194 = vmatprep.subr.mxu0 0.0
    %2195 = vmatpush2.msra.mxu0 0.0
    %2196 = vmatprep.subr.mxu0 0.0
    %2197 = vmatpush2.msra.mxu0 0.0
    %2198 = vmatprep.mubr.f32.mxu0 0.0
    %2199 = vmatmul.mubr.f32.gmra.mxu0 %v2132
    %v2200 = vpop.f32.mrf.mxu0
    %v2201 = vadd.f32 0.0, %v2200
    %v2202 = vpop.f32.mrf.mxu0
    %2203 = vdwg.mxu0
    %2204 = vrot.lane.b32.xlu0 %v2027, 32
    %v2205 = vpop.permute.xlu0 %2204
    %v2206 = vsel %vm2040, %v2205, 0
    %v2209 = vsel %vm2040, %v2029, 0
    %2211 = vmatprep.subr.mxu0 0.0
    %2212 = vmatpush1.xpose.msra.mxu0 0.0
    %2213 = vmatprep.subr.mxu0 0.0
    %2214 = vmatpush1.xpose.msra.mxu0 0.0
    %2215 = vmatprep.subr.mxu0 0.0
    %2216 = vmatpush1.xpose.msra.mxu0 0.0
    %2217 = vmatprep.subr.mxu0 0.0
    %2218 = vmatpush1.xpose.msra.mxu0 0.0
    %2219 = vmatprep.subr.mxu0 0.0
    %2220 = vmatpush1.xpose.msra.mxu0 0.0
    %2221 = vmatprep.subr.mxu0 0.0
    %2222 = vmatpush1.xpose.msra.mxu0 0.0
    %2223 = vmatprep.subr.mxu0 0.0
    %2224 = vmatpush1.xpose.msra.mxu0 0.0
    %2225 = vmatprep.subr.mxu0 0.0
    %2226 = vmatpush1.xpose.msra.mxu0 0.0
    %2227 = vmatprep.subr.mxu0 0.0
    %2228 = vmatpush1.xpose.msra.mxu0 0.0
    %2229 = vmatprep.subr.mxu0 0.0
    %2230 = vmatpush1.xpose.msra.mxu0 0.0
    %2231 = vmatprep.subr.mxu0 0.0
    %2232 = vmatpush1.xpose.msra.mxu0 0.0
    %2233 = vmatprep.subr.mxu0 0.0
    %2234 = vmatpush1.xpose.msra.mxu0 0.0
    %2235 = vmatprep.subr.mxu0 0.0
    %2236 = vmatpush1.xpose.msra.mxu0 0.0
    %2237 = vmatprep.subr.mxu0 0.0
    %2238 = vmatpush1.xpose.msra.mxu0 0.0
    %2239 = vmatprep.subr.mxu0 0.0
    %2240 = vmatpush1.xpose.msra.mxu0 0.0
    %2241 = vmatprep.subr.mxu0 0.0
    %2242 = vmatpush1.xpose.msra.mxu0 %v2209
    %2243 = vmatprep.subr.mxu0 0.0
    %2244 = vmatpush2.xpose.msra.mxu0 0.0
    %2245 = vmatprep.subr.mxu0 0.0
    %2246 = vmatpush2.xpose.msra.mxu0 0.0
    %2247 = vmatprep.subr.mxu0 0.0
    %2248 = vmatpush2.xpose.msra.mxu0 0.0
    %2249 = vmatprep.subr.mxu0 0.0
    %2250 = vmatpush2.xpose.msra.mxu0 0.0
    %2251 = vmatprep.subr.mxu0 0.0
    %2252 = vmatpush2.xpose.msra.mxu0 0.0
    %2253 = vmatprep.subr.mxu0 0.0
    %2254 = vmatpush2.xpose.msra.mxu0 0.0
    %2255 = vmatprep.subr.mxu0 0.0
    %2256 = vmatpush2.xpose.msra.mxu0 0.0
    %2257 = vmatprep.subr.mxu0 0.0
    %2258 = vmatpush2.xpose.msra.mxu0 0.0
    %2259 = vmatprep.subr.mxu0 0.0
    %2260 = vmatpush2.xpose.msra.mxu0 0.0
    %2261 = vmatprep.subr.mxu0 0.0
    %2262 = vmatpush2.xpose.msra.mxu0 0.0
    %2263 = vmatprep.subr.mxu0 0.0
    %2264 = vmatpush2.xpose.msra.mxu0 0.0
    %2265 = vmatprep.subr.mxu0 0.0
    %2266 = vmatpush2.xpose.msra.mxu0 0.0
    %2267 = vmatprep.subr.mxu0 0.0
    %2268 = vmatpush2.xpose.msra.mxu0 0.0
    %2269 = vmatprep.subr.mxu0 0.0
    %2270 = vmatpush2.xpose.msra.mxu0 0.0
    %2271 = vmatprep.subr.mxu0 0.0
    %2272 = vmatpush2.xpose.msra.mxu0 0.0
    %2273 = vmatprep.subr.mxu0 0.0
    %2274 = vmatpush2.xpose.msra.mxu0 0.0
    %2275 = vmatprep.mubr.f32.mxu0 0.0
    %2276 = vmatmul.mubr.f32.gmra.mxu0 %v2206
    %v2277 = vpop.f32.mrf.mxu0
    %v2278 = vadd.f32 0.0, %v2277
    %v2279 = vpop.f32.mrf.mxu0
    %2280 = vdwg.mxu0
    %v2281 = vmul.f32 %v2278, 0.17677669
    %v2282 = vsel %vm2116, %v2281, -inf
    %2283 = vmax.xlane.f32.xlu0 %v2282
    %v2284 = vpop.xlane.xlu0 %2283
    %v2285 = vsub.f32 %v2281, %v2284
    %v2286 = vmul.f32 %v2285, 1.442695
    %v2287 = vpow.pop %v2286
    %v2288 = vsel %vm2116, %v2287, 0.0
    %2289 = vadd.xlane.f32.xlu0 %v2288
    %v2290 = vpop.xlane.xlu0 %2289
    %v2291 = vrcp.pop %v2290
    %v2292 = vmul.f32 %v2287, %v2291
    %2293 = vrot.lane.b32.xlu0 %v2029, 96
    %v2294 = vpop.permute.xlu0 %2293
    %v2297 = vsel %vm2116, %v2292, 0
    %2299 = vmatprep.subr.mxu0 0.0
    %2300 = vmatpush1.msra.mxu0 0.0
    %2301 = vmatprep.subr.mxu0 0.0
    %2302 = vmatpush1.msra.mxu0 0.0
    %2303 = vmatprep.subr.mxu0 0.0
    %2304 = vmatpush1.msra.mxu0 0.0
    %2305 = vmatprep.subr.mxu0 0.0
    %2306 = vmatpush1.msra.mxu0 0.0
    %2307 = vmatprep.subr.mxu0 0.0
    %2308 = vmatpush1.msra.mxu0 0.0
    %2309 = vmatprep.subr.mxu0 0.0
    %2310 = vmatpush1.msra.mxu0 0.0
    %2311 = vmatprep.subr.mxu0 0.0
    %2312 = vmatpush1.msra.mxu0 0.0
    %2313 = vmatprep.subr.mxu0 0.0
    %2314 = vmatpush1.msra.mxu0 0.0
    %2315 = vmatprep.subr.mxu0 0.0
    %2316 = vmatpush1.msra.mxu0 0.0
    %2317 = vmatprep.subr.mxu0 0.0
    %2318 = vmatpush1.msra.mxu0 0.0
    %2319 = vmatprep.subr.mxu0 0.0
    %2320 = vmatpush1.msra.mxu0 0.0
    %2321 = vmatprep.subr.mxu0 0.0
    %2322 = vmatpush1.msra.mxu0 0.0
    %2323 = vmatprep.subr.mxu0 0.0
    %2324 = vmatpush1.msra.mxu0 0.0
    %2325 = vmatprep.subr.mxu0 0.0
    %2326 = vmatpush1.msra.mxu0 0.0
    %2327 = vmatprep.subr.mxu0 0.0
    %2328 = vmatpush1.msra.mxu0 0.0
    %2329 = vmatprep.subr.mxu0 0.0
    %2330 = vmatpush1.msra.mxu0 %v2294
    %2331 = vmatprep.subr.mxu0 0.0
    %2332 = vmatpush2.msra.mxu0 0.0
    %2333 = vmatprep.subr.mxu0 0.0
    %2334 = vmatpush2.msra.mxu0 0.0
    %2335 = vmatprep.subr.mxu0 0.0
    %2336 = vmatpush2.msra.mxu0 0.0
    %2337 = vmatprep.subr.mxu0 0.0
    %2338 = vmatpush2.msra.mxu0 0.0
    %2339 = vmatprep.subr.mxu0 0.0
    %2340 = vmatpush2.msra.mxu0 0.0
    %2341 = vmatprep.subr.mxu0 0.0
    %2342 = vmatpush2.msra.mxu0 0.0
    %2343 = vmatprep.subr.mxu0 0.0
    %2344 = vmatpush2.msra.mxu0 0.0
    %2345 = vmatprep.subr.mxu0 0.0
    %2346 = vmatpush2.msra.mxu0 0.0
    %2347 = vmatprep.subr.mxu0 0.0
    %2348 = vmatpush2.msra.mxu0 0.0
    %2349 = vmatprep.subr.mxu0 0.0
    %2350 = vmatpush2.msra.mxu0 0.0
    %2351 = vmatprep.subr.mxu0 0.0
    %2352 = vmatpush2.msra.mxu0 0.0
    %2353 = vmatprep.subr.mxu0 0.0
    %2354 = vmatpush2.msra.mxu0 0.0
    %2355 = vmatprep.subr.mxu0 0.0
    %2356 = vmatpush2.msra.mxu0 0.0
    %2357 = vmatprep.subr.mxu0 0.0
    %2358 = vmatpush2.msra.mxu0 0.0
    %2359 = vmatprep.subr.mxu0 0.0
    %2360 = vmatpush2.msra.mxu0 0.0
    %2361 = vmatprep.subr.mxu0 0.0
    %2362 = vmatpush2.msra.mxu0 0.0
    %2363 = vmatprep.mubr.f32.mxu0 0.0
    %2364 = vmatmul.mubr.f32.gmra.mxu0 %v2297
    %v2365 = vpop.f32.mrf.mxu0
    %v2366 = vadd.f32 0.0, %v2365
    %v2367 = vpop.f32.mrf.mxu0
    %2368 = vdwg.mxu0
    %2370 = vrot.lane.b32.xlu0 %v2366, 32
    %v2371 = vpop.permute.xlu0 %2370
    %v2373 = vsel %vm2040, %v2201, %v2371
    %2375 = vrot.lane.b32.xlu0 %v2033, 96
    %v2376 = vpop.permute.xlu0 %2375
    %v2377 = vsel %vm2040, %v2033, 0
    %v2379 = vsel %vm2040, %v2376, 0
    %2381 = vmatprep.subr.mxu0 0.0
    %2382 = vmatpush1.xpose.msra.mxu0 0.0
    %2383 = vmatprep.subr.mxu0 0.0
    %2384 = vmatpush1.xpose.msra.mxu0 0.0
    %2385 = vmatprep.subr.mxu0 0.0
    %2386 = vmatpush1.xpose.msra.mxu0 0.0
    %2387 = vmatprep.subr.mxu0 0.0
    %2388 = vmatpush1.xpose.msra.mxu0 0.0
    %2389 = vmatprep.subr.mxu0 0.0
    %2390 = vmatpush1.xpose.msra.mxu0 0.0
    %2391 = vmatprep.subr.mxu0 0.0
    %2392 = vmatpush1.xpose.msra.mxu0 0.0
    %2393 = vmatprep.subr.mxu0 0.0
    %2394 = vmatpush1.xpose.msra.mxu0 0.0
    %2395 = vmatprep.subr.mxu0 0.0
    %2396 = vmatpush1.xpose.msra.mxu0 0.0
    %2397 = vmatprep.subr.mxu0 0.0
    %2398 = vmatpush1.xpose.msra.mxu0 0.0
    %2399 = vmatprep.subr.mxu0 0.0
    %2400 = vmatpush1.xpose.msra.mxu0 0.0
    %2401 = vmatprep.subr.mxu0 0.0
    %2402 = vmatpush1.xpose.msra.mxu0 0.0
    %2403 = vmatprep.subr.mxu0 0.0
    %2404 = vmatpush1.xpose.msra.mxu0 0.0
    %2405 = vmatprep.subr.mxu0 0.0
    %2406 = vmatpush1.xpose.msra.mxu0 0.0
    %2407 = vmatprep.subr.mxu0 0.0
    %2408 = vmatpush1.xpose.msra.mxu0 0.0
    %2409 = vmatprep.subr.mxu0 0.0
    %2410 = vmatpush1.xpose.msra.mxu0 0.0
    %2411 = vmatprep.subr.mxu0 0.0
    %2412 = vmatpush1.xpose.msra.mxu0 %v2379
    %2413 = vmatprep.subr.mxu0 0.0
    %2414 = vmatpush2.xpose.msra.mxu0 0.0
    %2415 = vmatprep.subr.mxu0 0.0
    %2416 = vmatpush2.xpose.msra.mxu0 0.0
    %2417 = vmatprep.subr.mxu0 0.0
    %2418 = vmatpush2.xpose.msra.mxu0 0.0
    %2419 = vmatprep.subr.mxu0 0.0
    %2420 = vmatpush2.xpose.msra.mxu0 0.0
    %2421 = vmatprep.subr.mxu0 0.0
    %2422 = vmatpush2.xpose.msra.mxu0 0.0
    %2423 = vmatprep.subr.mxu0 0.0
    %2424 = vmatpush2.xpose.msra.mxu0 0.0
    %2425 = vmatprep.subr.mxu0 0.0
    %2426 = vmatpush2.xpose.msra.mxu0 0.0
    %2427 = vmatprep.subr.mxu0 0.0
    %2428 = vmatpush2.xpose.msra.mxu0 0.0
    %2429 = vmatprep.subr.mxu0 0.0
    %2430 = vmatpush2.xpose.msra.mxu0 0.0
    %2431 = vmatprep.subr.mxu0 0.0
    %2432 = vmatpush2.xpose.msra.mxu0 0.0
    %2433 = vmatprep.subr.mxu0 0.0
    %2434 = vmatpush2.xpose.msra.mxu0 0.0
    %2435 = vmatprep.subr.mxu0 0.0
    %2436 = vmatpush2.xpose.msra.mxu0 0.0
    %2437 = vmatprep.subr.mxu0 0.0
    %2438 = vmatpush2.xpose.msra.mxu0 0.0
    %2439 = vmatprep.subr.mxu0 0.0
    %2440 = vmatpush2.xpose.msra.mxu0 0.0
    %2441 = vmatprep.subr.mxu0 0.0
    %2442 = vmatpush2.xpose.msra.mxu0 0.0
    %2443 = vmatprep.subr.mxu0 0.0
    %2444 = vmatpush2.xpose.msra.mxu0 0.0
    %2445 = vmatprep.mubr.f32.mxu0 0.0
    %2446 = vmatmul.mubr.f32.gmra.mxu0 %v2377
    %v2447 = vpop.f32.mrf.mxu0
    %v2448 = vadd.f32 0.0, %v2447
    %v2449 = vpop.f32.mrf.mxu0
    %2450 = vdwg.mxu0
    %v2451 = vmul.f32 %v2448, 0.17677669
    %v2452 = vsel %vm2116, %v2451, -inf
    %2453 = vmax.xlane.f32.xlu0 %v2452
    %v2454 = vpop.xlane.xlu0 %2453
    %v2455 = vsub.f32 %v2451, %v2454
    %v2456 = vmul.f32 %v2455, 1.442695
    %v2457 = vpow.pop %v2456
    %v2458 = vsel %vm2116, %v2457, 0.0
    %2459 = vadd.xlane.f32.xlu0 %v2458
    %v2460 = vpop.xlane.xlu0 %2459
    %v2461 = vrcp.pop %v2460
    %v2462 = vmul.f32 %v2457, %v2461
    %2463 = vrot.lane.b32.xlu0 %v2033, 64
    %v2464 = vpop.permute.xlu0 %2463
    %v2467 = vsel %vm2116, %v2462, 0
    %2469 = vmatprep.subr.mxu0 0.0
    %2470 = vmatpush1.msra.mxu0 0.0
    %2471 = vmatprep.subr.mxu0 0.0
    %2472 = vmatpush1.msra.mxu0 0.0
    %2473 = vmatprep.subr.mxu0 0.0
    %2474 = vmatpush1.msra.mxu0 0.0
    %2475 = vmatprep.subr.mxu0 0.0
    %2476 = vmatpush1.msra.mxu0 0.0
    %2477 = vmatprep.subr.mxu0 0.0
    %2478 = vmatpush1.msra.mxu0 0.0
    %2479 = vmatprep.subr.mxu0 0.0
    %2480 = vmatpush1.msra.mxu0 0.0
    %2481 = vmatprep.subr.mxu0 0.0
    %2482 = vmatpush1.msra.mxu0 0.0
    %2483 = vmatprep.subr.mxu0 0.0
    %2484 = vmatpush1.msra.mxu0 0.0
    %2485 = vmatprep.subr.mxu0 0.0
    %2486 = vmatpush1.msra.mxu0 0.0
    %2487 = vmatprep.subr.mxu0 0.0
    %2488 = vmatpush1.msra.mxu0 0.0
    %2489 = vmatprep.subr.mxu0 0.0
    %2490 = vmatpush1.msra.mxu0 0.0
    %2491 = vmatprep.subr.mxu0 0.0
    %2492 = vmatpush1.msra.mxu0 0.0
    %2493 = vmatprep.subr.mxu0 0.0
    %2494 = vmatpush1.msra.mxu0 0.0
    %2495 = vmatprep.subr.mxu0 0.0
    %2496 = vmatpush1.msra.mxu0 0.0
    %2497 = vmatprep.subr.mxu0 0.0
    %2498 = vmatpush1.msra.mxu0 0.0
    %2499 = vmatprep.subr.mxu0 0.0
    %2500 = vmatpush1.msra.mxu0 %v2464
    %2501 = vmatprep.subr.mxu0 0.0
    %2502 = vmatpush2.msra.mxu0 0.0
    %2503 = vmatprep.subr.mxu0 0.0
    %2504 = vmatpush2.msra.mxu0 0.0
    %2505 = vmatprep.subr.mxu0 0.0
    %2506 = vmatpush2.msra.mxu0 0.0
    %2507 = vmatprep.subr.mxu0 0.0
    %2508 = vmatpush2.msra.mxu0 0.0
    %2509 = vmatprep.subr.mxu0 0.0
    %2510 = vmatpush2.msra.mxu0 0.0
    %2511 = vmatprep.subr.mxu0 0.0
    %2512 = vmatpush2.msra.mxu0 0.0
    %2513 = vmatprep.subr.mxu0 0.0
    %2514 = vmatpush2.msra.mxu0 0.0
    %2515 = vmatprep.subr.mxu0 0.0
    %2516 = vmatpush2.msra.mxu0 0.0
    %2517 = vmatprep.subr.mxu0 0.0
    %2518 = vmatpush2.msra.mxu0 0.0
    %2519 = vmatprep.subr.mxu0 0.0
    %2520 = vmatpush2.msra.mxu0 0.0
    %2521 = vmatprep.subr.mxu0 0.0
    %2522 = vmatpush2.msra.mxu0 0.0
    %2523 = vmatprep.subr.mxu0 0.0
    %2524 = vmatpush2.msra.mxu0 0.0
    %2525 = vmatprep.subr.mxu0 0.0
    %2526 = vmatpush2.msra.mxu0 0.0
    %2527 = vmatprep.subr.mxu0 0.0
    %2528 = vmatpush2.msra.mxu0 0.0
    %2529 = vmatprep.subr.mxu0 0.0
    %2530 = vmatpush2.msra.mxu0 0.0
    %2531 = vmatprep.subr.mxu0 0.0
    %2532 = vmatpush2.msra.mxu0 0.0
    %2533 = vmatprep.mubr.f32.mxu0 0.0
    %2534 = vmatmul.mubr.f32.gmra.mxu0 %v2467
    %v2535 = vpop.f32.mrf.mxu0
    %v2536 = vadd.f32 0.0, %v2535
    %v2537 = vpop.f32.mrf.mxu0
    %2538 = vdwg.mxu0
    %2539 = vrot.lane.b32.xlu0 %v2033, 32
    %v2540 = vpop.permute.xlu0 %2539
    %v2541 = vsel %vm2040, %v2540, 0
    %v2544 = vsel %vm2040, %v2035, 0
    %2546 = vmatprep.subr.mxu0 0.0
    %2547 = vmatpush1.xpose.msra.mxu0 0.0
    %2548 = vmatprep.subr.mxu0 0.0
    %2549 = vmatpush1.xpose.msra.mxu0 0.0
    %2550 = vmatprep.subr.mxu0 0.0
    %2551 = vmatpush1.xpose.msra.mxu0 0.0
    %2552 = vmatprep.subr.mxu0 0.0
    %2553 = vmatpush1.xpose.msra.mxu0 0.0
    %2554 = vmatprep.subr.mxu0 0.0
    %2555 = vmatpush1.xpose.msra.mxu0 0.0
    %2556 = vmatprep.subr.mxu0 0.0
    %2557 = vmatpush1.xpose.msra.mxu0 0.0
    %2558 = vmatprep.subr.mxu0 0.0
    %2559 = vmatpush1.xpose.msra.mxu0 0.0
    %2560 = vmatprep.subr.mxu0 0.0
    %2561 = vmatpush1.xpose.msra.mxu0 0.0
    %2562 = vmatprep.subr.mxu0 0.0
    %2563 = vmatpush1.xpose.msra.mxu0 0.0
    %2564 = vmatprep.subr.mxu0 0.0
    %2565 = vmatpush1.xpose.msra.mxu0 0.0
    %2566 = vmatprep.subr.mxu0 0.0
    %2567 = vmatpush1.xpose.msra.mxu0 0.0
    %2568 = vmatprep.subr.mxu0 0.0
    %2569 = vmatpush1.xpose.msra.mxu0 0.0
    %2570 = vmatprep.subr.mxu0 0.0
    %2571 = vmatpush1.xpose.msra.mxu0 0.0
    %2572 = vmatprep.subr.mxu0 0.0
    %2573 = vmatpush1.xpose.msra.mxu0 0.0
    %2574 = vmatprep.subr.mxu0 0.0
    %2575 = vmatpush1.xpose.msra.mxu0 0.0
    %2576 = vmatprep.subr.mxu0 0.0
    %2577 = vmatpush1.xpose.msra.mxu0 %v2544
    %2578 = vmatprep.subr.mxu0 0.0
    %2579 = vmatpush2.xpose.msra.mxu0 0.0
    %2580 = vmatprep.subr.mxu0 0.0
    %2581 = vmatpush2.xpose.msra.mxu0 0.0
    %2582 = vmatprep.subr.mxu0 0.0
    %2583 = vmatpush2.xpose.msra.mxu0 0.0
    %2584 = vmatprep.subr.mxu0 0.0
    %2585 = vmatpush2.xpose.msra.mxu0 0.0
    %2586 = vmatprep.subr.mxu0 0.0
    %2587 = vmatpush2.xpose.msra.mxu0 0.0
    %2588 = vmatprep.subr.mxu0 0.0
    %2589 = vmatpush2.xpose.msra.mxu0 0.0
    %2590 = vmatprep.subr.mxu0 0.0
    %2591 = vmatpush2.xpose.msra.mxu0 0.0
    %2592 = vmatprep.subr.mxu0 0.0
    %2593 = vmatpush2.xpose.msra.mxu0 0.0
    %2594 = vmatprep.subr.mxu0 0.0
    %2595 = vmatpush2.xpose.msra.mxu0 0.0
    %2596 = vmatprep.subr.mxu0 0.0
    %2597 = vmatpush2.xpose.msra.mxu0 0.0
    %2598 = vmatprep.subr.mxu0 0.0
    %2599 = vmatpush2.xpose.msra.mxu0 0.0
    %2600 = vmatprep.subr.mxu0 0.0
    %2601 = vmatpush2.xpose.msra.mxu0 0.0
    %2602 = vmatprep.subr.mxu0 0.0
    %2603 = vmatpush2.xpose.msra.mxu0 0.0
    %2604 = vmatprep.subr.mxu0 0.0
    %2605 = vmatpush2.xpose.msra.mxu0 0.0
    %2606 = vmatprep.subr.mxu0 0.0
    %2607 = vmatpush2.xpose.msra.mxu0 0.0
    %2608 = vmatprep.subr.mxu0 0.0
    %2609 = vmatpush2.xpose.msra.mxu0 0.0
    %2610 = vmatprep.mubr.f32.mxu0 0.0
    %2611 = vmatmul.mubr.f32.gmra.mxu0 %v2541
    %v2612 = vpop.f32.mrf.mxu0
    %v2613 = vadd.f32 0.0, %v2612
    %v2614 = vpop.f32.mrf.mxu0
    %2615 = vdwg.mxu0
    %v2616 = vmul.f32 %v2613, 0.17677669
    %v2617 = vsel %vm2116, %v2616, -inf
    %2618 = vmax.xlane.f32.xlu0 %v2617
    %v2619 = vpop.xlane.xlu0 %2618
    %v2620 = vsub.f32 %v2616, %v2619
    %v2621 = vmul.f32 %v2620, 1.442695
    %v2622 = vpow.pop %v2621
    %v2623 = vsel %vm2116, %v2622, 0.0
    %2624 = vadd.xlane.f32.xlu0 %v2623
    %v2625 = vpop.xlane.xlu0 %2624
    %v2626 = vrcp.pop %v2625
    %v2627 = vmul.f32 %v2622, %v2626
    %2628 = vrot.lane.b32.xlu0 %v2035, 96
    %v2629 = vpop.permute.xlu0 %2628
    %v2632 = vsel %vm2116, %v2627, 0
    %2634 = vmatprep.subr.mxu0 0.0
    %2635 = vmatpush1.msra.mxu0 0.0
    %2636 = vmatprep.subr.mxu0 0.0
    %2637 = vmatpush1.msra.mxu0 0.0
    %2638 = vmatprep.subr.mxu0 0.0
    %2639 = vmatpush1.msra.mxu0 0.0
    %2640 = vmatprep.subr.mxu0 0.0
    %2641 = vmatpush1.msra.mxu0 0.0
    %2642 = vmatprep.subr.mxu0 0.0
    %2643 = vmatpush1.msra.mxu0 0.0
    %2644 = vmatprep.subr.mxu0 0.0
    %2645 = vmatpush1.msra.mxu0 0.0
    %2646 = vmatprep.subr.mxu0 0.0
    %2647 = vmatpush1.msra.mxu0 0.0
    %2648 = vmatprep.subr.mxu0 0.0
    %2649 = vmatpush1.msra.mxu0 0.0
    %2650 = vmatprep.subr.mxu0 0.0
    %2651 = vmatpush1.msra.mxu0 0.0
    %2652 = vmatprep.subr.mxu0 0.0
    %2653 = vmatpush1.msra.mxu0 0.0
    %2654 = vmatprep.subr.mxu0 0.0
    %2655 = vmatpush1.msra.mxu0 0.0
    %2656 = vmatprep.subr.mxu0 0.0
    %2657 = vmatpush1.msra.mxu0 0.0
    %2658 = vmatprep.subr.mxu0 0.0
    %2659 = vmatpush1.msra.mxu0 0.0
    %2660 = vmatprep.subr.mxu0 0.0
    %2661 = vmatpush1.msra.mxu0 0.0
    %2662 = vmatprep.subr.mxu0 0.0
    %2663 = vmatpush1.msra.mxu0 0.0
    %2664 = vmatprep.subr.mxu0 0.0
    %2665 = vmatpush1.msra.mxu0 %v2629
    %2666 = vmatprep.subr.mxu0 0.0
    %2667 = vmatpush2.msra.mxu0 0.0
    %2668 = vmatprep.subr.mxu0 0.0
    %2669 = vmatpush2.msra.mxu0 0.0
    %2670 = vmatprep.subr.mxu0 0.0
    %2671 = vmatpush2.msra.mxu0 0.0
    %2672 = vmatprep.subr.mxu0 0.0
    %2673 = vmatpush2.msra.mxu0 0.0
    %2674 = vmatprep.subr.mxu0 0.0
    %2675 = vmatpush2.msra.mxu0 0.0
    %2676 = vmatprep.subr.mxu0 0.0
    %2677 = vmatpush2.msra.mxu0 0.0
    %2678 = vmatprep.subr.mxu0 0.0
    %2679 = vmatpush2.msra.mxu0 0.0
    %2680 = vmatprep.subr.mxu0 0.0
    %2681 = vmatpush2.msra.mxu0 0.0
    %2682 = vmatprep.subr.mxu0 0.0
    %2683 = vmatpush2.msra.mxu0 0.0
    %2684 = vmatprep.subr.mxu0 0.0
    %2685 = vmatpush2.msra.mxu0 0.0
    %2686 = vmatprep.subr.mxu0 0.0
    %2687 = vmatpush2.msra.mxu0 0.0
    %2688 = vmatprep.subr.mxu0 0.0
    %2689 = vmatpush2.msra.mxu0 0.0
    %2690 = vmatprep.subr.mxu0 0.0
    %2691 = vmatpush2.msra.mxu0 0.0
    %2692 = vmatprep.subr.mxu0 0.0
    %2693 = vmatpush2.msra.mxu0 0.0
    %2694 = vmatprep.subr.mxu0 0.0
    %2695 = vmatpush2.msra.mxu0 0.0
    %2696 = vmatprep.subr.mxu0 0.0
    %2697 = vmatpush2.msra.mxu0 0.0
    %2698 = vmatprep.mubr.f32.mxu0 0.0
    %2699 = vmatmul.mubr.f32.gmra.mxu0 %v2632
    %v2700 = vpop.f32.mrf.mxu0
    %v2701 = vadd.f32 0.0, %v2700
    %v2702 = vpop.f32.mrf.mxu0
    %2703 = vdwg.mxu0
    %2705 = vrot.lane.b32.xlu0 %v2701, 32
    %v2706 = vpop.permute.xlu0 %2705
    %v2708 = vsel %vm2040, %v2536, %v2706
    %v2709 = vld [vmem:[%s11] sm:$0xff]
    %v2710 = vld [vmem:[%s11 + $0x8] sm:$0xff]
    %v2711 = vld [vmem:[%s11 + $0x10] sm:$0xff]
    %v2712 = vld [vmem:[%s11 + $0x18] sm:$0xff]
    %v2713 = vld [vmem:[%s11 + $0x20] sm:$0xff]
    %v2714 = vld [vmem:[%s11 + $0x28] sm:$0xff]
    %v2715 = vld [vmem:[%s11 + $0x30] sm:$0xff]
    %v2716 = vld [vmem:[%s11 + $0x38] sm:$0xff]
    %v2717 = vld [vmem:[%s12] sm:$0x1]
    %v2719 = vlaneseq
    %v2720 = vshrl.u32 %v2719, 7
    %v2721 = vsub.s32 0, %v2720
    %v2722 = vrot.slane %v2717, %v2721
    %v2725 = vsel %vm283, %v2373, 0
    %v2728 = vsel %vm283, %v2708, 0
    %2730 = vmatprep.subr.mxu0 0.0
    %2731 = vmatpush1.msra.mxu0 0.0
    %2732 = vmatprep.subr.mxu0 0.0
    %2733 = vmatpush1.msra.mxu0 0.0
    %2734 = vmatprep.subr.mxu0 0.0
    %2735 = vmatpush1.msra.mxu0 0.0
    %2736 = vmatprep.subr.mxu0 0.0
    %2737 = vmatpush1.msra.mxu0 0.0
    %2738 = vmatprep.subr.mxu0 0.0
    %2739 = vmatpush1.msra.mxu0 0.0
    %2740 = vmatprep.subr.mxu0 0.0
    %2741 = vmatpush1.msra.mxu0 0.0
    %2742 = vmatprep.subr.mxu0 0.0
    %2743 = vmatpush1.msra.mxu0 0.0
    %2744 = vmatprep.subr.mxu0 0.0
    %2745 = vmatpush1.msra.mxu0 0.0
    %2746 = vmatprep.subr.mxu0 0.0
    %2747 = vmatpush1.msra.mxu0 %v2716
    %2748 = vmatprep.subr.mxu0 0.0
    %2749 = vmatpush1.msra.mxu0 %v2715
    %2750 = vmatprep.subr.mxu0 0.0
    %2751 = vmatpush1.msra.mxu0 %v2714
    %2752 = vmatprep.subr.mxu0 0.0
    %2753 = vmatpush1.msra.mxu0 %v2713
    %2754 = vmatprep.subr.mxu0 0.0
    %2755 = vmatpush1.msra.mxu0 %v2712
    %2756 = vmatprep.subr.mxu0 0.0
    %2757 = vmatpush1.msra.mxu0 %v2711
    %2758 = vmatprep.subr.mxu0 0.0
    %2759 = vmatpush1.msra.mxu0 %v2710
    %2760 = vmatprep.subr.mxu0 0.0
    %2761 = vmatpush1.msra.mxu0 %v2709
    %2762 = vmatprep.subr.mxu0 0.0
    %2763 = vmatpush2.msra.mxu0 0.0
    %2764 = vmatprep.subr.mxu0 0.0
    %2765 = vmatpush2.msra.mxu0 0.0
    %2766 = vmatprep.subr.mxu0 0.0
    %2767 = vmatpush2.msra.mxu0 0.0
    %2768 = vmatprep.subr.mxu0 0.0
    %2769 = vmatpush2.msra.mxu0 0.0
    %2770 = vmatprep.subr.mxu0 0.0
    %2771 = vmatpush2.msra.mxu0 0.0
    %2772 = vmatprep.subr.mxu0 0.0
    %2773 = vmatpush2.msra.mxu0 0.0
    %2774 = vmatprep.subr.mxu0 0.0
    %2775 = vmatpush2.msra.mxu0 0.0
    %2776 = vmatprep.subr.mxu0 0.0
    %2777 = vmatpush2.msra.mxu0 0.0
    %2778 = vmatprep.subr.mxu0 0.0
    %2779 = vmatpush2.msra.mxu0 0.0
    %2780 = vmatprep.subr.mxu0 0.0
    %2781 = vmatpush2.msra.mxu0 0.0
    %2782 = vmatprep.subr.mxu0 0.0
    %2783 = vmatpush2.msra.mxu0 0.0
    %2784 = vmatprep.subr.mxu0 0.0
    %2785 = vmatpush2.msra.mxu0 0.0
    %2786 = vmatprep.subr.mxu0 0.0
    %2787 = vmatpush2.msra.mxu0 0.0
    %2788 = vmatprep.subr.mxu0 0.0
    %2789 = vmatpush2.msra.mxu0 0.0
    %2790 = vmatprep.subr.mxu0 0.0
    %2791 = vmatpush2.msra.mxu0 0.0
    %2792 = vmatprep.subr.mxu0 0.0
    %2793 = vmatpush2.msra.mxu0 0.0
    %2794 = vmatprep.mubr.f32.mxu0 0.0
    %2795 = vmatmul.mubr.f32.gmra.mxu0 %v2725
    %v2796 = vpop.f32.mrf.mxu0
    %v2797 = vadd.f32 %v2722, %v2796
    %v2798 = vpop.f32.mrf.mxu0
    %2799 = vmatprep.mubr.f32.mxu0 0.0
    %2800 = vmatmul.mubr.f32.gmra.mxu0 %v2728
    %v2801 = vpop.f32.mrf.mxu0
    %v2802 = vadd.f32 %v2722, %v2801
    %v2803 = vpop.f32.mrf.mxu0
    %2804 = vdwg.mxu0
    %vm2805 = vcmp.gt.f32.partialorder %v2797, 0.0
    %vm2806 = vcmp.gt.f32.partialorder %v2802, 0.0
    %v2807 = vmul.f32 %v2797, 0.01
    %v2808 = vmul.f32 %v2802, 0.01
    %v2809 = vsel %vm2805, %v2797, %v2807
    %v2810 = vsel %vm2806, %v2802, %v2808
    %v2811 = vld [vmem:[%s13] sm:$0xff]
    %v2812 = vld [vmem:[%s13 + $0x8] sm:$0xff]
    %v2813 = vld [vmem:[%s13 + $0x10] sm:$0xff]
    %v2814 = vld [vmem:[%s13 + $0x18] sm:$0xff]
    %v2815 = vld [vmem:[%s13 + $0x20] sm:$0xff]
    %v2816 = vld [vmem:[%s13 + $0x28] sm:$0xff]
    %v2817 = vld [vmem:[%s13 + $0x30] sm:$0xff]
    %v2818 = vld [vmem:[%s13 + $0x38] sm:$0xff]
    %v2819 = vld [vmem:[%s13 + $0x40] sm:$0xff]
    %v2820 = vld [vmem:[%s13 + $0x48] sm:$0xff]
    %v2821 = vld [vmem:[%s13 + $0x50] sm:$0xff]
    %v2822 = vld [vmem:[%s13 + $0x58] sm:$0xff]
    %v2823 = vld [vmem:[%s14] sm:$0x1]
    %v2825 = vlaneseq
    %v2826 = vshrl.u32 %v2825, 7
    %v2827 = vsub.s32 0, %v2826
    %v2828 = vrot.slane %v2823, %v2827
    %vm2830 = vcmask 785408
    %v2832 = vsel %vm2830, %v2809, 0
    %v2835 = vsel %vm2830, %v2810, 0
    %2837 = vmatprep.subr.mxu0 0.0
    %2838 = vmatpush1.msra.mxu0 0.0
    %2839 = vmatprep.subr.mxu0 0.0
    %2840 = vmatpush1.msra.mxu0 0.0
    %2841 = vmatprep.subr.mxu0 0.0
    %2842 = vmatpush1.msra.mxu0 0.0
    %2843 = vmatprep.subr.mxu0 0.0
    %2844 = vmatpush1.msra.mxu0 0.0
    %2845 = vmatprep.subr.mxu0 0.0
    %2846 = vmatpush1.msra.mxu0 %v2822
    %2847 = vmatprep.subr.mxu0 0.0
    %2848 = vmatpush1.msra.mxu0 %v2821
    %2849 = vmatprep.subr.mxu0 0.0
    %2850 = vmatpush1.msra.mxu0 %v2820
    %2851 = vmatprep.subr.mxu0 0.0
    %2852 = vmatpush1.msra.mxu0 %v2819
    %2853 = vmatprep.subr.mxu0 0.0
    %2854 = vmatpush1.msra.mxu0 %v2818
    %2855 = vmatprep.subr.mxu0 0.0
    %2856 = vmatpush1.msra.mxu0 %v2817
    %2857 = vmatprep.subr.mxu0 0.0
    %2858 = vmatpush1.msra.mxu0 %v2816
    %2859 = vmatprep.subr.mxu0 0.0
    %2860 = vmatpush1.msra.mxu0 %v2815
    %2861 = vmatprep.subr.mxu0 0.0
    %2862 = vmatpush1.msra.mxu0 %v2814
    %2863 = vmatprep.subr.mxu0 0.0
    %2864 = vmatpush1.msra.mxu0 %v2813
    %2865 = vmatprep.subr.mxu0 0.0
    %2866 = vmatpush1.msra.mxu0 %v2812
    %2867 = vmatprep.subr.mxu0 0.0
    %2868 = vmatpush1.msra.mxu0 %v2811
    %2869 = vmatprep.subr.mxu0 0.0
    %2870 = vmatpush2.msra.mxu0 0.0
    %2871 = vmatprep.subr.mxu0 0.0
    %2872 = vmatpush2.msra.mxu0 0.0
    %2873 = vmatprep.subr.mxu0 0.0
    %2874 = vmatpush2.msra.mxu0 0.0
    %2875 = vmatprep.subr.mxu0 0.0
    %2876 = vmatpush2.msra.mxu0 0.0
    %2877 = vmatprep.subr.mxu0 0.0
    %2878 = vmatpush2.msra.mxu0 0.0
    %2879 = vmatprep.subr.mxu0 0.0
    %2880 = vmatpush2.msra.mxu0 0.0
    %2881 = vmatprep.subr.mxu0 0.0
    %2882 = vmatpush2.msra.mxu0 0.0
    %2883 = vmatprep.subr.mxu0 0.0
    %2884 = vmatpush2.msra.mxu0 0.0
    %2885 = vmatprep.subr.mxu0 0.0
    %2886 = vmatpush2.msra.mxu0 0.0
    %2887 = vmatprep.subr.mxu0 0.0
    %2888 = vmatpush2.msra.mxu0 0.0
    %2889 = vmatprep.subr.mxu0 0.0
    %2890 = vmatpush2.msra.mxu0 0.0
    %2891 = vmatprep.subr.mxu0 0.0
    %2892 = vmatpush2.msra.mxu0 0.0
    %2893 = vmatprep.subr.mxu0 0.0
    %2894 = vmatpush2.msra.mxu0 0.0
    %2895 = vmatprep.subr.mxu0 0.0
    %2896 = vmatpush2.msra.mxu0 0.0
    %2897 = vmatprep.subr.mxu0 0.0
    %2898 = vmatpush2.msra.mxu0 0.0
    %2899 = vmatprep.subr.mxu0 0.0
    %2900 = vmatpush2.msra.mxu0 0.0
    %2901 = vmatprep.mubr.f32.mxu0 0.0
    %2902 = vmatmul.mubr.f32.gmra.mxu0 %v2832
    %v2903 = vpop.f32.mrf.mxu0
    %v2904 = vadd.f32 %v2828, %v2903
    %v2905 = vpop.f32.mrf.mxu0
    %2906 = vmatprep.mubr.f32.mxu0 0.0
    %2907 = vmatmul.mubr.f32.gmra.mxu0 %v2835
    %v2908 = vpop.f32.mrf.mxu0
    %v2909 = vadd.f32 %v2828, %v2908
    %v2910 = vpop.f32.mrf.mxu0
    %2911 = vdwg.mxu0
    %v2912 = vxor.u32 %v2904, 2147483648
    %v2913 = vxor.u32 %v2909, 2147483648
    %v2914 = vmul.f32 %v2912, 1.442695
    %v2915 = vpow.pop %v2914
    %v2916 = vmul.f32 %v2913, 1.442695
    %v2917 = vpow.pop %v2916
    %v2918 = vadd.f32 %v2915, 1.0
    %v2919 = vadd.f32 %v2917, 1.0
    %v2920 = vrcp.pop %v2918
    %v2921 = vmul.f32 1.0, %v2920
    %v2922 = vrcp.pop %v2919
    %v2923 = vmul.f32 1.0, %v2922
    %2926 = vrot.lane.b32.xlu0 %v2904, 120
    %v2927 = vpop.permute.xlu0 %2926
    %2928 = vrot.lane.b32.xlu0 %v2909, 120
    %v2929 = vpop.permute.xlu0 %2928
    %v2932 = vmul.f32 %v2921, %v2927
    %v2933 = vmul.f32 %v2923, %v2929
    %2934 = vrot.lane.b32.xlu0 %v2904, 8
    %v2935 = vpop.permute.xlu0 %2934
    %2936 = vrot.lane.b32.xlu0 %v2909, 8
    %v2937 = vpop.permute.xlu0 %2936
    %v2940 = vadd.f32 %v2932, %v2935
    %v2941 = vadd.f32 %v2933, %v2937
    %2944 = vrot.lane.b32.xlu0 %v2940, 120
    %v2945 = vpop.permute.xlu0 %2944
    %2946 = vrot.lane.b32.xlu0 %v2941, 120
    %v2947 = vpop.permute.xlu0 %2946
    %2950 = vst.msk [vmem:[#allocation2] sm:$0xff] %vm2116, %v2945
    %2951 = vst.msk [vmem:[#allocation2 + $0x8] sm:$0xff] %vm2116, %v2947
    // Predicated region
    $region62: #{parallel_mode_forward.1} parent=1 // pred_check
      _
    $region63: #{parallel_mode_forward.1} parent=1 // pred_check_branch
      %2953 = sbr.rel (0) target = $region65
    $region64: #{parallel_mode_forward.1} parent=1 // pred_region
      %s2955 = ssub.s32 256, 256
      %2956 = vsyncadd [#allocation3], %s2955
      %s2957 = sshll.u32 [#allocation2], 4
      %s2958 = int_to_ptr.vmem [resolvable:$true] %s2957
      %2963 = dma.vmem_to_hbm [thread:$0]  %s2958, 256, %s15, [#allocation3], 128, 128, 8
    $region65: #{parallel_mode_forward.1} parent=1 // pred_fallthru
      _
    // Predicated region
    $region66: #{parallel_mode_forward.1} parent=1 // pred_check
      _
    $region67: #{parallel_mode_forward.1} parent=1 // pred_check_branch
      %2965 = sbr.rel (0) target = $region69
    $region68: #{parallel_mode_forward.1} parent=1 // pred_region
      %s2967 = ssub.s32 64, 64
      %2968 = vsyncadd [#allocation5], %s2967
      %s2970 = sshll.u32 [#allocation4], 4
      %s2971 = int_to_ptr.vmem [resolvable:$true] %s2970
      %2973 = dma.vmem_to_hbm [thread:$0]  %s2971, 64, %s16, [#allocation5]
    $region69: #{parallel_mode_forward.1} parent=1 // pred_fallthru
      _
    // Predicated region
    $region70: #{parallel_mode_forward.1} parent=1 // pred_check
      _
    $region71: #{parallel_mode_forward.1} parent=1 // pred_check_branch
      %2975 = sbr.rel (0) target = $region73
    $region72: #{parallel_mode_forward.1} parent=1 // pred_region
      %2976 = dma.done [#allocation3], 256
    $region73: #{parallel_mode_forward.1} parent=1 // pred_fallthru
      _
    // Predicated region
    $region74: #{parallel_mode_forward.1} parent=1 // pred_check
      _
    $region75: #{parallel_mode_forward.1} parent=1 // pred_check_branch
      %2978 = sbr.rel (0) target = $region77
    $region76: #{parallel_mode_forward.1} parent=1 // pred_region
      %2979 = dma.done [#allocation5], 64
    $region77: #{parallel_mode_forward.1} parent=1 // pred_fallthru
      _
    %2980 = vsyncpa [#allocation3], 1
    %2981 = vsyncpa [#allocation5], 1

</llo_original>
